<compile_context>
chip_gen: v5e
topology: v5e:2x2
jax: 0.10.0
libtpu: 0.0.40
codegen_flags: <defaults>
</compile_context>

<pallas_src>
import functools

import numpy as np

import jax
import jax.numpy as jnp
from jax.experimental import pallas as pl
from jax.experimental.pallas import tpu as pltpu

KSIZE = 7
PAD = (KSIZE - 1) // 2  # 3


# ---------------------------------------------------------------------------
# Generation-aware sizing helpers
# ---------------------------------------------------------------------------
def _vmem_capacity_bytes():
    """Physical per-core VMEM; conservative 64 MiB (v7x) if it cannot be queried."""
    try:
        info = pltpu.get_tpu_info()
        for name in ("vmem_capacity_bytes", "vmem_size_bytes", "vmem_bytes"):
            val = getattr(info, name, None)
            if val:
                return int(val)
    except Exception:
        pass
    return 64 * 1024 * 1024


def _sublane_align(dtype):
    """Sublane packing: 8 for 4-byte, 16 for 2-byte, 32 for 1-byte dtypes."""
    return max(8, 32 // jnp.dtype(dtype).itemsize)


def _pick_channel_tile(c, bytes_per_channel, budget_bytes, align):
    """Largest sublane-aligned channel tile under the byte budget.

    The tile does not need to divide C (grids use pl.cdiv and pass 1 masks the
    channel tail), so this never silently falls back to an over-budget full-C
    tile (important on v7x's 64 MiB VMEM).
    """
    cap = max(1, budget_bytes // max(1, bytes_per_channel))
    if cap >= c:
        return c
    if cap >= align:
        return (cap // align) * align
    return min(align, c)


def _conv_tap_masks(h, w):
    """(49, H*W) 0/1 f32 masks: tap (ky, kx) is valid at flat pixel k iff its
    shifted 2-D source index stays inside the image (the conv's zero padding)."""
    rows = np.repeat(np.arange(h), w)
    cols = np.tile(np.arange(w), h)
    masks = np.zeros((KSIZE * KSIZE, h * w), np.float32)
    for ky in range(KSIZE):
        dy = ky - PAD
        for kx in range(KSIZE):
            dx = kx - PAD
            ok = ((rows + dy >= 0) & (rows + dy < h) &
                  (cols + dx >= 0) & (cols + dx < w))
            masks[ky * KSIZE + kx] = ok.astype(np.float32)
    return jnp.asarray(masks)


# ---------------------------------------------------------------------------
# In-kernel 7x7 "same" conv (on the flat lane-dense layout) + sigmoid
# ---------------------------------------------------------------------------
def _conv7x7_sigmoid(ch_max, ch_mean, w_ref, m_ref, img_w):
    """ch_max/ch_mean: (1, H*W) f32 pooled maps. w_ref: SMEM (98,) f32 weights
    in (in_ch, ky, kx) order (max channel first). m_ref: VMEM (49, H*W) masks.

    A tap at (ky, kx) is a static shift by (ky-3)*W + (kx-3) of the pooled row
    (zero padded at both ends) times a 0/1 edge mask. Taps are generated lazily
    and consumed immediately — only a handful of (1, H*W) slabs stay live.
    """
    hw = ch_max.shape[-1]
    max_shift = PAD * img_w + PAD
    zpad = jnp.zeros((1, max_shift), jnp.float32)
    padded = (jnp.concatenate([zpad, ch_max, zpad], axis=1),    # channel 0: max
              jnp.concatenate([zpad, ch_mean, zpad], axis=1))   # channel 1: mean

    acc = jnp.zeros((1, hw), jnp.float32)
    for ky in range(KSIZE):
        for kx in range(KSIZE):
            idx = ky * KSIZE + kx
            off = max_shift + (ky - PAD) * img_w + (kx - PAD)
            mask = m_ref[idx:idx + 1, :]                        # (1, H*W) 0/1
            tap = (w_ref[idx] * padded[0][:, off:off + hw] +
                   w_ref[KSIZE * KSIZE + idx] * padded[1][:, off:off + hw])
            acc = acc + tap * mask
    return jax.nn.sigmoid(acc)


# ---------------------------------------------------------------------------
# Fused single-pass kernel: pool + conv + sigmoid + gate, one read of x
# ---------------------------------------------------------------------------
def _fused_kernel(w_ref, m_ref, x_ref, o_ref, *, img_w):
    # x_ref/o_ref: VMEM (1, C, H*W) — whole image resident, x read exactly once.
    xblk = x_ref[0]                                             # (C, H*W)
    ch_max = jnp.max(xblk, axis=0, keepdims=True).astype(jnp.float32)
    ch_mean = jnp.sum(xblk, axis=0, keepdims=True,
                      dtype=jnp.float32) * jnp.float32(1.0 / xblk.shape[0])
    scale = _conv7x7_sigmoid(ch_max, ch_mean, w_ref, m_ref, img_w)   # (1, H*W) f32
    o_ref[0] = (xblk * scale.astype(o_ref.dtype)).astype(o_ref.dtype)


# ---------------------------------------------------------------------------
# Two-pass fallback: pass 1 = pool + conv + sigmoid (channel-tiled reduction)
# ---------------------------------------------------------------------------
def _pool_conv_kernel(w_ref, m_ref, x_ref, s_ref, max_acc, sum_acc, *,
                      c_total, c_tile, img_w, mask_tail):
    ci = pl.program_id(1)

    @pl.when(ci == 0)
    def _init():
        max_acc[...] = jnp.full(max_acc.shape, -jnp.inf, jnp.float32)
        sum_acc[...] = jnp.zeros(sum_acc.shape, jnp.float32)

    xblk = x_ref[0]                                             # (c_tile, H*W)
    if mask_tail:
        # Channel tiles do not divide C: neutralize the out-of-range rows.
        ch_idx = jax.lax.broadcasted_iota(jnp.int32, xblk.shape, 0) + ci * c_tile
        valid = ch_idx < c_total
        xf = xblk.astype(jnp.float32)
        blk_max = jnp.max(jnp.where(valid, xf, -jnp.inf), axis=0, keepdims=True)
        blk_sum = jnp.sum(jnp.where(valid, xf, 0.0), axis=0, keepdims=True)
    else:
        blk_max = jnp.max(xblk, axis=0, keepdims=True).astype(jnp.float32)
        blk_sum = jnp.sum(xblk, axis=0, keepdims=True, dtype=jnp.float32)
    max_acc[...] = jnp.maximum(max_acc[...], blk_max)
    sum_acc[...] = sum_acc[...] + blk_sum

    @pl.when(ci == pl.num_programs(1) - 1)
    def _finalize():
        ch_mean = sum_acc[...] * jnp.float32(1.0 / c_total)
        scale = _conv7x7_sigmoid(max_acc[...], ch_mean, w_ref, m_ref, img_w)
        s_ref[0] = scale.astype(s_ref.dtype)


# Pass 2: lane-dense elementwise gating (scale already in x.dtype for floats).
def _gate_kernel(x_ref, s_ref, o_ref):
    o_ref[...] = (x_ref[...] * s_ref[...]).astype(o_ref.dtype)


# ---------------------------------------------------------------------------
# Wrapper
# ---------------------------------------------------------------------------
def spatial_gate(x, w, *, force_two_pass=False):
    """x: (N, C, H, W); w: (1, 2, 7, 7) Conv2d(2, 1, 7, bias=False) weight (OIHW)."""
    N, C, H, W = x.shape
    HW = H * W
    itemsize = jnp.dtype(x.dtype).itemsize
    align = _sublane_align(x.dtype)

    w_flat = w.reshape(-1).astype(jnp.float32)                  # (98,)
    masks = _conv_tap_masks(H, W)                               # (49, H*W)
    x_flat = x.reshape(N, C, HW)                                # lane-dense layout

    vmem_cap = _vmem_capacity_bytes()
    vmem_limit = int(min(max(32 * 1024 * 1024, vmem_cap // 2), 64 * 1024 * 1024))
    # Larger per-block budget on 128 MiB parts (v5e/v6e), conservative on v7x.
    block_budget = (6 * 1024 * 1024 if vmem_cap >= 100 * 1024 * 1024
                    else 2 * 1024 * 1024)
    fused_slab_limit = max(vmem_cap // 8, 2 * 1024 * 1024)      # ~8 MiB v7x, 16 MiB v5e/v6e

    slab_bytes = C * HW * itemsize
    conv_scratch_bytes = (KSIZE * KSIZE + 16) * HW * 4
    fused_ok = (not force_two_pass
                and slab_bytes <= fused_slab_limit
                and 4 * slab_bytes + conv_scratch_bytes < vmem_limit)

    if fused_ok:
        # TODO(synk): with N == 1 the fused path runs on a single TensorCore on
        # v7x; a halo-split over H would be needed to use both.
        cost = pl.CostEstimate(
            flops=int(N * HW * (3 * C + 5 * KSIZE * KSIZE)),
            transcendentals=int(N * HW),
            bytes_accessed=int(2 * N * slab_bytes + masks.size * 4 + w_flat.size * 4))
        out_flat = pl.pallas_call(
            functools.partial(_fused_kernel, img_w=W),
            out_shape=jax.ShapeDtypeStruct((N, C, HW), x.dtype),
            grid_spec=pltpu.PrefetchScalarGridSpec(
                num_scalar_prefetch=0,
                grid=(N,),
                in_specs=[
                    pl.BlockSpec(memory_space=pltpu.MemorySpace.SMEM),    # conv weights
                    pl.BlockSpec((KSIZE * KSIZE, HW), lambda n: (0, 0)),  # edge masks
                    pl.BlockSpec((1, C, HW), lambda n: (n, 0, 0)),        # x
                ],
                out_specs=pl.BlockSpec((1, C, HW), lambda n: (n, 0, 0)),
            ),
            compiler_params=pltpu.CompilerParams(
                dimension_semantics=("parallel",),
                vmem_limit_bytes=vmem_limit),
            cost_estimate=cost,
        )(w_flat, masks, x_flat)
        return out_flat.reshape(N, C, H, W)

    # ------------------ two-pass fallback (large C * H * W) ------------------
    scale_dtype = x.dtype if jnp.issubdtype(x.dtype, jnp.floating) else jnp.float32

    # Pass 1: scale = sigmoid(conv7x7(channel max/mean)), lane-dense (N, 1, H*W).
    ct1 = _pick_channel_tile(C, HW * itemsize, block_budget, align)
    cost1 = pl.CostEstimate(
        flops=int(N * HW * (2 * C + 5 * KSIZE * KSIZE)),
        transcendentals=int(N * HW),
        bytes_accessed=int(N * slab_bytes + N * HW * jnp.dtype(scale_dtype).itemsize))
    scale = pl.pallas_call(
        functools.partial(_pool_conv_kernel, c_total=C, c_tile=ct1, img_w=W,
                          mask_tail=(C % ct1 != 0)),
        out_shape=jax.ShapeDtypeStruct((N, 1, HW), scale_dtype),
        grid_spec=pltpu.PrefetchScalarGridSpec(
            num_scalar_prefetch=0,
            grid=(N, pl.cdiv(C, ct1)),
            in_specs=[
                pl.BlockSpec(memory_space=pltpu.MemorySpace.SMEM),
                pl.BlockSpec((KSIZE * KSIZE, HW), lambda n, ci: (0, 0)),
                pl.BlockSpec((1, ct1, HW), lambda n, ci: (n, ci, 0)),
            ],
            out_specs=pl.BlockSpec((1, 1, HW), lambda n, ci: (n, 0, 0)),
            scratch_shapes=[pltpu.VMEM((1, HW), jnp.float32),   # running max
                            pltpu.VMEM((1, HW), jnp.float32)],  # running sum
        ),
        compiler_params=pltpu.CompilerParams(
            dimension_semantics=("parallel", "arbitrary"),
            vmem_limit_bytes=vmem_limit),
        cost_estimate=cost1,
    )(w_flat, masks, x_flat)

    # Pass 2: lane-dense gating, both grid axes parallel (megacore / v7x 2 TC).
    ct2 = _pick_channel_tile(C, HW * itemsize, block_budget, align)
    if N < 2 and C > align:
        # Guarantee >= 2 parallel grid steps so both v7x TensorCores are used.
        ct2 = min(ct2, max(align, ((C + 2 * align - 1) // (2 * align)) * align))
    cost2 = pl.CostEstimate(
        flops=int(N * C * HW),
        transcendentals=0,
        bytes_accessed=int(2 * N * slab_bytes + N * HW * jnp.dtype(scale_dtype).itemsize))
    out_flat = pl.pallas_call(
        _gate_kernel,
        out_shape=jax.ShapeDtypeStruct((N, C, HW), x.dtype),
        grid_spec=pltpu.PrefetchScalarGridSpec(
            num_scalar_prefetch=0,
            grid=(N, pl.cdiv(C, ct2)),
            in_specs=[
                pl.BlockSpec((1, ct2, HW), lambda n, ci: (n, ci, 0)),
                pl.BlockSpec((1, 1, HW), lambda n, ci: (n, 0, 0)),
            ],
            out_specs=pl.BlockSpec((1, ct2, HW), lambda n, ci: (n, ci, 0)),
        ),
        compiler_params=pltpu.CompilerParams(
            dimension_semantics=("parallel", "parallel"),
            vmem_limit_bytes=vmem_limit),
        cost_estimate=cost2,
    )(x_flat, scale)

    return out_flat.reshape(N, C, H, W)


def spatial_gate_reference(x, w):
    """Pure-JAX reference mirroring the PyTorch module."""
    ch_max = jnp.max(x, axis=1, keepdims=True)
    ch_mean = jnp.mean(x, axis=1, keepdims=True)
    pooled = jnp.concatenate([ch_max, ch_mean], axis=1)         # (N, 2, H, W)
    s = jax.lax.conv_general_dilated(
        pooled, w, window_strides=(1, 1), padding=[(PAD, PAD), (PAD, PAD)],
        dimension_numbers=("NCHW", "OIHW", "NCHW"))
    return x * jax.nn.sigmoid(s)


if __name__ == "__main__":
    key = jax.random.PRNGKey(0)
    k_x, k_w = jax.random.split(key)

    N, C, H, W = 2, 4, 16, 16
    x = jax.random.normal(k_x, (N, C, H, W), dtype=jnp.float32)
    # Deterministic synthetic Conv2d(2, 1, 7, bias=False) weight (OIHW).
    w = jax.random.normal(k_w, (1, 2, KSIZE, KSIZE), dtype=jnp.float32) * 0.1

    ref = spatial_gate_reference(x, w)

    # Fused single-read fast path (default at these shapes).
    out = jax.block_until_ready(spatial_gate(x, w))
    assert out.shape == (N, C, H, W)
    assert jnp.allclose(out, ref, atol=1e-5, rtol=1e-5), "fused path mismatch"

    # Two-pass fallback path (used when C*H*W exceeds the VMEM budget).
    out_fb = jax.block_until_ready(spatial_gate(x, w, force_two_pass=True))
    assert jnp.allclose(out_fb, ref, atol=1e-5, rtol=1e-5), "two-pass path mismatch"

    print("KERNEL_OK")
</pallas_src>

<mosaic_0001>
module attributes {stable_mosaic.version = 11 : i64} {
  func.func @_fused_kernel(%arg0: i32, %arg1: memref<98xf32, #tpu.memory_space<smem>>, %arg2: memref<49x256xf32, #tpu.memory_space<vmem>>, %arg3: memref<1x4x256xf32, #tpu.memory_space<vmem>>, %arg4: memref<1x4x256xf32, #tpu.memory_space<vmem>>) attributes {dimension_semantics = [#tpu.dimension_semantics<parallel>], iteration_bounds = array<i64: 2>, scalar_prefetch = 0 : i64, scratch_operands = 0 : i64, tpu.core_type = #tpu.core_type<tc>, window_params = [{transform_indices = @transform_0, window_bounds = array<i64: 98>}, {pipeline_mode = #tpu.pipeline_mode<synchronous>, transform_indices = @transform_1, window_bounds = array<i64: 49, 256>}, {transform_indices = @transform_2, window_bounds = array<i64: 1, 4, 256>}, {transform_indices = @transform_3, window_bounds = array<i64: 1, 4, 256>}]} {
    %c0 = arith.constant 0 : index
    %c0_0 = arith.constant 0 : index
    %c0_1 = arith.constant 0 : index
    %0 = vector.load %arg3[%c0, %c0_0, %c0_1] : memref<1x4x256xf32, #tpu.memory_space<vmem>>, vector<1x4x256xf32>
    %1 = vector.shape_cast %0 : vector<1x4x256xf32> to vector<4x256xf32>
    %cst = arith.constant dense<0xFF800000> : vector<256xf32>
    %2 = vector.multi_reduction <maximumf>, %1, %cst [0] : vector<4x256xf32> to vector<256xf32>
    %3 = vector.shape_cast %2 : vector<256xf32> to vector<1x256xf32>
    %cst_2 = arith.constant dense<0.000000e+00> : vector<256xf32>
    %4 = vector.multi_reduction <add>, %1, %cst_2 [0] : vector<4x256xf32> to vector<256xf32>
    %5 = vector.shape_cast %4 : vector<256xf32> to vector<1x256xf32>
    %cst_3 = arith.constant 2.500000e-01 : f32
    %6 = vector.broadcast %cst_3 : f32 to vector<1x256xf32>
    %7 = arith.mulf %5, %6 : vector<1x256xf32>
    %cst_4 = arith.constant 0.000000e+00 : f32
    %8 = vector.broadcast %cst_4 : f32 to vector<1x51xf32>
    %9 = tpu.concatenate %8, %3, %8 in 1 : vector<1x51xf32>, vector<1x256xf32>, vector<1x51xf32> -> vector<1x358xf32>
    %10 = tpu.concatenate %8, %7, %8 in 1 : vector<1x51xf32>, vector<1x256xf32>, vector<1x51xf32> -> vector<1x358xf32>
    %cst_5 = arith.constant 0.000000e+00 : f32
    %11 = vector.broadcast %cst_5 : f32 to vector<1x256xf32>
    %c0_6 = arith.constant 0 : index
    %c0_7 = arith.constant 0 : index
    %12 = vector.load %arg2[%c0_6, %c0_7] : memref<49x256xf32, #tpu.memory_space<vmem>>, vector<1x256xf32>
    %c0_8 = arith.constant 0 : index
    %13 = memref.load %arg1[%c0_8] : memref<98xf32, #tpu.memory_space<smem>>
    %14 = vector.extract_strided_slice %9 {offsets = [0, 0], sizes = [1, 256], strides = [1, 1]} : vector<1x358xf32> to vector<1x256xf32>
    %15 = vector.broadcast %13 : f32 to vector<1x256xf32>
    %16 = arith.mulf %15, %14 : vector<1x256xf32>
    %c49 = arith.constant 49 : index
    %17 = memref.load %arg1[%c49] : memref<98xf32, #tpu.memory_space<smem>>
    %18 = vector.extract_strided_slice %10 {offsets = [0, 0], sizes = [1, 256], strides = [1, 1]} : vector<1x358xf32> to vector<1x256xf32>
    %19 = vector.broadcast %17 : f32 to vector<1x256xf32>
    %20 = arith.mulf %19, %18 : vector<1x256xf32>
    %21 = arith.addf %16, %20 : vector<1x256xf32>
    %22 = arith.mulf %21, %12 : vector<1x256xf32>
    %23 = arith.addf %11, %22 : vector<1x256xf32>
    %c1 = arith.constant 1 : index
    %c0_9 = arith.constant 0 : index
    %24 = vector.load %arg2[%c1, %c0_9] : memref<49x256xf32, #tpu.memory_space<vmem>>, vector<1x256xf32>
    %c1_10 = arith.constant 1 : index
    %25 = memref.load %arg1[%c1_10] : memref<98xf32, #tpu.memory_space<smem>>
    %26 = vector.extract_strided_slice %9 {offsets = [0, 1], sizes = [1, 256], strides = [1, 1]} : vector<1x358xf32> to vector<1x256xf32>
    %27 = vector.broadcast %25 : f32 to vector<1x256xf32>
    %28 = arith.mulf %27, %26 : vector<1x256xf32>
    %c50 = arith.constant 50 : index
    %29 = memref.load %arg1[%c50] : memref<98xf32, #tpu.memory_space<smem>>
    %30 = vector.extract_strided_slice %10 {offsets = [0, 1], sizes = [1, 256], strides = [1, 1]} : vector<1x358xf32> to vector<1x256xf32>
    %31 = vector.broadcast %29 : f32 to vector<1x256xf32>
    %32 = arith.mulf %31, %30 : vector<1x256xf32>
    %33 = arith.addf %28, %32 : vector<1x256xf32>
    %34 = arith.mulf %33, %24 : vector<1x256xf32>
    %35 = arith.addf %23, %34 : vector<1x256xf32>
    %c2 = arith.constant 2 : index
    %c0_11 = arith.constant 0 : index
    %36 = vector.load %arg2[%c2, %c0_11] : memref<49x256xf32, #tpu.memory_space<vmem>>, vector<1x256xf32>
    %c2_12 = arith.constant 2 : index
    %37 = memref.load %arg1[%c2_12] : memref<98xf32, #tpu.memory_space<smem>>
    %38 = vector.extract_strided_slice %9 {offsets = [0, 2], sizes = [1, 256], strides = [1, 1]} : vector<1x358xf32> to vector<1x256xf32>
    %39 = vector.broadcast %37 : f32 to vector<1x256xf32>
    %40 = arith.mulf %39, %38 : vector<1x256xf32>
    %c51 = arith.constant 51 : index
    %41 = memref.load %arg1[%c51] : memref<98xf32, #tpu.memory_space<smem>>
    %42 = vector.extract_strided_slice %10 {offsets = [0, 2], sizes = [1, 256], strides = [1, 1]} : vector<1x358xf32> to vector<1x256xf32>
    %43 = vector.broadcast %41 : f32 to vector<1x256xf32>
    %44 = arith.mulf %43, %42 : vector<1x256xf32>
    %45 = arith.addf %40, %44 : vector<1x256xf32>
    %46 = arith.mulf %45, %36 : vector<1x256xf32>
    %47 = arith.addf %35, %46 : vector<1x256xf32>
    %c3 = arith.constant 3 : index
    %c0_13 = arith.constant 0 : index
    %48 = vector.load %arg2[%c3, %c0_13] : memref<49x256xf32, #tpu.memory_space<vmem>>, vector<1x256xf32>
    %c3_14 = arith.constant 3 : index
    %49 = memref.load %arg1[%c3_14] : memref<98xf32, #tpu.memory_space<smem>>
    %50 = vector.extract_strided_slice %9 {offsets = [0, 3], sizes = [1, 256], strides = [1, 1]} : vector<1x358xf32> to vector<1x256xf32>
    %51 = vector.broadcast %49 : f32 to vector<1x256xf32>
    %52 = arith.mulf %51, %50 : vector<1x256xf32>
    %c52 = arith.constant 52 : index
    %53 = memref.load %arg1[%c52] : memref<98xf32, #tpu.memory_space<smem>>
    %54 = vector.extract_strided_slice %10 {offsets = [0, 3], sizes = [1, 256], strides = [1, 1]} : vector<1x358xf32> to vector<1x256xf32>
    %55 = vector.broadcast %53 : f32 to vector<1x256xf32>
    %56 = arith.mulf %55, %54 : vector<1x256xf32>
    %57 = arith.addf %52, %56 : vector<1x256xf32>
    %58 = arith.mulf %57, %48 : vector<1x256xf32>
    %59 = arith.addf %47, %58 : vector<1x256xf32>
    %c4 = arith.constant 4 : index
    %c0_15 = arith.constant 0 : index
    %60 = vector.load %arg2[%c4, %c0_15] : memref<49x256xf32, #tpu.memory_space<vmem>>, vector<1x256xf32>
    %c4_16 = arith.constant 4 : index
    %61 = memref.load %arg1[%c4_16] : memref<98xf32, #tpu.memory_space<smem>>
    %62 = vector.extract_strided_slice %9 {offsets = [0, 4], sizes = [1, 256], strides = [1, 1]} : vector<1x358xf32> to vector<1x256xf32>
    %63 = vector.broadcast %61 : f32 to vector<1x256xf32>
    %64 = arith.mulf %63, %62 : vector<1x256xf32>
    %c53 = arith.constant 53 : index
    %65 = memref.load %arg1[%c53] : memref<98xf32, #tpu.memory_space<smem>>
    %66 = vector.extract_strided_slice %10 {offsets = [0, 4], sizes = [1, 256], strides = [1, 1]} : vector<1x358xf32> to vector<1x256xf32>
    %67 = vector.broadcast %65 : f32 to vector<1x256xf32>
    %68 = arith.mulf %67, %66 : vector<1x256xf32>
    %69 = arith.addf %64, %68 : vector<1x256xf32>
    %70 = arith.mulf %69, %60 : vector<1x256xf32>
    %71 = arith.addf %59, %70 : vector<1x256xf32>
    %c5 = arith.constant 5 : index
    %c0_17 = arith.constant 0 : index
    %72 = vector.load %arg2[%c5, %c0_17] : memref<49x256xf32, #tpu.memory_space<vmem>>, vector<1x256xf32>
    %c5_18 = arith.constant 5 : index
    %73 = memref.load %arg1[%c5_18] : memref<98xf32, #tpu.memory_space<smem>>
    %74 = vector.extract_strided_slice %9 {offsets = [0, 5], sizes = [1, 256], strides = [1, 1]} : vector<1x358xf32> to vector<1x256xf32>
    %75 = vector.broadcast %73 : f32 to vector<1x256xf32>
    %76 = arith.mulf %75, %74 : vector<1x256xf32>
    %c54 = arith.constant 54 : index
    %77 = memref.load %arg1[%c54] : memref<98xf32, #tpu.memory_space<smem>>
    %78 = vector.extract_strided_slice %10 {offsets = [0, 5], sizes = [1, 256], strides = [1, 1]} : vector<1x358xf32> to vector<1x256xf32>
    %79 = vector.broadcast %77 : f32 to vector<1x256xf32>
    %80 = arith.mulf %79, %78 : vector<1x256xf32>
    %81 = arith.addf %76, %80 : vector<1x256xf32>
    %82 = arith.mulf %81, %72 : vector<1x256xf32>
    %83 = arith.addf %71, %82 : vector<1x256xf32>
    %c6 = arith.constant 6 : index
    %c0_19 = arith.constant 0 : index
    %84 = vector.load %arg2[%c6, %c0_19] : memref<49x256xf32, #tpu.memory_space<vmem>>, vector<1x256xf32>
    %c6_20 = arith.constant 6 : index
    %85 = memref.load %arg1[%c6_20] : memref<98xf32, #tpu.memory_space<smem>>
    %86 = vector.extract_strided_slice %9 {offsets = [0, 6], sizes = [1, 256], strides = [1, 1]} : vector<1x358xf32> to vector<1x256xf32>
    %87 = vector.broadcast %85 : f32 to vector<1x256xf32>
    %88 = arith.mulf %87, %86 : vector<1x256xf32>
    %c55 = arith.constant 55 : index
    %89 = memref.load %arg1[%c55] : memref<98xf32, #tpu.memory_space<smem>>
    %90 = vector.extract_strided_slice %10 {offsets = [0, 6], sizes = [1, 256], strides = [1, 1]} : vector<1x358xf32> to vector<1x256xf32>
    %91 = vector.broadcast %89 : f32 to vector<1x256xf32>
    %92 = arith.mulf %91, %90 : vector<1x256xf32>
    %93 = arith.addf %88, %92 : vector<1x256xf32>
    %94 = arith.mulf %93, %84 : vector<1x256xf32>
    %95 = arith.addf %83, %94 : vector<1x256xf32>
    %c7 = arith.constant 7 : index
    %c0_21 = arith.constant 0 : index
    %96 = vector.load %arg2[%c7, %c0_21] : memref<49x256xf32, #tpu.memory_space<vmem>>, vector<1x256xf32>
    %c7_22 = arith.constant 7 : index
    %97 = memref.load %arg1[%c7_22] : memref<98xf32, #tpu.memory_space<smem>>
    %98 = vector.extract_strided_slice %9 {offsets = [0, 16], sizes = [1, 256], strides = [1, 1]} : vector<1x358xf32> to vector<1x256xf32>
    %99 = vector.broadcast %97 : f32 to vector<1x256xf32>
    %100 = arith.mulf %99, %98 : vector<1x256xf32>
    %c56 = arith.constant 56 : index
    %101 = memref.load %arg1[%c56] : memref<98xf32, #tpu.memory_space<smem>>
    %102 = vector.extract_strided_slice %10 {offsets = [0, 16], sizes = [1, 256], strides = [1, 1]} : vector<1x358xf32> to vector<1x256xf32>
    %103 = vector.broadcast %101 : f32 to vector<1x256xf32>
    %104 = arith.mulf %103, %102 : vector<1x256xf32>
    %105 = arith.addf %100, %104 : vector<1x256xf32>
    %106 = arith.mulf %105, %96 : vector<1x256xf32>
    %107 = arith.addf %95, %106 : vector<1x256xf32>
    %c8 = arith.constant 8 : index
    %c0_23 = arith.constant 0 : index
    %108 = vector.load %arg2[%c8, %c0_23] : memref<49x256xf32, #tpu.memory_space<vmem>>, vector<1x256xf32>
    %c8_24 = arith.constant 8 : index
    %109 = memref.load %arg1[%c8_24] : memref<98xf32, #tpu.memory_space<smem>>
    %110 = vector.extract_strided_slice %9 {offsets = [0, 17], sizes = [1, 256], strides = [1, 1]} : vector<1x358xf32> to vector<1x256xf32>
    %111 = vector.broadcast %109 : f32 to vector<1x256xf32>
    %112 = arith.mulf %111, %110 : vector<1x256xf32>
    %c57 = arith.constant 57 : index
    %113 = memref.load %arg1[%c57] : memref<98xf32, #tpu.memory_space<smem>>
    %114 = vector.extract_strided_slice %10 {offsets = [0, 17], sizes = [1, 256], strides = [1, 1]} : vector<1x358xf32> to vector<1x256xf32>
    %115 = vector.broadcast %113 : f32 to vector<1x256xf32>
    %116 = arith.mulf %115, %114 : vector<1x256xf32>
    %117 = arith.addf %112, %116 : vector<1x256xf32>
    %118 = arith.mulf %117, %108 : vector<1x256xf32>
    %119 = arith.addf %107, %118 : vector<1x256xf32>
    %c9 = arith.constant 9 : index
    %c0_25 = arith.constant 0 : index
    %120 = vector.load %arg2[%c9, %c0_25] : memref<49x256xf32, #tpu.memory_space<vmem>>, vector<1x256xf32>
    %c9_26 = arith.constant 9 : index
    %121 = memref.load %arg1[%c9_26] : memref<98xf32, #tpu.memory_space<smem>>
    %122 = vector.extract_strided_slice %9 {offsets = [0, 18], sizes = [1, 256], strides = [1, 1]} : vector<1x358xf32> to vector<1x256xf32>
    %123 = vector.broadcast %121 : f32 to vector<1x256xf32>
    %124 = arith.mulf %123, %122 : vector<1x256xf32>
    %c58 = arith.constant 58 : index
    %125 = memref.load %arg1[%c58] : memref<98xf32, #tpu.memory_space<smem>>
    %126 = vector.extract_strided_slice %10 {offsets = [0, 18], sizes = [1, 256], strides = [1, 1]} : vector<1x358xf32> to vector<1x256xf32>
    %127 = vector.broadcast %125 : f32 to vector<1x256xf32>
    %128 = arith.mulf %127, %126 : vector<1x256xf32>
    %129 = arith.addf %124, %128 : vector<1x256xf32>
    %130 = arith.mulf %129, %120 : vector<1x256xf32>
    %131 = arith.addf %119, %130 : vector<1x256xf32>
    %c10 = arith.constant 10 : index
    %c0_27 = arith.constant 0 : index
    %132 = vector.load %arg2[%c10, %c0_27] : memref<49x256xf32, #tpu.memory_space<vmem>>, vector<1x256xf32>
    %c10_28 = arith.constant 10 : index
    %133 = memref.load %arg1[%c10_28] : memref<98xf32, #tpu.memory_space<smem>>
    %134 = vector.extract_strided_slice %9 {offsets = [0, 19], sizes = [1, 256], strides = [1, 1]} : vector<1x358xf32> to vector<1x256xf32>
    %135 = vector.broadcast %133 : f32 to vector<1x256xf32>
    %136 = arith.mulf %135, %134 : vector<1x256xf32>
    %c59 = arith.constant 59 : index
    %137 = memref.load %arg1[%c59] : memref<98xf32, #tpu.memory_space<smem>>
    %138 = vector.extract_strided_slice %10 {offsets = [0, 19], sizes = [1, 256], strides = [1, 1]} : vector<1x358xf32> to vector<1x256xf32>
    %139 = vector.broadcast %137 : f32 to vector<1x256xf32>
    %140 = arith.mulf %139, %138 : vector<1x256xf32>
    %141 = arith.addf %136, %140 : vector<1x256xf32>
    %142 = arith.mulf %141, %132 : vector<1x256xf32>
    %143 = arith.addf %131, %142 : vector<1x256xf32>
    %c11 = arith.constant 11 : index
    %c0_29 = arith.constant 0 : index
    %144 = vector.load %arg2[%c11, %c0_29] : memref<49x256xf32, #tpu.memory_space<vmem>>, vector<1x256xf32>
    %c11_30 = arith.constant 11 : index
    %145 = memref.load %arg1[%c11_30] : memref<98xf32, #tpu.memory_space<smem>>
    %146 = vector.extract_strided_slice %9 {offsets = [0, 20], sizes = [1, 256], strides = [1, 1]} : vector<1x358xf32> to vector<1x256xf32>
    %147 = vector.broadcast %145 : f32 to vector<1x256xf32>
    %148 = arith.mulf %147, %146 : vector<1x256xf32>
    %c60 = arith.constant 60 : index
    %149 = memref.load %arg1[%c60] : memref<98xf32, #tpu.memory_space<smem>>
    %150 = vector.extract_strided_slice %10 {offsets = [0, 20], sizes = [1, 256], strides = [1, 1]} : vector<1x358xf32> to vector<1x256xf32>
    %151 = vector.broadcast %149 : f32 to vector<1x256xf32>
    %152 = arith.mulf %151, %150 : vector<1x256xf32>
    %153 = arith.addf %148, %152 : vector<1x256xf32>
    %154 = arith.mulf %153, %144 : vector<1x256xf32>
    %155 = arith.addf %143, %154 : vector<1x256xf32>
    %c12 = arith.constant 12 : index
    %c0_31 = arith.constant 0 : index
    %156 = vector.load %arg2[%c12, %c0_31] : memref<49x256xf32, #tpu.memory_space<vmem>>, vector<1x256xf32>
    %c12_32 = arith.constant 12 : index
    %157 = memref.load %arg1[%c12_32] : memref<98xf32, #tpu.memory_space<smem>>
    %158 = vector.extract_strided_slice %9 {offsets = [0, 21], sizes = [1, 256], strides = [1, 1]} : vector<1x358xf32> to vector<1x256xf32>
    %159 = vector.broadcast %157 : f32 to vector<1x256xf32>
    %160 = arith.mulf %159, %158 : vector<1x256xf32>
    %c61 = arith.constant 61 : index
    %161 = memref.load %arg1[%c61] : memref<98xf32, #tpu.memory_space<smem>>
    %162 = vector.extract_strided_slice %10 {offsets = [0, 21], sizes = [1, 256], strides = [1, 1]} : vector<1x358xf32> to vector<1x256xf32>
    %163 = vector.broadcast %161 : f32 to vector<1x256xf32>
    %164 = arith.mulf %163, %162 : vector<1x256xf32>
    %165 = arith.addf %160, %164 : vector<1x256xf32>
    %166 = arith.mulf %165, %156 : vector<1x256xf32>
    %167 = arith.addf %155, %166 : vector<1x256xf32>
    %c13 = arith.constant 13 : index
    %c0_33 = arith.constant 0 : index
    %168 = vector.load %arg2[%c13, %c0_33] : memref<49x256xf32, #tpu.memory_space<vmem>>, vector<1x256xf32>
    %c13_34 = arith.constant 13 : index
    %169 = memref.load %arg1[%c13_34] : memref<98xf32, #tpu.memory_space<smem>>
    %170 = vector.extract_strided_slice %9 {offsets = [0, 22], sizes = [1, 256], strides = [1, 1]} : vector<1x358xf32> to vector<1x256xf32>
    %171 = vector.broadcast %169 : f32 to vector<1x256xf32>
    %172 = arith.mulf %171, %170 : vector<1x256xf32>
    %c62 = arith.constant 62 : index
    %173 = memref.load %arg1[%c62] : memref<98xf32, #tpu.memory_space<smem>>
    %174 = vector.extract_strided_slice %10 {offsets = [0, 22], sizes = [1, 256], strides = [1, 1]} : vector<1x358xf32> to vector<1x256xf32>
    %175 = vector.broadcast %173 : f32 to vector<1x256xf32>
    %176 = arith.mulf %175, %174 : vector<1x256xf32>
    %177 = arith.addf %172, %176 : vector<1x256xf32>
    %178 = arith.mulf %177, %168 : vector<1x256xf32>
    %179 = arith.addf %167, %178 : vector<1x256xf32>
    %c14 = arith.constant 14 : index
    %c0_35 = arith.constant 0 : index
    %180 = vector.load %arg2[%c14, %c0_35] : memref<49x256xf32, #tpu.memory_space<vmem>>, vector<1x256xf32>
    %c14_36 = arith.constant 14 : index
    %181 = memref.load %arg1[%c14_36] : memref<98xf32, #tpu.memory_space<smem>>
    %182 = vector.extract_strided_slice %9 {offsets = [0, 32], sizes = [1, 256], strides = [1, 1]} : vector<1x358xf32> to vector<1x256xf32>
    %183 = vector.broadcast %181 : f32 to vector<1x256xf32>
    %184 = arith.mulf %183, %182 : vector<1x256xf32>
    %c63 = arith.constant 63 : index
    %185 = memref.load %arg1[%c63] : memref<98xf32, #tpu.memory_space<smem>>
    %186 = vector.extract_strided_slice %10 {offsets = [0, 32], sizes = [1, 256], strides = [1, 1]} : vector<1x358xf32> to vector<1x256xf32>
    %187 = vector.broadcast %185 : f32 to vector<1x256xf32>
    %188 = arith.mulf %187, %186 : vector<1x256xf32>
    %189 = arith.addf %184, %188 : vector<1x256xf32>
    %190 = arith.mulf %189, %180 : vector<1x256xf32>
    %191 = arith.addf %179, %190 : vector<1x256xf32>
    %c15 = arith.constant 15 : index
    %c0_37 = arith.constant 0 : index
    %192 = vector.load %arg2[%c15, %c0_37] : memref<49x256xf32, #tpu.memory_space<vmem>>, vector<1x256xf32>
    %c15_38 = arith.constant 15 : index
    %193 = memref.load %arg1[%c15_38] : memref<98xf32, #tpu.memory_space<smem>>
    %194 = vector.extract_strided_slice %9 {offsets = [0, 33], sizes = [1, 256], strides = [1, 1]} : vector<1x358xf32> to vector<1x256xf32>
    %195 = vector.broadcast %193 : f32 to vector<1x256xf32>
    %196 = arith.mulf %195, %194 : vector<1x256xf32>
    %c64 = arith.constant 64 : index
    %197 = memref.load %arg1[%c64] : memref<98xf32, #tpu.memory_space<smem>>
    %198 = vector.extract_strided_slice %10 {offsets = [0, 33], sizes = [1, 256], strides = [1, 1]} : vector<1x358xf32> to vector<1x256xf32>
    %199 = vector.broadcast %197 : f32 to vector<1x256xf32>
    %200 = arith.mulf %199, %198 : vector<1x256xf32>
    %201 = arith.addf %196, %200 : vector<1x256xf32>
    %202 = arith.mulf %201, %192 : vector<1x256xf32>
    %203 = arith.addf %191, %202 : vector<1x256xf32>
    %c16 = arith.constant 16 : index
    %c0_39 = arith.constant 0 : index
    %204 = vector.load %arg2[%c16, %c0_39] : memref<49x256xf32, #tpu.memory_space<vmem>>, vector<1x256xf32>
    %c16_40 = arith.constant 16 : index
    %205 = memref.load %arg1[%c16_40] : memref<98xf32, #tpu.memory_space<smem>>
    %206 = vector.extract_strided_slice %9 {offsets = [0, 34], sizes = [1, 256], strides = [1, 1]} : vector<1x358xf32> to vector<1x256xf32>
    %207 = vector.broadcast %205 : f32 to vector<1x256xf32>
    %208 = arith.mulf %207, %206 : vector<1x256xf32>
    %c65 = arith.constant 65 : index
    %209 = memref.load %arg1[%c65] : memref<98xf32, #tpu.memory_space<smem>>
    %210 = vector.extract_strided_slice %10 {offsets = [0, 34], sizes = [1, 256], strides = [1, 1]} : vector<1x358xf32> to vector<1x256xf32>
    %211 = vector.broadcast %209 : f32 to vector<1x256xf32>
    %212 = arith.mulf %211, %210 : vector<1x256xf32>
    %213 = arith.addf %208, %212 : vector<1x256xf32>
    %214 = arith.mulf %213, %204 : vector<1x256xf32>
    %215 = arith.addf %203, %214 : vector<1x256xf32>
    %c17 = arith.constant 17 : index
    %c0_41 = arith.constant 0 : index
    %216 = vector.load %arg2[%c17, %c0_41] : memref<49x256xf32, #tpu.memory_space<vmem>>, vector<1x256xf32>
    %c17_42 = arith.constant 17 : index
    %217 = memref.load %arg1[%c17_42] : memref<98xf32, #tpu.memory_space<smem>>
    %218 = vector.extract_strided_slice %9 {offsets = [0, 35], sizes = [1, 256], strides = [1, 1]} : vector<1x358xf32> to vector<1x256xf32>
    %219 = vector.broadcast %217 : f32 to vector<1x256xf32>
    %220 = arith.mulf %219, %218 : vector<1x256xf32>
    %c66 = arith.constant 66 : index
    %221 = memref.load %arg1[%c66] : memref<98xf32, #tpu.memory_space<smem>>
    %222 = vector.extract_strided_slice %10 {offsets = [0, 35], sizes = [1, 256], strides = [1, 1]} : vector<1x358xf32> to vector<1x256xf32>
    %223 = vector.broadcast %221 : f32 to vector<1x256xf32>
    %224 = arith.mulf %223, %222 : vector<1x256xf32>
    %225 = arith.addf %220, %224 : vector<1x256xf32>
    %226 = arith.mulf %225, %216 : vector<1x256xf32>
    %227 = arith.addf %215, %226 : vector<1x256xf32>
    %c18 = arith.constant 18 : index
    %c0_43 = arith.constant 0 : index
    %228 = vector.load %arg2[%c18, %c0_43] : memref<49x256xf32, #tpu.memory_space<vmem>>, vector<1x256xf32>
    %c18_44 = arith.constant 18 : index
    %229 = memref.load %arg1[%c18_44] : memref<98xf32, #tpu.memory_space<smem>>
    %230 = vector.extract_strided_slice %9 {offsets = [0, 36], sizes = [1, 256], strides = [1, 1]} : vector<1x358xf32> to vector<1x256xf32>
    %231 = vector.broadcast %229 : f32 to vector<1x256xf32>
    %232 = arith.mulf %231, %230 : vector<1x256xf32>
    %c67 = arith.constant 67 : index
    %233 = memref.load %arg1[%c67] : memref<98xf32, #tpu.memory_space<smem>>
    %234 = vector.extract_strided_slice %10 {offsets = [0, 36], sizes = [1, 256], strides = [1, 1]} : vector<1x358xf32> to vector<1x256xf32>
    %235 = vector.broadcast %233 : f32 to vector<1x256xf32>
    %236 = arith.mulf %235, %234 : vector<1x256xf32>
    %237 = arith.addf %232, %236 : vector<1x256xf32>
    %238 = arith.mulf %237, %228 : vector<1x256xf32>
    %239 = arith.addf %227, %238 : vector<1x256xf32>
    %c19 = arith.constant 19 : index
    %c0_45 = arith.constant 0 : index
    %240 = vector.load %arg2[%c19, %c0_45] : memref<49x256xf32, #tpu.memory_space<vmem>>, vector<1x256xf32>
    %c19_46 = arith.constant 19 : index
    %241 = memref.load %arg1[%c19_46] : memref<98xf32, #tpu.memory_space<smem>>
    %242 = vector.extract_strided_slice %9 {offsets = [0, 37], sizes = [1, 256], strides = [1, 1]} : vector<1x358xf32> to vector<1x256xf32>
    %243 = vector.broadcast %241 : f32 to vector<1x256xf32>
    %244 = arith.mulf %243, %242 : vector<1x256xf32>
    %c68 = arith.constant 68 : index
    %245 = memref.load %arg1[%c68] : memref<98xf32, #tpu.memory_space<smem>>
    %246 = vector.extract_strided_slice %10 {offsets = [0, 37], sizes = [1, 256], strides = [1, 1]} : vector<1x358xf32> to vector<1x256xf32>
    %247 = vector.broadcast %245 : f32 to vector<1x256xf32>
    %248 = arith.mulf %247, %246 : vector<1x256xf32>
    %249 = arith.addf %244, %248 : vector<1x256xf32>
    %250 = arith.mulf %249, %240 : vector<1x256xf32>
    %251 = arith.addf %239, %250 : vector<1x256xf32>
    %c20 = arith.constant 20 : index
    %c0_47 = arith.constant 0 : index
    %252 = vector.load %arg2[%c20, %c0_47] : memref<49x256xf32, #tpu.memory_space<vmem>>, vector<1x256xf32>
    %c20_48 = arith.constant 20 : index
    %253 = memref.load %arg1[%c20_48] : memref<98xf32, #tpu.memory_space<smem>>
    %254 = vector.extract_strided_slice %9 {offsets = [0, 38], sizes = [1, 256], strides = [1, 1]} : vector<1x358xf32> to vector<1x256xf32>
    %255 = vector.broadcast %253 : f32 to vector<1x256xf32>
    %256 = arith.mulf %255, %254 : vector<1x256xf32>
    %c69 = arith.constant 69 : index
    %257 = memref.load %arg1[%c69] : memref<98xf32, #tpu.memory_space<smem>>
    %258 = vector.extract_strided_slice %10 {offsets = [0, 38], sizes = [1, 256], strides = [1, 1]} : vector<1x358xf32> to vector<1x256xf32>
    %259 = vector.broadcast %257 : f32 to vector<1x256xf32>
    %260 = arith.mulf %259, %258 : vector<1x256xf32>
    %261 = arith.addf %256, %260 : vector<1x256xf32>
    %262 = arith.mulf %261, %252 : vector<1x256xf32>
    %263 = arith.addf %251, %262 : vector<1x256xf32>
    %c21 = arith.constant 21 : index
    %c0_49 = arith.constant 0 : index
    %264 = vector.load %arg2[%c21, %c0_49] : memref<49x256xf32, #tpu.memory_space<vmem>>, vector<1x256xf32>
    %c21_50 = arith.constant 21 : index
    %265 = memref.load %arg1[%c21_50] : memref<98xf32, #tpu.memory_space<smem>>
    %266 = vector.extract_strided_slice %9 {offsets = [0, 48], sizes = [1, 256], strides = [1, 1]} : vector<1x358xf32> to vector<1x256xf32>
    %267 = vector.broadcast %265 : f32 to vector<1x256xf32>
    %268 = arith.mulf %267, %266 : vector<1x256xf32>
    %c70 = arith.constant 70 : index
    %269 = memref.load %arg1[%c70] : memref<98xf32, #tpu.memory_space<smem>>
    %270 = vector.extract_strided_slice %10 {offsets = [0, 48], sizes = [1, 256], strides = [1, 1]} : vector<1x358xf32> to vector<1x256xf32>
    %271 = vector.broadcast %269 : f32 to vector<1x256xf32>
    %272 = arith.mulf %271, %270 : vector<1x256xf32>
    %273 = arith.addf %268, %272 : vector<1x256xf32>
    %274 = arith.mulf %273, %264 : vector<1x256xf32>
    %275 = arith.addf %263, %274 : vector<1x256xf32>
    %c22 = arith.constant 22 : index
    %c0_51 = arith.constant 0 : index
    %276 = vector.load %arg2[%c22, %c0_51] : memref<49x256xf32, #tpu.memory_space<vmem>>, vector<1x256xf32>
    %c22_52 = arith.constant 22 : index
    %277 = memref.load %arg1[%c22_52] : memref<98xf32, #tpu.memory_space<smem>>
    %278 = vector.extract_strided_slice %9 {offsets = [0, 49], sizes = [1, 256], strides = [1, 1]} : vector<1x358xf32> to vector<1x256xf32>
    %279 = vector.broadcast %277 : f32 to vector<1x256xf32>
    %280 = arith.mulf %279, %278 : vector<1x256xf32>
    %c71 = arith.constant 71 : index
    %281 = memref.load %arg1[%c71] : memref<98xf32, #tpu.memory_space<smem>>
    %282 = vector.extract_strided_slice %10 {offsets = [0, 49], sizes = [1, 256], strides = [1, 1]} : vector<1x358xf32> to vector<1x256xf32>
    %283 = vector.broadcast %281 : f32 to vector<1x256xf32>
    %284 = arith.mulf %283, %282 : vector<1x256xf32>
    %285 = arith.addf %280, %284 : vector<1x256xf32>
    %286 = arith.mulf %285, %276 : vector<1x256xf32>
    %287 = arith.addf %275, %286 : vector<1x256xf32>
    %c23 = arith.constant 23 : index
    %c0_53 = arith.constant 0 : index
    %288 = vector.load %arg2[%c23, %c0_53] : memref<49x256xf32, #tpu.memory_space<vmem>>, vector<1x256xf32>
    %c23_54 = arith.constant 23 : index
    %289 = memref.load %arg1[%c23_54] : memref<98xf32, #tpu.memory_space<smem>>
    %290 = vector.extract_strided_slice %9 {offsets = [0, 50], sizes = [1, 256], strides = [1, 1]} : vector<1x358xf32> to vector<1x256xf32>
    %291 = vector.broadcast %289 : f32 to vector<1x256xf32>
    %292 = arith.mulf %291, %290 : vector<1x256xf32>
    %c72 = arith.constant 72 : index
    %293 = memref.load %arg1[%c72] : memref<98xf32, #tpu.memory_space<smem>>
    %294 = vector.extract_strided_slice %10 {offsets = [0, 50], sizes = [1, 256], strides = [1, 1]} : vector<1x358xf32> to vector<1x256xf32>
    %295 = vector.broadcast %293 : f32 to vector<1x256xf32>
    %296 = arith.mulf %295, %294 : vector<1x256xf32>
    %297 = arith.addf %292, %296 : vector<1x256xf32>
    %298 = arith.mulf %297, %288 : vector<1x256xf32>
    %299 = arith.addf %287, %298 : vector<1x256xf32>
    %c24 = arith.constant 24 : index
    %c0_55 = arith.constant 0 : index
    %300 = vector.load %arg2[%c24, %c0_55] : memref<49x256xf32, #tpu.memory_space<vmem>>, vector<1x256xf32>
    %c24_56 = arith.constant 24 : index
    %301 = memref.load %arg1[%c24_56] : memref<98xf32, #tpu.memory_space<smem>>
    %302 = vector.extract_strided_slice %9 {offsets = [0, 51], sizes = [1, 256], strides = [1, 1]} : vector<1x358xf32> to vector<1x256xf32>
    %303 = vector.broadcast %301 : f32 to vector<1x256xf32>
    %304 = arith.mulf %303, %302 : vector<1x256xf32>
    %c73 = arith.constant 73 : index
    %305 = memref.load %arg1[%c73] : memref<98xf32, #tpu.memory_space<smem>>
    %306 = vector.extract_strided_slice %10 {offsets = [0, 51], sizes = [1, 256], strides = [1, 1]} : vector<1x358xf32> to vector<1x256xf32>
    %307 = vector.broadcast %305 : f32 to vector<1x256xf32>
    %308 = arith.mulf %307, %306 : vector<1x256xf32>
    %309 = arith.addf %304, %308 : vector<1x256xf32>
    %310 = arith.mulf %309, %300 : vector<1x256xf32>
    %311 = arith.addf %299, %310 : vector<1x256xf32>
    %c25 = arith.constant 25 : index
    %c0_57 = arith.constant 0 : index
    %312 = vector.load %arg2[%c25, %c0_57] : memref<49x256xf32, #tpu.memory_space<vmem>>, vector<1x256xf32>
    %c25_58 = arith.constant 25 : index
    %313 = memref.load %arg1[%c25_58] : memref<98xf32, #tpu.memory_space<smem>>
    %314 = vector.extract_strided_slice %9 {offsets = [0, 52], sizes = [1, 256], strides = [1, 1]} : vector<1x358xf32> to vector<1x256xf32>
    %315 = vector.broadcast %313 : f32 to vector<1x256xf32>
    %316 = arith.mulf %315, %314 : vector<1x256xf32>
    %c74 = arith.constant 74 : index
    %317 = memref.load %arg1[%c74] : memref<98xf32, #tpu.memory_space<smem>>
    %318 = vector.extract_strided_slice %10 {offsets = [0, 52], sizes = [1, 256], strides = [1, 1]} : vector<1x358xf32> to vector<1x256xf32>
    %319 = vector.broadcast %317 : f32 to vector<1x256xf32>
    %320 = arith.mulf %319, %318 : vector<1x256xf32>
    %321 = arith.addf %316, %320 : vector<1x256xf32>
    %322 = arith.mulf %321, %312 : vector<1x256xf32>
    %323 = arith.addf %311, %322 : vector<1x256xf32>
    %c26 = arith.constant 26 : index
    %c0_59 = arith.constant 0 : index
    %324 = vector.load %arg2[%c26, %c0_59] : memref<49x256xf32, #tpu.memory_space<vmem>>, vector<1x256xf32>
    %c26_60 = arith.constant 26 : index
    %325 = memref.load %arg1[%c26_60] : memref<98xf32, #tpu.memory_space<smem>>
    %326 = vector.extract_strided_slice %9 {offsets = [0, 53], sizes = [1, 256], strides = [1, 1]} : vector<1x358xf32> to vector<1x256xf32>
    %327 = vector.broadcast %325 : f32 to vector<1x256xf32>
    %328 = arith.mulf %327, %326 : vector<1x256xf32>
    %c75 = arith.constant 75 : index
    %329 = memref.load %arg1[%c75] : memref<98xf32, #tpu.memory_space<smem>>
    %330 = vector.extract_strided_slice %10 {offsets = [0, 53], sizes = [1, 256], strides = [1, 1]} : vector<1x358xf32> to vector<1x256xf32>
    %331 = vector.broadcast %329 : f32 to vector<1x256xf32>
    %332 = arith.mulf %331, %330 : vector<1x256xf32>
    %333 = arith.addf %328, %332 : vector<1x256xf32>
    %334 = arith.mulf %333, %324 : vector<1x256xf32>
    %335 = arith.addf %323, %334 : vector<1x256xf32>
    %c27 = arith.constant 27 : index
    %c0_61 = arith.constant 0 : index
    %336 = vector.load %arg2[%c27, %c0_61] : memref<49x256xf32, #tpu.memory_space<vmem>>, vector<1x256xf32>
    %c27_62 = arith.constant 27 : index
    %337 = memref.load %arg1[%c27_62] : memref<98xf32, #tpu.memory_space<smem>>
    %338 = vector.extract_strided_slice %9 {offsets = [0, 54], sizes = [1, 256], strides = [1, 1]} : vector<1x358xf32> to vector<1x256xf32>
    %339 = vector.broadcast %337 : f32 to vector<1x256xf32>
    %340 = arith.mulf %339, %338 : vector<1x256xf32>
    %c76 = arith.constant 76 : index
    %341 = memref.load %arg1[%c76] : memref<98xf32, #tpu.memory_space<smem>>
    %342 = vector.extract_strided_slice %10 {offsets = [0, 54], sizes = [1, 256], strides = [1, 1]} : vector<1x358xf32> to vector<1x256xf32>
    %343 = vector.broadcast %341 : f32 to vector<1x256xf32>
    %344 = arith.mulf %343, %342 : vector<1x256xf32>
    %345 = arith.addf %340, %344 : vector<1x256xf32>
    %346 = arith.mulf %345, %336 : vector<1x256xf32>
    %347 = arith.addf %335, %346 : vector<1x256xf32>
    %c28 = arith.constant 28 : index
    %c0_63 = arith.constant 0 : index
    %348 = vector.load %arg2[%c28, %c0_63] : memref<49x256xf32, #tpu.memory_space<vmem>>, vector<1x256xf32>
    %c28_64 = arith.constant 28 : index
    %349 = memref.load %arg1[%c28_64] : memref<98xf32, #tpu.memory_space<smem>>
    %350 = vector.extract_strided_slice %9 {offsets = [0, 64], sizes = [1, 256], strides = [1, 1]} : vector<1x358xf32> to vector<1x256xf32>
    %351 = vector.broadcast %349 : f32 to vector<1x256xf32>
    %352 = arith.mulf %351, %350 : vector<1x256xf32>
    %c77 = arith.constant 77 : index
    %353 = memref.load %arg1[%c77] : memref<98xf32, #tpu.memory_space<smem>>
    %354 = vector.extract_strided_slice %10 {offsets = [0, 64], sizes = [1, 256], strides = [1, 1]} : vector<1x358xf32> to vector<1x256xf32>
    %355 = vector.broadcast %353 : f32 to vector<1x256xf32>
    %356 = arith.mulf %355, %354 : vector<1x256xf32>
    %357 = arith.addf %352, %356 : vector<1x256xf32>
    %358 = arith.mulf %357, %348 : vector<1x256xf32>
    %359 = arith.addf %347, %358 : vector<1x256xf32>
    %c29 = arith.constant 29 : index
    %c0_65 = arith.constant 0 : index
    %360 = vector.load %arg2[%c29, %c0_65] : memref<49x256xf32, #tpu.memory_space<vmem>>, vector<1x256xf32>
    %c29_66 = arith.constant 29 : index
    %361 = memref.load %arg1[%c29_66] : memref<98xf32, #tpu.memory_space<smem>>
    %362 = vector.extract_strided_slice %9 {offsets = [0, 65], sizes = [1, 256], strides = [1, 1]} : vector<1x358xf32> to vector<1x256xf32>
    %363 = vector.broadcast %361 : f32 to vector<1x256xf32>
    %364 = arith.mulf %363, %362 : vector<1x256xf32>
    %c78 = arith.constant 78 : index
    %365 = memref.load %arg1[%c78] : memref<98xf32, #tpu.memory_space<smem>>
    %366 = vector.extract_strided_slice %10 {offsets = [0, 65], sizes = [1, 256], strides = [1, 1]} : vector<1x358xf32> to vector<1x256xf32>
    %367 = vector.broadcast %365 : f32 to vector<1x256xf32>
    %368 = arith.mulf %367, %366 : vector<1x256xf32>
    %369 = arith.addf %364, %368 : vector<1x256xf32>
    %370 = arith.mulf %369, %360 : vector<1x256xf32>
    %371 = arith.addf %359, %370 : vector<1x256xf32>
    %c30 = arith.constant 30 : index
    %c0_67 = arith.constant 0 : index
    %372 = vector.load %arg2[%c30, %c0_67] : memref<49x256xf32, #tpu.memory_space<vmem>>, vector<1x256xf32>
    %c30_68 = arith.constant 30 : index
    %373 = memref.load %arg1[%c30_68] : memref<98xf32, #tpu.memory_space<smem>>
    %374 = vector.extract_strided_slice %9 {offsets = [0, 66], sizes = [1, 256], strides = [1, 1]} : vector<1x358xf32> to vector<1x256xf32>
    %375 = vector.broadcast %373 : f32 to vector<1x256xf32>
    %376 = arith.mulf %375, %374 : vector<1x256xf32>
    %c79 = arith.constant 79 : index
    %377 = memref.load %arg1[%c79] : memref<98xf32, #tpu.memory_space<smem>>
    %378 = vector.extract_strided_slice %10 {offsets = [0, 66], sizes = [1, 256], strides = [1, 1]} : vector<1x358xf32> to vector<1x256xf32>
    %379 = vector.broadcast %377 : f32 to vector<1x256xf32>
    %380 = arith.mulf %379, %378 : vector<1x256xf32>
    %381 = arith.addf %376, %380 : vector<1x256xf32>
    %382 = arith.mulf %381, %372 : vector<1x256xf32>
    %383 = arith.addf %371, %382 : vector<1x256xf32>
    %c31 = arith.constant 31 : index
    %c0_69 = arith.constant 0 : index
    %384 = vector.load %arg2[%c31, %c0_69] : memref<49x256xf32, #tpu.memory_space<vmem>>, vector<1x256xf32>
    %c31_70 = arith.constant 31 : index
    %385 = memref.load %arg1[%c31_70] : memref<98xf32, #tpu.memory_space<smem>>
    %386 = vector.extract_strided_slice %9 {offsets = [0, 67], sizes = [1, 256], strides = [1, 1]} : vector<1x358xf32> to vector<1x256xf32>
    %387 = vector.broadcast %385 : f32 to vector<1x256xf32>
    %388 = arith.mulf %387, %386 : vector<1x256xf32>
    %c80 = arith.constant 80 : index
    %389 = memref.load %arg1[%c80] : memref<98xf32, #tpu.memory_space<smem>>
    %390 = vector.extract_strided_slice %10 {offsets = [0, 67], sizes = [1, 256], strides = [1, 1]} : vector<1x358xf32> to vector<1x256xf32>
    %391 = vector.broadcast %389 : f32 to vector<1x256xf32>
    %392 = arith.mulf %391, %390 : vector<1x256xf32>
    %393 = arith.addf %388, %392 : vector<1x256xf32>
    %394 = arith.mulf %393, %384 : vector<1x256xf32>
    %395 = arith.addf %383, %394 : vector<1x256xf32>
    %c32 = arith.constant 32 : index
    %c0_71 = arith.constant 0 : index
    %396 = vector.load %arg2[%c32, %c0_71] : memref<49x256xf32, #tpu.memory_space<vmem>>, vector<1x256xf32>
    %c32_72 = arith.constant 32 : index
    %397 = memref.load %arg1[%c32_72] : memref<98xf32, #tpu.memory_space<smem>>
    %398 = vector.extract_strided_slice %9 {offsets = [0, 68], sizes = [1, 256], strides = [1, 1]} : vector<1x358xf32> to vector<1x256xf32>
    %399 = vector.broadcast %397 : f32 to vector<1x256xf32>
    %400 = arith.mulf %399, %398 : vector<1x256xf32>
    %c81 = arith.constant 81 : index
    %401 = memref.load %arg1[%c81] : memref<98xf32, #tpu.memory_space<smem>>
    %402 = vector.extract_strided_slice %10 {offsets = [0, 68], sizes = [1, 256], strides = [1, 1]} : vector<1x358xf32> to vector<1x256xf32>
    %403 = vector.broadcast %401 : f32 to vector<1x256xf32>
    %404 = arith.mulf %403, %402 : vector<1x256xf32>
    %405 = arith.addf %400, %404 : vector<1x256xf32>
    %406 = arith.mulf %405, %396 : vector<1x256xf32>
    %407 = arith.addf %395, %406 : vector<1x256xf32>
    %c33 = arith.constant 33 : index
    %c0_73 = arith.constant 0 : index
    %408 = vector.load %arg2[%c33, %c0_73] : memref<49x256xf32, #tpu.memory_space<vmem>>, vector<1x256xf32>
    %c33_74 = arith.constant 33 : index
    %409 = memref.load %arg1[%c33_74] : memref<98xf32, #tpu.memory_space<smem>>
    %410 = vector.extract_strided_slice %9 {offsets = [0, 69], sizes = [1, 256], strides = [1, 1]} : vector<1x358xf32> to vector<1x256xf32>
    %411 = vector.broadcast %409 : f32 to vector<1x256xf32>
    %412 = arith.mulf %411, %410 : vector<1x256xf32>
    %c82 = arith.constant 82 : index
    %413 = memref.load %arg1[%c82] : memref<98xf32, #tpu.memory_space<smem>>
    %414 = vector.extract_strided_slice %10 {offsets = [0, 69], sizes = [1, 256], strides = [1, 1]} : vector<1x358xf32> to vector<1x256xf32>
    %415 = vector.broadcast %413 : f32 to vector<1x256xf32>
    %416 = arith.mulf %415, %414 : vector<1x256xf32>
    %417 = arith.addf %412, %416 : vector<1x256xf32>
    %418 = arith.mulf %417, %408 : vector<1x256xf32>
    %419 = arith.addf %407, %418 : vector<1x256xf32>
    %c34 = arith.constant 34 : index
    %c0_75 = arith.constant 0 : index
    %420 = vector.load %arg2[%c34, %c0_75] : memref<49x256xf32, #tpu.memory_space<vmem>>, vector<1x256xf32>
    %c34_76 = arith.constant 34 : index
    %421 = memref.load %arg1[%c34_76] : memref<98xf32, #tpu.memory_space<smem>>
    %422 = vector.extract_strided_slice %9 {offsets = [0, 70], sizes = [1, 256], strides = [1, 1]} : vector<1x358xf32> to vector<1x256xf32>
    %423 = vector.broadcast %421 : f32 to vector<1x256xf32>
    %424 = arith.mulf %423, %422 : vector<1x256xf32>
    %c83 = arith.constant 83 : index
    %425 = memref.load %arg1[%c83] : memref<98xf32, #tpu.memory_space<smem>>
    %426 = vector.extract_strided_slice %10 {offsets = [0, 70], sizes = [1, 256], strides = [1, 1]} : vector<1x358xf32> to vector<1x256xf32>
    %427 = vector.broadcast %425 : f32 to vector<1x256xf32>
    %428 = arith.mulf %427, %426 : vector<1x256xf32>
    %429 = arith.addf %424, %428 : vector<1x256xf32>
    %430 = arith.mulf %429, %420 : vector<1x256xf32>
    %431 = arith.addf %419, %430 : vector<1x256xf32>
    %c35 = arith.constant 35 : index
    %c0_77 = arith.constant 0 : index
    %432 = vector.load %arg2[%c35, %c0_77] : memref<49x256xf32, #tpu.memory_space<vmem>>, vector<1x256xf32>
    %c35_78 = arith.constant 35 : index
    %433 = memref.load %arg1[%c35_78] : memref<98xf32, #tpu.memory_space<smem>>
    %434 = vector.extract_strided_slice %9 {offsets = [0, 80], sizes = [1, 256], strides = [1, 1]} : vector<1x358xf32> to vector<1x256xf32>
    %435 = vector.broadcast %433 : f32 to vector<1x256xf32>
    %436 = arith.mulf %435, %434 : vector<1x256xf32>
    %c84 = arith.constant 84 : index
    %437 = memref.load %arg1[%c84] : memref<98xf32, #tpu.memory_space<smem>>
    %438 = vector.extract_strided_slice %10 {offsets = [0, 80], sizes = [1, 256], strides = [1, 1]} : vector<1x358xf32> to vector<1x256xf32>
    %439 = vector.broadcast %437 : f32 to vector<1x256xf32>
    %440 = arith.mulf %439, %438 : vector<1x256xf32>
    %441 = arith.addf %436, %440 : vector<1x256xf32>
    %442 = arith.mulf %441, %432 : vector<1x256xf32>
    %443 = arith.addf %431, %442 : vector<1x256xf32>
    %c36 = arith.constant 36 : index
    %c0_79 = arith.constant 0 : index
    %444 = vector.load %arg2[%c36, %c0_79] : memref<49x256xf32, #tpu.memory_space<vmem>>, vector<1x256xf32>
    %c36_80 = arith.constant 36 : index
    %445 = memref.load %arg1[%c36_80] : memref<98xf32, #tpu.memory_space<smem>>
    %446 = vector.extract_strided_slice %9 {offsets = [0, 81], sizes = [1, 256], strides = [1, 1]} : vector<1x358xf32> to vector<1x256xf32>
    %447 = vector.broadcast %445 : f32 to vector<1x256xf32>
    %448 = arith.mulf %447, %446 : vector<1x256xf32>
    %c85 = arith.constant 85 : index
    %449 = memref.load %arg1[%c85] : memref<98xf32, #tpu.memory_space<smem>>
    %450 = vector.extract_strided_slice %10 {offsets = [0, 81], sizes = [1, 256], strides = [1, 1]} : vector<1x358xf32> to vector<1x256xf32>
    %451 = vector.broadcast %449 : f32 to vector<1x256xf32>
    %452 = arith.mulf %451, %450 : vector<1x256xf32>
    %453 = arith.addf %448, %452 : vector<1x256xf32>
    %454 = arith.mulf %453, %444 : vector<1x256xf32>
    %455 = arith.addf %443, %454 : vector<1x256xf32>
    %c37 = arith.constant 37 : index
    %c0_81 = arith.constant 0 : index
    %456 = vector.load %arg2[%c37, %c0_81] : memref<49x256xf32, #tpu.memory_space<vmem>>, vector<1x256xf32>
    %c37_82 = arith.constant 37 : index
    %457 = memref.load %arg1[%c37_82] : memref<98xf32, #tpu.memory_space<smem>>
    %458 = vector.extract_strided_slice %9 {offsets = [0, 82], sizes = [1, 256], strides = [1, 1]} : vector<1x358xf32> to vector<1x256xf32>
    %459 = vector.broadcast %457 : f32 to vector<1x256xf32>
    %460 = arith.mulf %459, %458 : vector<1x256xf32>
    %c86 = arith.constant 86 : index
    %461 = memref.load %arg1[%c86] : memref<98xf32, #tpu.memory_space<smem>>
    %462 = vector.extract_strided_slice %10 {offsets = [0, 82], sizes = [1, 256], strides = [1, 1]} : vector<1x358xf32> to vector<1x256xf32>
    %463 = vector.broadcast %461 : f32 to vector<1x256xf32>
    %464 = arith.mulf %463, %462 : vector<1x256xf32>
    %465 = arith.addf %460, %464 : vector<1x256xf32>
    %466 = arith.mulf %465, %456 : vector<1x256xf32>
    %467 = arith.addf %455, %466 : vector<1x256xf32>
    %c38 = arith.constant 38 : index
    %c0_83 = arith.constant 0 : index
    %468 = vector.load %arg2[%c38, %c0_83] : memref<49x256xf32, #tpu.memory_space<vmem>>, vector<1x256xf32>
    %c38_84 = arith.constant 38 : index
    %469 = memref.load %arg1[%c38_84] : memref<98xf32, #tpu.memory_space<smem>>
    %470 = vector.extract_strided_slice %9 {offsets = [0, 83], sizes = [1, 256], strides = [1, 1]} : vector<1x358xf32> to vector<1x256xf32>
    %471 = vector.broadcast %469 : f32 to vector<1x256xf32>
    %472 = arith.mulf %471, %470 : vector<1x256xf32>
    %c87 = arith.constant 87 : index
    %473 = memref.load %arg1[%c87] : memref<98xf32, #tpu.memory_space<smem>>
    %474 = vector.extract_strided_slice %10 {offsets = [0, 83], sizes = [1, 256], strides = [1, 1]} : vector<1x358xf32> to vector<1x256xf32>
    %475 = vector.broadcast %473 : f32 to vector<1x256xf32>
    %476 = arith.mulf %475, %474 : vector<1x256xf32>
    %477 = arith.addf %472, %476 : vector<1x256xf32>
    %478 = arith.mulf %477, %468 : vector<1x256xf32>
    %479 = arith.addf %467, %478 : vector<1x256xf32>
    %c39 = arith.constant 39 : index
    %c0_85 = arith.constant 0 : index
    %480 = vector.load %arg2[%c39, %c0_85] : memref<49x256xf32, #tpu.memory_space<vmem>>, vector<1x256xf32>
    %c39_86 = arith.constant 39 : index
    %481 = memref.load %arg1[%c39_86] : memref<98xf32, #tpu.memory_space<smem>>
    %482 = vector.extract_strided_slice %9 {offsets = [0, 84], sizes = [1, 256], strides = [1, 1]} : vector<1x358xf32> to vector<1x256xf32>
    %483 = vector.broadcast %481 : f32 to vector<1x256xf32>
    %484 = arith.mulf %483, %482 : vector<1x256xf32>
    %c88 = arith.constant 88 : index
    %485 = memref.load %arg1[%c88] : memref<98xf32, #tpu.memory_space<smem>>
    %486 = vector.extract_strided_slice %10 {offsets = [0, 84], sizes = [1, 256], strides = [1, 1]} : vector<1x358xf32> to vector<1x256xf32>
    %487 = vector.broadcast %485 : f32 to vector<1x256xf32>
    %488 = arith.mulf %487, %486 : vector<1x256xf32>
    %489 = arith.addf %484, %488 : vector<1x256xf32>
    %490 = arith.mulf %489, %480 : vector<1x256xf32>
    %491 = arith.addf %479, %490 : vector<1x256xf32>
    %c40 = arith.constant 40 : index
    %c0_87 = arith.constant 0 : index
    %492 = vector.load %arg2[%c40, %c0_87] : memref<49x256xf32, #tpu.memory_space<vmem>>, vector<1x256xf32>
    %c40_88 = arith.constant 40 : index
    %493 = memref.load %arg1[%c40_88] : memref<98xf32, #tpu.memory_space<smem>>
    %494 = vector.extract_strided_slice %9 {offsets = [0, 85], sizes = [1, 256], strides = [1, 1]} : vector<1x358xf32> to vector<1x256xf32>
    %495 = vector.broadcast %493 : f32 to vector<1x256xf32>
    %496 = arith.mulf %495, %494 : vector<1x256xf32>
    %c89 = arith.constant 89 : index
    %497 = memref.load %arg1[%c89] : memref<98xf32, #tpu.memory_space<smem>>
    %498 = vector.extract_strided_slice %10 {offsets = [0, 85], sizes = [1, 256], strides = [1, 1]} : vector<1x358xf32> to vector<1x256xf32>
    %499 = vector.broadcast %497 : f32 to vector<1x256xf32>
    %500 = arith.mulf %499, %498 : vector<1x256xf32>
    %501 = arith.addf %496, %500 : vector<1x256xf32>
    %502 = arith.mulf %501, %492 : vector<1x256xf32>
    %503 = arith.addf %491, %502 : vector<1x256xf32>
    %c41 = arith.constant 41 : index
    %c0_89 = arith.constant 0 : index
    %504 = vector.load %arg2[%c41, %c0_89] : memref<49x256xf32, #tpu.memory_space<vmem>>, vector<1x256xf32>
    %c41_90 = arith.constant 41 : index
    %505 = memref.load %arg1[%c41_90] : memref<98xf32, #tpu.memory_space<smem>>
    %506 = vector.extract_strided_slice %9 {offsets = [0, 86], sizes = [1, 256], strides = [1, 1]} : vector<1x358xf32> to vector<1x256xf32>
    %507 = vector.broadcast %505 : f32 to vector<1x256xf32>
    %508 = arith.mulf %507, %506 : vector<1x256xf32>
    %c90 = arith.constant 90 : index
    %509 = memref.load %arg1[%c90] : memref<98xf32, #tpu.memory_space<smem>>
    %510 = vector.extract_strided_slice %10 {offsets = [0, 86], sizes = [1, 256], strides = [1, 1]} : vector<1x358xf32> to vector<1x256xf32>
    %511 = vector.broadcast %509 : f32 to vector<1x256xf32>
    %512 = arith.mulf %511, %510 : vector<1x256xf32>
    %513 = arith.addf %508, %512 : vector<1x256xf32>
    %514 = arith.mulf %513, %504 : vector<1x256xf32>
    %515 = arith.addf %503, %514 : vector<1x256xf32>
    %c42 = arith.constant 42 : index
    %c0_91 = arith.constant 0 : index
    %516 = vector.load %arg2[%c42, %c0_91] : memref<49x256xf32, #tpu.memory_space<vmem>>, vector<1x256xf32>
    %c42_92 = arith.constant 42 : index
    %517 = memref.load %arg1[%c42_92] : memref<98xf32, #tpu.memory_space<smem>>
    %518 = vector.extract_strided_slice %9 {offsets = [0, 96], sizes = [1, 256], strides = [1, 1]} : vector<1x358xf32> to vector<1x256xf32>
    %519 = vector.broadcast %517 : f32 to vector<1x256xf32>
    %520 = arith.mulf %519, %518 : vector<1x256xf32>
    %c91 = arith.constant 91 : index
    %521 = memref.load %arg1[%c91] : memref<98xf32, #tpu.memory_space<smem>>
    %522 = vector.extract_strided_slice %10 {offsets = [0, 96], sizes = [1, 256], strides = [1, 1]} : vector<1x358xf32> to vector<1x256xf32>
    %523 = vector.broadcast %521 : f32 to vector<1x256xf32>
    %524 = arith.mulf %523, %522 : vector<1x256xf32>
    %525 = arith.addf %520, %524 : vector<1x256xf32>
    %526 = arith.mulf %525, %516 : vector<1x256xf32>
    %527 = arith.addf %515, %526 : vector<1x256xf32>
    %c43 = arith.constant 43 : index
    %c0_93 = arith.constant 0 : index
    %528 = vector.load %arg2[%c43, %c0_93] : memref<49x256xf32, #tpu.memory_space<vmem>>, vector<1x256xf32>
    %c43_94 = arith.constant 43 : index
    %529 = memref.load %arg1[%c43_94] : memref<98xf32, #tpu.memory_space<smem>>
    %530 = vector.extract_strided_slice %9 {offsets = [0, 97], sizes = [1, 256], strides = [1, 1]} : vector<1x358xf32> to vector<1x256xf32>
    %531 = vector.broadcast %529 : f32 to vector<1x256xf32>
    %532 = arith.mulf %531, %530 : vector<1x256xf32>
    %c92 = arith.constant 92 : index
    %533 = memref.load %arg1[%c92] : memref<98xf32, #tpu.memory_space<smem>>
    %534 = vector.extract_strided_slice %10 {offsets = [0, 97], sizes = [1, 256], strides = [1, 1]} : vector<1x358xf32> to vector<1x256xf32>
    %535 = vector.broadcast %533 : f32 to vector<1x256xf32>
    %536 = arith.mulf %535, %534 : vector<1x256xf32>
    %537 = arith.addf %532, %536 : vector<1x256xf32>
    %538 = arith.mulf %537, %528 : vector<1x256xf32>
    %539 = arith.addf %527, %538 : vector<1x256xf32>
    %c44 = arith.constant 44 : index
    %c0_95 = arith.constant 0 : index
    %540 = vector.load %arg2[%c44, %c0_95] : memref<49x256xf32, #tpu.memory_space<vmem>>, vector<1x256xf32>
    %c44_96 = arith.constant 44 : index
    %541 = memref.load %arg1[%c44_96] : memref<98xf32, #tpu.memory_space<smem>>
    %542 = vector.extract_strided_slice %9 {offsets = [0, 98], sizes = [1, 256], strides = [1, 1]} : vector<1x358xf32> to vector<1x256xf32>
    %543 = vector.broadcast %541 : f32 to vector<1x256xf32>
    %544 = arith.mulf %543, %542 : vector<1x256xf32>
    %c93 = arith.constant 93 : index
    %545 = memref.load %arg1[%c93] : memref<98xf32, #tpu.memory_space<smem>>
    %546 = vector.extract_strided_slice %10 {offsets = [0, 98], sizes = [1, 256], strides = [1, 1]} : vector<1x358xf32> to vector<1x256xf32>
    %547 = vector.broadcast %545 : f32 to vector<1x256xf32>
    %548 = arith.mulf %547, %546 : vector<1x256xf32>
    %549 = arith.addf %544, %548 : vector<1x256xf32>
    %550 = arith.mulf %549, %540 : vector<1x256xf32>
    %551 = arith.addf %539, %550 : vector<1x256xf32>
    %c45 = arith.constant 45 : index
    %c0_97 = arith.constant 0 : index
    %552 = vector.load %arg2[%c45, %c0_97] : memref<49x256xf32, #tpu.memory_space<vmem>>, vector<1x256xf32>
    %c45_98 = arith.constant 45 : index
    %553 = memref.load %arg1[%c45_98] : memref<98xf32, #tpu.memory_space<smem>>
    %554 = vector.extract_strided_slice %9 {offsets = [0, 99], sizes = [1, 256], strides = [1, 1]} : vector<1x358xf32> to vector<1x256xf32>
    %555 = vector.broadcast %553 : f32 to vector<1x256xf32>
    %556 = arith.mulf %555, %554 : vector<1x256xf32>
    %c94 = arith.constant 94 : index
    %557 = memref.load %arg1[%c94] : memref<98xf32, #tpu.memory_space<smem>>
    %558 = vector.extract_strided_slice %10 {offsets = [0, 99], sizes = [1, 256], strides = [1, 1]} : vector<1x358xf32> to vector<1x256xf32>
    %559 = vector.broadcast %557 : f32 to vector<1x256xf32>
    %560 = arith.mulf %559, %558 : vector<1x256xf32>
    %561 = arith.addf %556, %560 : vector<1x256xf32>
    %562 = arith.mulf %561, %552 : vector<1x256xf32>
    %563 = arith.addf %551, %562 : vector<1x256xf32>
    %c46 = arith.constant 46 : index
    %c0_99 = arith.constant 0 : index
    %564 = vector.load %arg2[%c46, %c0_99] : memref<49x256xf32, #tpu.memory_space<vmem>>, vector<1x256xf32>
    %c46_100 = arith.constant 46 : index
    %565 = memref.load %arg1[%c46_100] : memref<98xf32, #tpu.memory_space<smem>>
    %566 = vector.extract_strided_slice %9 {offsets = [0, 100], sizes = [1, 256], strides = [1, 1]} : vector<1x358xf32> to vector<1x256xf32>
    %567 = vector.broadcast %565 : f32 to vector<1x256xf32>
    %568 = arith.mulf %567, %566 : vector<1x256xf32>
    %c95 = arith.constant 95 : index
    %569 = memref.load %arg1[%c95] : memref<98xf32, #tpu.memory_space<smem>>
    %570 = vector.extract_strided_slice %10 {offsets = [0, 100], sizes = [1, 256], strides = [1, 1]} : vector<1x358xf32> to vector<1x256xf32>
    %571 = vector.broadcast %569 : f32 to vector<1x256xf32>
    %572 = arith.mulf %571, %570 : vector<1x256xf32>
    %573 = arith.addf %568, %572 : vector<1x256xf32>
    %574 = arith.mulf %573, %564 : vector<1x256xf32>
    %575 = arith.addf %563, %574 : vector<1x256xf32>
    %c47 = arith.constant 47 : index
    %c0_101 = arith.constant 0 : index
    %576 = vector.load %arg2[%c47, %c0_101] : memref<49x256xf32, #tpu.memory_space<vmem>>, vector<1x256xf32>
    %c47_102 = arith.constant 47 : index
    %577 = memref.load %arg1[%c47_102] : memref<98xf32, #tpu.memory_space<smem>>
    %578 = vector.extract_strided_slice %9 {offsets = [0, 101], sizes = [1, 256], strides = [1, 1]} : vector<1x358xf32> to vector<1x256xf32>
    %579 = vector.broadcast %577 : f32 to vector<1x256xf32>
    %580 = arith.mulf %579, %578 : vector<1x256xf32>
    %c96 = arith.constant 96 : index
    %581 = memref.load %arg1[%c96] : memref<98xf32, #tpu.memory_space<smem>>
    %582 = vector.extract_strided_slice %10 {offsets = [0, 101], sizes = [1, 256], strides = [1, 1]} : vector<1x358xf32> to vector<1x256xf32>
    %583 = vector.broadcast %581 : f32 to vector<1x256xf32>
    %584 = arith.mulf %583, %582 : vector<1x256xf32>
    %585 = arith.addf %580, %584 : vector<1x256xf32>
    %586 = arith.mulf %585, %576 : vector<1x256xf32>
    %587 = arith.addf %575, %586 : vector<1x256xf32>
    %c48 = arith.constant 48 : index
    %c0_103 = arith.constant 0 : index
    %588 = vector.load %arg2[%c48, %c0_103] : memref<49x256xf32, #tpu.memory_space<vmem>>, vector<1x256xf32>
    %c48_104 = arith.constant 48 : index
    %589 = memref.load %arg1[%c48_104] : memref<98xf32, #tpu.memory_space<smem>>
    %590 = vector.extract_strided_slice %9 {offsets = [0, 102], sizes = [1, 256], strides = [1, 1]} : vector<1x358xf32> to vector<1x256xf32>
    %591 = vector.broadcast %589 : f32 to vector<1x256xf32>
    %592 = arith.mulf %591, %590 : vector<1x256xf32>
    %c97 = arith.constant 97 : index
    %593 = memref.load %arg1[%c97] : memref<98xf32, #tpu.memory_space<smem>>
    %594 = vector.extract_strided_slice %10 {offsets = [0, 102], sizes = [1, 256], strides = [1, 1]} : vector<1x358xf32> to vector<1x256xf32>
    %595 = vector.broadcast %593 : f32 to vector<1x256xf32>
    %596 = arith.mulf %595, %594 : vector<1x256xf32>
    %597 = arith.addf %592, %596 : vector<1x256xf32>
    %598 = arith.mulf %597, %588 : vector<1x256xf32>
    %599 = arith.addf %587, %598 : vector<1x256xf32>
    %600 = arith.negf %599 : vector<1x256xf32>
    %601 = math.exp %600 : vector<1x256xf32>
    %cst_105 = arith.constant 1.000000e+00 : f32
    %602 = vector.broadcast %cst_105 : f32 to vector<1x256xf32>
    %603 = arith.addf %602, %601 : vector<1x256xf32>
    %604 = arith.divf %602, %603 : vector<1x256xf32>
    %605 = vector.broadcast %604 : vector<1x256xf32> to vector<4x256xf32>
    %606 = arith.mulf %1, %605 : vector<4x256xf32>
    %c0_106 = arith.constant 0 : index
    %c0_107 = arith.constant 0 : index
    %c0_108 = arith.constant 0 : index
    %607 = vector.load %arg4[%c0_106, %c0_107, %c0_108] : memref<1x4x256xf32, #tpu.memory_space<vmem>>, vector<1x4x256xf32>
    %608 = vector.shape_cast %607 : vector<1x4x256xf32> to vector<4x256xf32>
    %609 = vector.shape_cast %606 : vector<4x256xf32> to vector<1x4x256xf32>
    tpu.vector_store %arg4[%c0_106, %c0_107, %c0_108], %609 {strides = array<i32>} : memref<1x4x256xf32, #tpu.memory_space<vmem>>, vector<1x4x256xf32>,
    return
  }
  func.func @transform_0(%arg0: i32) -> i32 {
    %c0_i32 = arith.constant 0 : i32
    %c0_i32_0 = arith.constant 0 : i32
    return %c0_i32 : i32
  }
  func.func @transform_1(%arg0: i32) -> (i32, i32) {
    %c0_i32 = arith.constant 0 : i32
    %c0_i32_0 = arith.constant 0 : i32
    %c0_i32_1 = arith.constant 0 : i32
    return %c0_i32, %c0_i32_0 : i32, i32
  }
  func.func @transform_2(%arg0: i32) -> (i32, i32, i32) {
    %c0_i32 = arith.constant 0 : i32
    %c0_i32_0 = arith.constant 0 : i32
    %c0_i32_1 = arith.constant 0 : i32
    return %arg0, %c0_i32, %c0_i32_0 : i32, i32, i32
  }
  func.func @transform_3(%arg0: i32) -> (i32, i32, i32) {
    %c0_i32 = arith.constant 0 : i32
    %c0_i32_0 = arith.constant 0 : i32
    %c0_i32_1 = arith.constant 0 : i32
    return %arg0, %c0_i32, %c0_i32_0 : i32, i32, i32
  }
}

</mosaic_0001>

<llo_original>
// kernel: tpu_custom_call.1
$region0: #{tpu_custom_call.1}
  #allocation0 [shape = 'u32[]', space=smem, size = 0x4, offset = 0x4, fixed_abs, tag = 'smem constant byte address 0x4 - core index']
  #allocation1 [shape = 'u32[72,128]{1,0:T(1,128)}', space=vmem, size = 0x9000, scoped, tag = 'internal scratch']
  %s0 = inlined_call_operand.hbm [shape: f32[98], index: 0, kind: input, shape index: {}]
  %s1 = inlined_call_operand.hbm [shape: f32[49,256], index: 1, kind: input, shape index: {}]
  %s2 = inlined_call_operand.hbm [shape: f32[2,4,256], index: 2, kind: input, shape index: {}]
  %s3 = inlined_call_operand.hbm [shape: f32[2,4,256], index: 3, kind: output, shape index: {}]
  %s4 = sld [smem:[#allocation0]]
  $region57: #{tpu_custom_call.1} parent=0
    _
  %s6 = ssub.s32 1, %s4
  %s7 = scalar_select 0, %s6, %s4
  $region1: #{tpu_custom_call.1} parent=0
    #allocation2 [shape = 'u8[512]{0}', space=smem, size = 0x200, scoped, tag = 'input window, operand 0, single buffered']
    #allocation3 [shape = 's32[2]{0}', space=sflag, size = 0x8, scoped, tag = 'scoped memory for tpu_custom_call.1']
    #allocation4 [shape = 's32[2]{0}', space=sflag, size = 0x8, scoped, tag = 'scoped memory for tpu_custom_call.1']
    #allocation5 [shape = 's32[2]{0}', space=sflag, size = 0x8, scoped, tag = 'scoped memory for tpu_custom_call.1']
    #allocation6 [shape = 'u8[57344]{0}', space=vmem, size = 0xe000, scoped, tag = 'input window, operand 1, single buffered']
    #allocation7 [shape = 'u8[8192]{0}', space=vmem, size = 0x2000, scoped, tag = 'input window, operand 2']
    #allocation8 [shape = 's32[2]{0}', space=sflag, size = 0x8, scoped, tag = 'scoped memory for tpu_custom_call.1']
    #allocation9 [shape = 'u8[8192]{0}', space=vmem, size = 0x2000, scoped, tag = 'output window, operand 0']
    %8 = vsyncpa [#allocation5], 0
    %9 = vsyncpa [#allocation3], 0
    %10 = vsyncpa [#allocation8], 0
    %s11 = scalar_lea.sflag [#allocation8], 1
    %12 = vsyncpa %s11, 0
    %13 = vsyncpa [#allocation4], 0
    %s14 = scalar_lea.sflag [#allocation4], 1
    %15 = vsyncpa %s14, 0
    loop: start=0, step=1, limit=4
    $region2: #{tpu_custom_call.1} parent=1 // loop_pre_header
      _
    $region3: #{tpu_custom_call.1} parent=1 // loop_header
      %s17 = sphi 0, %s21
      %p18 = scmp.ge.s32.totalorder %s17, 4
      %s25 = sphi 0, %s25
      %s27 = sphi 0, %s25
      %s28 = sphi 0, %s27
      %s42 = sphi 0, %s28
      %s46 = sphi 0, %s46
      %s48 = sphi 0, %s46
      %s49 = sphi 0, %s48
      %s63 = sphi 0, %s49
      %s69 = sphi 0, %s71
      %s72 = sphi 0, %s69
      %s73 = sphi 0, %s72
      %s89 = sphi 0, %s73
      %s95 = sphi 0, %s97
      %s98 = sphi 0, %s95
      %s99 = sphi 0, %s98
      %s115 = sphi 0, %s99
    $region4: #{tpu_custom_call.1} parent=1 // loop_header_branch
      %20 = sbr.rel (%p18) target = $region8
    $region5: #{tpu_custom_call.1} parent=1 // loop_body
      %s22 = ssub.s32 %s17, 1
      %s23 = ssub.s32 %s17, 2
      %s24 = sadd.s32 %s17, 1
      %s26 = sadd.s32 %s25, 1
      %p29 = scmp.eq.s32.totalorder %s17, 1
      %p30 = scmp.ne.s32.totalorder %s25, %s27
      %p31 = scmp.eq.s32.totalorder %s17, 0
      %p32 = por %p30, %p31
      %p33 = scmp.ne.s32.totalorder %s25, %s27
      %p34 = scmp.eq.s32.totalorder %s22, 1
      %p35 = por %p33, %p34
      %p36 = scmp.ne.s32.totalorder %s27, %s28
      %p37 = scmp.eq.s32.totalorder %s22, 0
      %p38 = por %p36, %p37
      %p39 = scmp.ne.s32.totalorder %s27, %s28
      %p40 = scmp.eq.s32.totalorder %s23, 1
      %p41 = por %p39, %p40
      %p43 = scmp.ne.s32.totalorder %s28, %s42
      %p44 = scmp.eq.s32.totalorder %s23, 0
      %p45 = por %p43, %p44
      %s47 = sadd.s32 %s46, 1
      %p50 = scmp.eq.s32.totalorder %s17, 1
      %p51 = scmp.ne.s32.totalorder %s46, %s48
      %p52 = scmp.eq.s32.totalorder %s17, 0
      %p53 = por %p51, %p52
      %p54 = scmp.ne.s32.totalorder %s46, %s48
      %p55 = scmp.eq.s32.totalorder %s22, 1
      %p56 = por %p54, %p55
      %p57 = scmp.ne.s32.totalorder %s48, %s49
      %p58 = scmp.eq.s32.totalorder %s22, 0
      %p59 = por %p57, %p58
      %p60 = scmp.ne.s32.totalorder %s48, %s49
      %p61 = scmp.eq.s32.totalorder %s23, 1
      %p62 = por %p60, %p61
      %p64 = scmp.ne.s32.totalorder %s49, %s63
      %p65 = scmp.eq.s32.totalorder %s23, 0
      %p66 = por %p64, %p65
      %s67 = ssub.s32 %s17, %s24
      %p68 = scmp.eq.s32.totalorder %s67, 0
      %s70 = sadd.s32 %s69, 1
      %s71 = scalar_select %p68, %s69, %s70
      %p74 = pneg %p68
      %p75 = scmp.eq.s32.totalorder %s17, 1
      %p76 = por %p74, %p75
      %p77 = scmp.ne.s32.totalorder %s69, %s72
      %p78 = scmp.eq.s32.totalorder %s17, 0
      %p79 = por %p77, %p78
      %p80 = scmp.ne.s32.totalorder %s69, %s72
      %p81 = scmp.eq.s32.totalorder %s22, 1
      %p82 = por %p80, %p81
      %p83 = scmp.ne.s32.totalorder %s72, %s73
      %p84 = scmp.eq.s32.totalorder %s22, 0
      %p85 = por %p83, %p84
      %p86 = scmp.ne.s32.totalorder %s72, %s73
      %p87 = scmp.eq.s32.totalorder %s23, 1
      %p88 = por %p86, %p87
      %p90 = scmp.ne.s32.totalorder %s73, %s89
      %p91 = scmp.eq.s32.totalorder %s23, 0
      %p92 = por %p90, %p91
      %s93 = ssub.s32 %s17, %s24
      %p94 = scmp.eq.s32.totalorder %s93, 0
      %s96 = sadd.s32 %s95, 1
      %s97 = scalar_select %p94, %s95, %s96
      %p100 = pneg %p94
      %p101 = scmp.eq.s32.totalorder %s17, 1
      %p102 = por %p100, %p101
      %p103 = scmp.ne.s32.totalorder %s95, %s98
      %p104 = scmp.eq.s32.totalorder %s17, 0
      %p105 = por %p103, %p104
      %p106 = scmp.ne.s32.totalorder %s95, %s98
      %p107 = scmp.eq.s32.totalorder %s22, 1
      %p108 = por %p106, %p107
      %p109 = scmp.ne.s32.totalorder %s98, %s99
      %p110 = scmp.eq.s32.totalorder %s22, 0
      %p111 = por %p109, %p110
      %p112 = scmp.ne.s32.totalorder %s98, %s99
      %p113 = scmp.eq.s32.totalorder %s23, 1
      %p114 = por %p112, %p113
      %p116 = scmp.ne.s32.totalorder %s99, %s115
      %p117 = scmp.eq.s32.totalorder %s23, 0
      %p118 = por %p116, %p117
      %p119 = scmp.le.s32.totalorder 1, %s17
      %p120 = scmp.lt.s32.totalorder %s17, 3
      %p121 = pnand %p119, %p120
      %p122 = pneg %p121
      // Predicated region
      $region9: #{tpu_custom_call.1} parent=5 // pred_check
        _
      $region10: #{tpu_custom_call.1} parent=5 // pred_check_branch
        %124 = sbr.rel (%p121) target = $region12
      $region11: #{tpu_custom_call.1} parent=5 // pred_region
        %s125 = ssub.s32 %s17, 1
        // Predicated region
        $region13: #{tpu_custom_call.1} parent=11 // pred_check
          %p126 = pneg %p38
        $region14: #{tpu_custom_call.1} parent=11 // pred_check_branch
          %128 = sbr.rel (%p126) target = $region16
        $region15: #{tpu_custom_call.1} parent=11 // pred_region
          %130 = vsyncadd [#allocation5], 0
          %s132 = sshll.u32 %s0, 4
          %s133 = int_to_ptr.hbm [resolvable:$true] %s132
          %135 = dma.hbm_to_smem %s133, 16, [#allocation2], [#allocation5]
        $region16: #{tpu_custom_call.1} parent=11 // pred_fallthru
          _
        // Predicated region
        $region17: #{tpu_custom_call.1} parent=11 // pred_check
          %p136 = pneg %p59
        $region18: #{tpu_custom_call.1} parent=11 // pred_check_branch
          %138 = sbr.rel (%p136) target = $region20
        $region19: #{tpu_custom_call.1} parent=11 // pred_region
          %140 = vsyncadd [#allocation3], 0
          %s141 = sshll.u32 %s1, 4
          %s142 = int_to_ptr.hbm [resolvable:$true] %s141
          %s143 = sshll.u32 [#allocation6], 4
          %s144 = int_to_ptr.vmem [resolvable:$true] %s143
          %149 = dma.hbm_to_vmem [thread:$0]  %s142, 1792, %s144, [#allocation3], 256, 256, 16
        $region20: #{tpu_custom_call.1} parent=11 // pred_fallthru
          _
      $region12: #{tpu_custom_call.1} parent=5 // pred_fallthru
        _
      %p150 = scmp.lt.s32.totalorder %s17, 2
      // Predicated region
      $region21: #{tpu_custom_call.1} parent=5 // pred_check
        %p151 = pneg %p150
      $region22: #{tpu_custom_call.1} parent=5 // pred_check_branch
        %153 = sbr.rel (%p151) target = $region24
      $region23: #{tpu_custom_call.1} parent=5 // pred_region
        // Predicated region
        $region25: #{tpu_custom_call.1} parent=23 // pred_check
          %p154 = pneg %p79
        $region26: #{tpu_custom_call.1} parent=23 // pred_check_branch
          %156 = sbr.rel (%p154) target = $region28
        $region27: #{tpu_custom_call.1} parent=23 // pred_region
          %s157 = sand.u32 %s69, 1
          %s158 = scalar_lea.sflag [#allocation8], %s157
          %s159 = sand.u32 %s69, 1
          %s160 = smul.addr %s159, 8
          %s161 = scalar_lea.vmem [#allocation7], %s160
          %163 = vsyncadd %s158, 0
          %s164 = smul.addr %s17, 2
          %s165 = smul.addr %s164, 4
          %s166 = scalar_lea.hbm %s2, %s165
          %s168 = sshll.u32 %s166, 4
          %s169 = int_to_ptr.hbm [resolvable:$true] %s168
          %s170 = sshll.u32 %s161, 4
          %s171 = int_to_ptr.vmem [resolvable:$true] %s170
          %173 = dma.hbm_to_vmem [thread:$0]  %s169, 128, %s171, %s158
        $region28: #{tpu_custom_call.1} parent=23 // pred_fallthru
          _
      $region24: #{tpu_custom_call.1} parent=5 // pred_fallthru
        _
      %p174 = scmp.le.s32.totalorder 1, %s17
      %p175 = scmp.lt.s32.totalorder %s17, 3
      %p176 = pnand %p174, %p175
      %p177 = pneg %p176
      // Predicated region
      $region29: #{tpu_custom_call.1} parent=5 // pred_check
        _
      $region30: #{tpu_custom_call.1} parent=5 // pred_check_branch
        %179 = sbr.rel (%p176) target = $region32
      $region31: #{tpu_custom_call.1} parent=5 // pred_region
        %s180 = ssub.s32 %s17, 1
        // Predicated region
        $region33: #{tpu_custom_call.1} parent=31 // pred_check
          %p181 = pneg %p38
        $region34: #{tpu_custom_call.1} parent=31 // pred_check_branch
          %183 = sbr.rel (%p181) target = $region36
        $region35: #{tpu_custom_call.1} parent=31 // pred_region
          %185 = dma.done [#allocation5], 16
        $region36: #{tpu_custom_call.1} parent=31 // pred_fallthru
          _
        // Predicated region
        $region37: #{tpu_custom_call.1} parent=31 // pred_check
          %p186 = pneg %p59
        $region38: #{tpu_custom_call.1} parent=31 // pred_check_branch
          %188 = sbr.rel (%p186) target = $region40
        $region39: #{tpu_custom_call.1} parent=31 // pred_region
          %190 = dma.done [#allocation3], 1792
        $region40: #{tpu_custom_call.1} parent=31 // pred_fallthru
          _
        %s191 = sand.u32 %s72, 1
        %s192 = scalar_lea.sflag [#allocation8], %s191
        %s193 = sand.u32 %s72, 1
        %s194 = smul.addr %s193, 8
        %s195 = scalar_lea.vmem [#allocation7], %s194
        // Predicated region
        $region41: #{tpu_custom_call.1} parent=31 // pred_check
          %p196 = pneg %p85
        $region42: #{tpu_custom_call.1} parent=31 // pred_check_branch
          %198 = sbr.rel (%p196) target = $region44
        $region43: #{tpu_custom_call.1} parent=31 // pred_region
          %200 = dma.done %s192, 128
        $region44: #{tpu_custom_call.1} parent=31 // pred_fallthru
          _
        %201 = sfence
        %p202 = pneg %p38
        %p203 = pneg %p35
        %p204 = pneg %p59
        %p205 = pneg %p56
        %s206 = sand.u32 %s72, 1
        %s207 = scalar_lea.sflag [#allocation8], %s206
        %s208 = sand.u32 %s72, 1
        %s209 = smul.addr %s208, 8
        %s210 = scalar_lea.vmem [#allocation7], %s209
        %p211 = pneg %p85
        %p212 = pneg %p82
        %p213 = pneg %p111
        %p214 = pneg %p108
        %s215 = sand.u32 %s98, 1
        %s216 = scalar_lea.sflag [#allocation4], %s215
        %s217 = sand.u32 %s98, 1
        %s218 = smul.addr %s217, 8
        %s219 = scalar_lea.vmem [#allocation9], %s218
        %v220 = vld [vmem:[%s195] sm:$0xff]
        %222 = vst [vmem:[#allocation1] ss:$2 sm:$0xff] %v220
        %v223 = vld.sshfl [vmem:[#allocation1] sm:$0xff pattern:$0x75316420]
        %v224 = vld.sshfl [vmem:[#allocation1 + $0x8] sm:$0xff pattern:$0x75316420]
        %vm227 = vcmask 1043456
        %v228 = vsel %vm227, %v223, -inf
        %v229 = vrot.slane %v228, 4
        %v230 = vmax.f32 %v228, %v229
        %v231 = vrot.slane %v230, 2
        %v232 = vmax.f32 %v230, %v231
        %v233 = vrot.slane %v232, 1
        %v234 = vmax.f32 %v232, %v233
        %v235 = vsel %vm227, %v224, -inf
        %v236 = vrot.slane %v235, 4
        %v237 = vmax.f32 %v235, %v236
        %v238 = vrot.slane %v237, 2
        %v239 = vmax.f32 %v237, %v238
        %v240 = vrot.slane %v239, 1
        %v241 = vmax.f32 %v239, %v240
        %242 = vst [vmem:[#allocation1] ss:$2 sm:$0xff] %v220
        %v243 = vld.sshfl [vmem:[#allocation1] sm:$0xff pattern:$0x75316420]
        %v244 = vld.sshfl [vmem:[#allocation1 + $0x8] sm:$0xff pattern:$0x75316420]
        %v247 = vsel %vm227, %v243, 0.0
        %v248 = vrot.slane %v247, 4
        %v249 = vadd.f32 %v247, %v248
        %v250 = vrot.slane %v249, 2
        %v251 = vadd.f32 %v249, %v250
        %v252 = vrot.slane %v251, 1
        %v253 = vadd.f32 %v251, %v252
        %v254 = vsel %vm227, %v244, 0.0
        %v255 = vrot.slane %v254, 4
        %v256 = vadd.f32 %v254, %v255
        %v257 = vrot.slane %v256, 2
        %v258 = vadd.f32 %v256, %v257
        %v259 = vrot.slane %v258, 1
        %v260 = vadd.f32 %v258, %v259
        %v261 = vmul.f32 %v253, 0.25
        %v262 = vmul.f32 %v260, 0.25
        %265 = vrot.lane.b32.xlu0 %v234, 51
        %v266 = vpop.permute.xlu0 %265
        %267 = vrot.lane.b32.xlu0 %v241, 51
        %v268 = vpop.permute.xlu0 %267
        %vm269 = vcmask 416768
        %v270 = vsel %vm269, %v266, %v268
        %v274 = vsel %vm269, 0.0, %v266
        %v275 = vsel %vm269, %v268, 0.0
        %278 = vrot.lane.b32.xlu0 %v261, 51
        %v279 = vpop.permute.xlu0 %278
        %280 = vrot.lane.b32.xlu0 %v262, 51
        %v281 = vpop.permute.xlu0 %280
        %v282 = vsel %vm269, %v279, %v281
        %v286 = vsel %vm269, 0.0, %v279
        %v287 = vsel %vm269, %v281, 0.0
        %v288 = vld [vmem:[#allocation6] ss:$8 sm:$0x3]
        %s289 = sld [smem:[#allocation2]]
        %v290 = vstv %s289
        %v291 = vmul.f32 %v290, %v274
        %v292 = vmul.f32 %v290, %v270
        %s293 = sld [smem:[#allocation2 + $0x31]]
        %v294 = vstv %s293
        %v295 = vmul.f32 %v294, %v286
        %v296 = vmul.f32 %v294, %v282
        %v297 = vadd.f32 %v291, %v295
        %v298 = vadd.f32 %v292, %v296
        %v300 = vperm.slane %v288, 0
        %v301 = vperm.slane %v288, 1
        %v304 = vmul.f32 %v297, %v300
        %v305 = vmul.f32 %v298, %v301
        %v306 = vadd.f32 %v304, 0.0
        %v307 = vadd.f32 %v305, 0.0
        %s308 = scalar_lea.vmem [#allocation6], 1
        %v309 = vld [vmem:[%s308] ss:$8 sm:$0x3]
        %s310 = sld [smem:[#allocation2 + $0x1]]
        %v311 = vstv %s310
        %v312 = vmul.f32 %v311, %v274
        %v313 = vmul.f32 %v311, %v270
        %v314 = vmul.f32 %v311, %v275
        %s315 = sld [smem:[#allocation2 + $0x32]]
        %v316 = vstv %s315
        %v317 = vmul.f32 %v316, %v286
        %v318 = vmul.f32 %v316, %v282
        %v319 = vmul.f32 %v316, %v287
        %v320 = vadd.f32 %v312, %v317
        %v321 = vadd.f32 %v313, %v318
        %v322 = vadd.f32 %v314, %v319
        %v324 = vperm.slane %v309, 0
        %v325 = vperm.slane %v309, 1
        %326 = vrot.lane.b32.xlu0 %v324, 1
        %v327 = vpop.permute.xlu0 %326
        %328 = vrot.lane.b32.xlu0 %v325, 1
        %v329 = vpop.permute.xlu0 %328
        %vm330 = vcmask 7168
        %v331 = vsel %vm330, %v327, %v329
        %v335 = vmul.f32 %v320, %v327
        %v336 = vmul.f32 %v321, %v331
        %v337 = vmul.f32 %v322, %v329
        %341 = vrot.lane.b32.xlu0 %v335, 127
        %v342 = vpop.permute.xlu0 %341
        %343 = vrot.lane.b32.xlu0 %v336, 127
        %v344 = vpop.permute.xlu0 %343
        %345 = vrot.lane.b32.xlu0 %v337, 127
        %v346 = vpop.permute.xlu0 %345
        %vm347 = vcmask 1039360
        %v348 = vsel %vm347, %v342, %v344
        %v349 = vsel %vm347, %v344, %v346
        %v352 = vadd.f32 %v306, %v348
        %v353 = vadd.f32 %v307, %v349
        %s354 = scalar_lea.vmem [#allocation6], 2
        %v355 = vld [vmem:[%s354] ss:$8 sm:$0x3]
        %s356 = sld [smem:[#allocation2 + $0x2]]
        %v357 = vstv %s356
        %v358 = vmul.f32 %v357, %v274
        %v359 = vmul.f32 %v357, %v270
        %v360 = vmul.f32 %v357, %v275
        %s361 = sld [smem:[#allocation2 + $0x33]]
        %v362 = vstv %s361
        %v363 = vmul.f32 %v362, %v286
        %v364 = vmul.f32 %v362, %v282
        %v365 = vmul.f32 %v362, %v287
        %v366 = vadd.f32 %v358, %v363
        %v367 = vadd.f32 %v359, %v364
        %v368 = vadd.f32 %v360, %v365
        %v370 = vperm.slane %v355, 0
        %v371 = vperm.slane %v355, 1
        %372 = vrot.lane.b32.xlu0 %v370, 2
        %v373 = vpop.permute.xlu0 %372
        %374 = vrot.lane.b32.xlu0 %v371, 2
        %v375 = vpop.permute.xlu0 %374
        %vm376 = vcmask 15360
        %v377 = vsel %vm376, %v373, %v375
        %v381 = vmul.f32 %v366, %v373
        %v382 = vmul.f32 %v367, %v377
        %v383 = vmul.f32 %v368, %v375
        %387 = vrot.lane.b32.xlu0 %v381, 126
        %v388 = vpop.permute.xlu0 %387
        %389 = vrot.lane.b32.xlu0 %v382, 126
        %v390 = vpop.permute.xlu0 %389
        %391 = vrot.lane.b32.xlu0 %v383, 126
        %v392 = vpop.permute.xlu0 %391
        %vm393 = vcmask 1031168
        %v394 = vsel %vm393, %v388, %v390
        %v395 = vsel %vm393, %v390, %v392
        %v398 = vadd.f32 %v352, %v394
        %v399 = vadd.f32 %v353, %v395
        %s400 = scalar_lea.vmem [#allocation6], 3
        %v401 = vld [vmem:[%s400] ss:$8 sm:$0x3]
        %s402 = sld [smem:[#allocation2 + $0x3]]
        %v403 = vstv %s402
        %v404 = vmul.f32 %v403, %v274
        %v405 = vmul.f32 %v403, %v270
        %v406 = vmul.f32 %v403, %v275
        %s407 = sld [smem:[#allocation2 + $0x34]]
        %v408 = vstv %s407
        %v409 = vmul.f32 %v408, %v286
        %v410 = vmul.f32 %v408, %v282
        %v411 = vmul.f32 %v408, %v287
        %v412 = vadd.f32 %v404, %v409
        %v413 = vadd.f32 %v405, %v410
        %v414 = vadd.f32 %v406, %v411
        %v416 = vperm.slane %v401, 0
        %v417 = vperm.slane %v401, 1
        %418 = vrot.lane.b32.xlu0 %v416, 3
        %v419 = vpop.permute.xlu0 %418
        %420 = vrot.lane.b32.xlu0 %v417, 3
        %v421 = vpop.permute.xlu0 %420
        %vm422 = vcmask 23552
        %v423 = vsel %vm422, %v419, %v421
        %v427 = vmul.f32 %v412, %v419
        %v428 = vmul.f32 %v413, %v423
        %v429 = vmul.f32 %v414, %v421
        %433 = vrot.lane.b32.xlu0 %v427, 125
        %v434 = vpop.permute.xlu0 %433
        %435 = vrot.lane.b32.xlu0 %v428, 125
        %v436 = vpop.permute.xlu0 %435
        %437 = vrot.lane.b32.xlu0 %v429, 125
        %v438 = vpop.permute.xlu0 %437
        %vm439 = vcmask 1022976
        %v440 = vsel %vm439, %v434, %v436
        %v441 = vsel %vm439, %v436, %v438
        %v444 = vadd.f32 %v398, %v440
        %v445 = vadd.f32 %v399, %v441
        %s446 = scalar_lea.vmem [#allocation6], 4
        %v447 = vld [vmem:[%s446] ss:$8 sm:$0x3]
        %s448 = sld [smem:[#allocation2 + $0x4]]
        %v449 = vstv %s448
        %v450 = vmul.f32 %v449, %v274
        %v451 = vmul.f32 %v449, %v270
        %v452 = vmul.f32 %v449, %v275
        %s453 = sld [smem:[#allocation2 + $0x35]]
        %v454 = vstv %s453
        %v455 = vmul.f32 %v454, %v286
        %v456 = vmul.f32 %v454, %v282
        %v457 = vmul.f32 %v454, %v287
        %v458 = vadd.f32 %v450, %v455
        %v459 = vadd.f32 %v451, %v456
        %v460 = vadd.f32 %v452, %v457
        %v462 = vperm.slane %v447, 0
        %v463 = vperm.slane %v447, 1
        %464 = vrot.lane.b32.xlu0 %v462, 4
        %v465 = vpop.permute.xlu0 %464
        %466 = vrot.lane.b32.xlu0 %v463, 4
        %v467 = vpop.permute.xlu0 %466
        %vm468 = vcmask 31744
        %v469 = vsel %vm468, %v465, %v467
        %v473 = vmul.f32 %v458, %v465
        %v474 = vmul.f32 %v459, %v469
        %v475 = vmul.f32 %v460, %v467
        %479 = vrot.lane.b32.xlu0 %v473, 124
        %v480 = vpop.permute.xlu0 %479
        %481 = vrot.lane.b32.xlu0 %v474, 124
        %v482 = vpop.permute.xlu0 %481
        %483 = vrot.lane.b32.xlu0 %v475, 124
        %v484 = vpop.permute.xlu0 %483
        %vm485 = vcmask 1014784
        %v486 = vsel %vm485, %v480, %v482
        %v487 = vsel %vm485, %v482, %v484
        %v490 = vadd.f32 %v444, %v486
        %v491 = vadd.f32 %v445, %v487
        %s492 = scalar_lea.vmem [#allocation6], 5
        %v493 = vld [vmem:[%s492] ss:$8 sm:$0x3]
        %s494 = sld [smem:[#allocation2 + $0x5]]
        %v495 = vstv %s494
        %v496 = vmul.f32 %v495, %v274
        %v497 = vmul.f32 %v495, %v270
        %v498 = vmul.f32 %v495, %v275
        %s499 = sld [smem:[#allocation2 + $0x36]]
        %v500 = vstv %s499
        %v501 = vmul.f32 %v500, %v286
        %v502 = vmul.f32 %v500, %v282
        %v503 = vmul.f32 %v500, %v287
        %v504 = vadd.f32 %v496, %v501
        %v505 = vadd.f32 %v497, %v502
        %v506 = vadd.f32 %v498, %v503
        %v508 = vperm.slane %v493, 0
        %v509 = vperm.slane %v493, 1
        %510 = vrot.lane.b32.xlu0 %v508, 5
        %v511 = vpop.permute.xlu0 %510
        %512 = vrot.lane.b32.xlu0 %v509, 5
        %v513 = vpop.permute.xlu0 %512
        %vm514 = vcmask 39936
        %v515 = vsel %vm514, %v511, %v513
        %v519 = vmul.f32 %v504, %v511
        %v520 = vmul.f32 %v505, %v515
        %v521 = vmul.f32 %v506, %v513
        %525 = vrot.lane.b32.xlu0 %v519, 123
        %v526 = vpop.permute.xlu0 %525
        %527 = vrot.lane.b32.xlu0 %v520, 123
        %v528 = vpop.permute.xlu0 %527
        %529 = vrot.lane.b32.xlu0 %v521, 123
        %v530 = vpop.permute.xlu0 %529
        %vm531 = vcmask 1006592
        %v532 = vsel %vm531, %v526, %v528
        %v533 = vsel %vm531, %v528, %v530
        %v536 = vadd.f32 %v490, %v532
        %v537 = vadd.f32 %v491, %v533
        %s538 = scalar_lea.vmem [#allocation6], 6
        %v539 = vld [vmem:[%s538] ss:$8 sm:$0x3]
        %s540 = sld [smem:[#allocation2 + $0x6]]
        %v541 = vstv %s540
        %v542 = vmul.f32 %v541, %v274
        %v543 = vmul.f32 %v541, %v270
        %v544 = vmul.f32 %v541, %v275
        %s545 = sld [smem:[#allocation2 + $0x37]]
        %v546 = vstv %s545
        %v547 = vmul.f32 %v546, %v286
        %v548 = vmul.f32 %v546, %v282
        %v549 = vmul.f32 %v546, %v287
        %v550 = vadd.f32 %v542, %v547
        %v551 = vadd.f32 %v543, %v548
        %v552 = vadd.f32 %v544, %v549
        %v554 = vperm.slane %v539, 0
        %v555 = vperm.slane %v539, 1
        %556 = vrot.lane.b32.xlu0 %v554, 6
        %v557 = vpop.permute.xlu0 %556
        %558 = vrot.lane.b32.xlu0 %v555, 6
        %v559 = vpop.permute.xlu0 %558
        %vm560 = vcmask 48128
        %v561 = vsel %vm560, %v557, %v559
        %v565 = vmul.f32 %v550, %v557
        %v566 = vmul.f32 %v551, %v561
        %v567 = vmul.f32 %v552, %v559
        %571 = vrot.lane.b32.xlu0 %v565, 122
        %v572 = vpop.permute.xlu0 %571
        %573 = vrot.lane.b32.xlu0 %v566, 122
        %v574 = vpop.permute.xlu0 %573
        %575 = vrot.lane.b32.xlu0 %v567, 122
        %v576 = vpop.permute.xlu0 %575
        %vm577 = vcmask 998400
        %v578 = vsel %vm577, %v572, %v574
        %v579 = vsel %vm577, %v574, %v576
        %v582 = vadd.f32 %v536, %v578
        %v583 = vadd.f32 %v537, %v579
        %s584 = scalar_lea.vmem [#allocation6], 7
        %v585 = vld [vmem:[%s584] ss:$8 sm:$0x3]
        %s586 = sld [smem:[#allocation2 + $0x7]]
        %v587 = vstv %s586
        %v588 = vmul.f32 %v587, %v274
        %v589 = vmul.f32 %v587, %v270
        %v590 = vmul.f32 %v587, %v275
        %s591 = sld [smem:[#allocation2 + $0x38]]
        %v592 = vstv %s591
        %v593 = vmul.f32 %v592, %v286
        %v594 = vmul.f32 %v592, %v282
        %v595 = vmul.f32 %v592, %v287
        %v596 = vadd.f32 %v588, %v593
        %v597 = vadd.f32 %v589, %v594
        %v598 = vadd.f32 %v590, %v595
        %v600 = vperm.slane %v585, 0
        %v601 = vperm.slane %v585, 1
        %602 = vrot.lane.b32.xlu0 %v600, 16
        %v603 = vpop.permute.xlu0 %602
        %604 = vrot.lane.b32.xlu0 %v601, 16
        %v605 = vpop.permute.xlu0 %604
        %vm606 = vcmask 130048
        %v607 = vsel %vm606, %v603, %v605
        %v611 = vmul.f32 %v596, %v603
        %v612 = vmul.f32 %v597, %v607
        %v613 = vmul.f32 %v598, %v605
        %617 = vrot.lane.b32.xlu0 %v611, 112
        %v618 = vpop.permute.xlu0 %617
        %619 = vrot.lane.b32.xlu0 %v612, 112
        %v620 = vpop.permute.xlu0 %619
        %621 = vrot.lane.b32.xlu0 %v613, 112
        %v622 = vpop.permute.xlu0 %621
        %vm623 = vcmask 916480
        %v624 = vsel %vm623, %v618, %v620
        %v625 = vsel %vm623, %v620, %v622
        %v628 = vadd.f32 %v582, %v624
        %v629 = vadd.f32 %v583, %v625
        %s630 = scalar_lea.vmem [#allocation6], 16
        %v631 = vld [vmem:[%s630] ss:$8 sm:$0x3]
        %s632 = sld [smem:[#allocation2 + $0x8]]
        %v633 = vstv %s632
        %v634 = vmul.f32 %v633, %v274
        %v635 = vmul.f32 %v633, %v270
        %v636 = vmul.f32 %v633, %v275
        %s637 = sld [smem:[#allocation2 + $0x39]]
        %v638 = vstv %s637
        %v639 = vmul.f32 %v638, %v286
        %v640 = vmul.f32 %v638, %v282
        %v641 = vmul.f32 %v638, %v287
        %v642 = vadd.f32 %v634, %v639
        %v643 = vadd.f32 %v635, %v640
        %v644 = vadd.f32 %v636, %v641
        %v646 = vperm.slane %v631, 0
        %v647 = vperm.slane %v631, 1
        %648 = vrot.lane.b32.xlu0 %v646, 17
        %v649 = vpop.permute.xlu0 %648
        %650 = vrot.lane.b32.xlu0 %v647, 17
        %v651 = vpop.permute.xlu0 %650
        %vm652 = vcmask 138240
        %v653 = vsel %vm652, %v649, %v651
        %v657 = vmul.f32 %v642, %v649
        %v658 = vmul.f32 %v643, %v653
        %v659 = vmul.f32 %v644, %v651
        %663 = vrot.lane.b32.xlu0 %v657, 111
        %v664 = vpop.permute.xlu0 %663
        %665 = vrot.lane.b32.xlu0 %v658, 111
        %v666 = vpop.permute.xlu0 %665
        %667 = vrot.lane.b32.xlu0 %v659, 111
        %v668 = vpop.permute.xlu0 %667
        %vm669 = vcmask 908288
        %v670 = vsel %vm669, %v664, %v666
        %v671 = vsel %vm669, %v666, %v668
        %v674 = vadd.f32 %v628, %v670
        %v675 = vadd.f32 %v629, %v671
        %s676 = scalar_lea.vmem [#allocation6], 17
        %v677 = vld [vmem:[%s676] ss:$8 sm:$0x3]
        %s678 = sld [smem:[#allocation2 + $0x9]]
        %v679 = vstv %s678
        %v680 = vmul.f32 %v679, %v274
        %v681 = vmul.f32 %v679, %v270
        %v682 = vmul.f32 %v679, %v275
        %s683 = sld [smem:[#allocation2 + $0x3a]]
        %v684 = vstv %s683
        %v685 = vmul.f32 %v684, %v286
        %v686 = vmul.f32 %v684, %v282
        %v687 = vmul.f32 %v684, %v287
        %v688 = vadd.f32 %v680, %v685
        %v689 = vadd.f32 %v681, %v686
        %v690 = vadd.f32 %v682, %v687
        %v692 = vperm.slane %v677, 0
        %v693 = vperm.slane %v677, 1
        %694 = vrot.lane.b32.xlu0 %v692, 18
        %v695 = vpop.permute.xlu0 %694
        %696 = vrot.lane.b32.xlu0 %v693, 18
        %v697 = vpop.permute.xlu0 %696
        %vm698 = vcmask 146432
        %v699 = vsel %vm698, %v695, %v697
        %v703 = vmul.f32 %v688, %v695
        %v704 = vmul.f32 %v689, %v699
        %v705 = vmul.f32 %v690, %v697
        %709 = vrot.lane.b32.xlu0 %v703, 110
        %v710 = vpop.permute.xlu0 %709
        %711 = vrot.lane.b32.xlu0 %v704, 110
        %v712 = vpop.permute.xlu0 %711
        %713 = vrot.lane.b32.xlu0 %v705, 110
        %v714 = vpop.permute.xlu0 %713
        %vm715 = vcmask 900096
        %v716 = vsel %vm715, %v710, %v712
        %v717 = vsel %vm715, %v712, %v714
        %v720 = vadd.f32 %v674, %v716
        %v721 = vadd.f32 %v675, %v717
        %s722 = scalar_lea.vmem [#allocation6], 18
        %v723 = vld [vmem:[%s722] ss:$8 sm:$0x3]
        %s724 = sld [smem:[#allocation2 + $0xa]]
        %v725 = vstv %s724
        %v726 = vmul.f32 %v725, %v274
        %v727 = vmul.f32 %v725, %v270
        %v728 = vmul.f32 %v725, %v275
        %s729 = sld [smem:[#allocation2 + $0x3b]]
        %v730 = vstv %s729
        %v731 = vmul.f32 %v730, %v286
        %v732 = vmul.f32 %v730, %v282
        %v733 = vmul.f32 %v730, %v287
        %v734 = vadd.f32 %v726, %v731
        %v735 = vadd.f32 %v727, %v732
        %v736 = vadd.f32 %v728, %v733
        %v738 = vperm.slane %v723, 0
        %v739 = vperm.slane %v723, 1
        %740 = vrot.lane.b32.xlu0 %v738, 19
        %v741 = vpop.permute.xlu0 %740
        %742 = vrot.lane.b32.xlu0 %v739, 19
        %v743 = vpop.permute.xlu0 %742
        %vm744 = vcmask 154624
        %v745 = vsel %vm744, %v741, %v743
        %v749 = vmul.f32 %v734, %v741
        %v750 = vmul.f32 %v735, %v745
        %v751 = vmul.f32 %v736, %v743
        %755 = vrot.lane.b32.xlu0 %v749, 109
        %v756 = vpop.permute.xlu0 %755
        %757 = vrot.lane.b32.xlu0 %v750, 109
        %v758 = vpop.permute.xlu0 %757
        %759 = vrot.lane.b32.xlu0 %v751, 109
        %v760 = vpop.permute.xlu0 %759
        %vm761 = vcmask 891904
        %v762 = vsel %vm761, %v756, %v758
        %v763 = vsel %vm761, %v758, %v760
        %v766 = vadd.f32 %v720, %v762
        %v767 = vadd.f32 %v721, %v763
        %s768 = scalar_lea.vmem [#allocation6], 19
        %v769 = vld [vmem:[%s768] ss:$8 sm:$0x3]
        %s770 = sld [smem:[#allocation2 + $0xb]]
        %v771 = vstv %s770
        %v772 = vmul.f32 %v771, %v274
        %v773 = vmul.f32 %v771, %v270
        %v774 = vmul.f32 %v771, %v275
        %s775 = sld [smem:[#allocation2 + $0x3c]]
        %v776 = vstv %s775
        %v777 = vmul.f32 %v776, %v286
        %v778 = vmul.f32 %v776, %v282
        %v779 = vmul.f32 %v776, %v287
        %v780 = vadd.f32 %v772, %v777
        %v781 = vadd.f32 %v773, %v778
        %v782 = vadd.f32 %v774, %v779
        %v784 = vperm.slane %v769, 0
        %v785 = vperm.slane %v769, 1
        %786 = vrot.lane.b32.xlu0 %v784, 20
        %v787 = vpop.permute.xlu0 %786
        %788 = vrot.lane.b32.xlu0 %v785, 20
        %v789 = vpop.permute.xlu0 %788
        %vm790 = vcmask 162816
        %v791 = vsel %vm790, %v787, %v789
        %v795 = vmul.f32 %v780, %v787
        %v796 = vmul.f32 %v781, %v791
        %v797 = vmul.f32 %v782, %v789
        %801 = vrot.lane.b32.xlu0 %v795, 108
        %v802 = vpop.permute.xlu0 %801
        %803 = vrot.lane.b32.xlu0 %v796, 108
        %v804 = vpop.permute.xlu0 %803
        %805 = vrot.lane.b32.xlu0 %v797, 108
        %v806 = vpop.permute.xlu0 %805
        %vm807 = vcmask 883712
        %v808 = vsel %vm807, %v802, %v804
        %v809 = vsel %vm807, %v804, %v806
        %v812 = vadd.f32 %v766, %v808
        %v813 = vadd.f32 %v767, %v809
        %s814 = scalar_lea.vmem [#allocation6], 20
        %v815 = vld [vmem:[%s814] ss:$8 sm:$0x3]
        %s816 = sld [smem:[#allocation2 + $0xc]]
        %v817 = vstv %s816
        %v818 = vmul.f32 %v817, %v274
        %v819 = vmul.f32 %v817, %v270
        %v820 = vmul.f32 %v817, %v275
        %s821 = sld [smem:[#allocation2 + $0x3d]]
        %v822 = vstv %s821
        %v823 = vmul.f32 %v822, %v286
        %v824 = vmul.f32 %v822, %v282
        %v825 = vmul.f32 %v822, %v287
        %v826 = vadd.f32 %v818, %v823
        %v827 = vadd.f32 %v819, %v824
        %v828 = vadd.f32 %v820, %v825
        %v830 = vperm.slane %v815, 0
        %v831 = vperm.slane %v815, 1
        %832 = vrot.lane.b32.xlu0 %v830, 21
        %v833 = vpop.permute.xlu0 %832
        %834 = vrot.lane.b32.xlu0 %v831, 21
        %v835 = vpop.permute.xlu0 %834
        %vm836 = vcmask 171008
        %v837 = vsel %vm836, %v833, %v835
        %v841 = vmul.f32 %v826, %v833
        %v842 = vmul.f32 %v827, %v837
        %v843 = vmul.f32 %v828, %v835
        %847 = vrot.lane.b32.xlu0 %v841, 107
        %v848 = vpop.permute.xlu0 %847
        %849 = vrot.lane.b32.xlu0 %v842, 107
        %v850 = vpop.permute.xlu0 %849
        %851 = vrot.lane.b32.xlu0 %v843, 107
        %v852 = vpop.permute.xlu0 %851
        %vm853 = vcmask 875520
        %v854 = vsel %vm853, %v848, %v850
        %v855 = vsel %vm853, %v850, %v852
        %v858 = vadd.f32 %v812, %v854
        %v859 = vadd.f32 %v813, %v855
        %s860 = scalar_lea.vmem [#allocation6], 21
        %v861 = vld [vmem:[%s860] ss:$8 sm:$0x3]
        %s862 = sld [smem:[#allocation2 + $0xd]]
        %v863 = vstv %s862
        %v864 = vmul.f32 %v863, %v274
        %v865 = vmul.f32 %v863, %v270
        %v866 = vmul.f32 %v863, %v275
        %s867 = sld [smem:[#allocation2 + $0x3e]]
        %v868 = vstv %s867
        %v869 = vmul.f32 %v868, %v286
        %v870 = vmul.f32 %v868, %v282
        %v871 = vmul.f32 %v868, %v287
        %v872 = vadd.f32 %v864, %v869
        %v873 = vadd.f32 %v865, %v870
        %v874 = vadd.f32 %v866, %v871
        %v876 = vperm.slane %v861, 0
        %v877 = vperm.slane %v861, 1
        %878 = vrot.lane.b32.xlu0 %v876, 22
        %v879 = vpop.permute.xlu0 %878
        %880 = vrot.lane.b32.xlu0 %v877, 22
        %v881 = vpop.permute.xlu0 %880
        %vm882 = vcmask 179200
        %v883 = vsel %vm882, %v879, %v881
        %v887 = vmul.f32 %v872, %v879
        %v888 = vmul.f32 %v873, %v883
        %v889 = vmul.f32 %v874, %v881
        %893 = vrot.lane.b32.xlu0 %v887, 106
        %v894 = vpop.permute.xlu0 %893
        %895 = vrot.lane.b32.xlu0 %v888, 106
        %v896 = vpop.permute.xlu0 %895
        %897 = vrot.lane.b32.xlu0 %v889, 106
        %v898 = vpop.permute.xlu0 %897
        %vm899 = vcmask 867328
        %v900 = vsel %vm899, %v894, %v896
        %v901 = vsel %vm899, %v896, %v898
        %v904 = vadd.f32 %v858, %v900
        %v905 = vadd.f32 %v859, %v901
        %s906 = scalar_lea.vmem [#allocation6], 22
        %v907 = vld [vmem:[%s906] ss:$8 sm:$0x3]
        %s908 = sld [smem:[#allocation2 + $0xe]]
        %v909 = vstv %s908
        %v910 = vmul.f32 %v909, %v274
        %v911 = vmul.f32 %v909, %v270
        %v912 = vmul.f32 %v909, %v275
        %s913 = sld [smem:[#allocation2 + $0x3f]]
        %v914 = vstv %s913
        %v915 = vmul.f32 %v914, %v286
        %v916 = vmul.f32 %v914, %v282
        %v917 = vmul.f32 %v914, %v287
        %v918 = vadd.f32 %v910, %v915
        %v919 = vadd.f32 %v911, %v916
        %v920 = vadd.f32 %v912, %v917
        %v922 = vperm.slane %v907, 0
        %v923 = vperm.slane %v907, 1
        %924 = vrot.lane.b32.xlu0 %v922, 32
        %v925 = vpop.permute.xlu0 %924
        %926 = vrot.lane.b32.xlu0 %v923, 32
        %v927 = vpop.permute.xlu0 %926
        %vm928 = vcmask 261120
        %v929 = vsel %vm928, %v925, %v927
        %v933 = vmul.f32 %v918, %v925
        %v934 = vmul.f32 %v919, %v929
        %v935 = vmul.f32 %v920, %v927
        %939 = vrot.lane.b32.xlu0 %v933, 96
        %v940 = vpop.permute.xlu0 %939
        %941 = vrot.lane.b32.xlu0 %v934, 96
        %v942 = vpop.permute.xlu0 %941
        %943 = vrot.lane.b32.xlu0 %v935, 96
        %v944 = vpop.permute.xlu0 %943
        %vm945 = vcmask 785408
        %v946 = vsel %vm945, %v940, %v942
        %v947 = vsel %vm945, %v942, %v944
        %v950 = vadd.f32 %v904, %v946
        %v951 = vadd.f32 %v905, %v947
        %s952 = scalar_lea.vmem [#allocation6], 23
        %v953 = vld [vmem:[%s952] ss:$8 sm:$0x3]
        %s954 = sld [smem:[#allocation2 + $0xf]]
        %v955 = vstv %s954
        %v956 = vmul.f32 %v955, %v274
        %v957 = vmul.f32 %v955, %v270
        %v958 = vmul.f32 %v955, %v275
        %s959 = sld [smem:[#allocation2 + $0x40]]
        %v960 = vstv %s959
        %v961 = vmul.f32 %v960, %v286
        %v962 = vmul.f32 %v960, %v282
        %v963 = vmul.f32 %v960, %v287
        %v964 = vadd.f32 %v956, %v961
        %v965 = vadd.f32 %v957, %v962
        %v966 = vadd.f32 %v958, %v963
        %v968 = vperm.slane %v953, 0
        %v969 = vperm.slane %v953, 1
        %970 = vrot.lane.b32.xlu0 %v968, 33
        %v971 = vpop.permute.xlu0 %970
        %972 = vrot.lane.b32.xlu0 %v969, 33
        %v973 = vpop.permute.xlu0 %972
        %vm974 = vcmask 269312
        %v975 = vsel %vm974, %v971, %v973
        %v979 = vmul.f32 %v964, %v971
        %v980 = vmul.f32 %v965, %v975
        %v981 = vmul.f32 %v966, %v973
        %985 = vrot.lane.b32.xlu0 %v979, 95
        %v986 = vpop.permute.xlu0 %985
        %987 = vrot.lane.b32.xlu0 %v980, 95
        %v988 = vpop.permute.xlu0 %987
        %989 = vrot.lane.b32.xlu0 %v981, 95
        %v990 = vpop.permute.xlu0 %989
        %vm991 = vcmask 777216
        %v992 = vsel %vm991, %v986, %v988
        %v993 = vsel %vm991, %v988, %v990
        %v996 = vadd.f32 %v950, %v992
        %v997 = vadd.f32 %v951, %v993
        %s998 = scalar_lea.vmem [#allocation6], 32
        %v999 = vld [vmem:[%s998] ss:$8 sm:$0x3]
        %s1000 = sld [smem:[#allocation2 + $0x10]]
        %v1001 = vstv %s1000
        %v1002 = vmul.f32 %v1001, %v274
        %v1003 = vmul.f32 %v1001, %v270
        %v1004 = vmul.f32 %v1001, %v275
        %s1005 = sld [smem:[#allocation2 + $0x41]]
        %v1006 = vstv %s1005
        %v1007 = vmul.f32 %v1006, %v286
        %v1008 = vmul.f32 %v1006, %v282
        %v1009 = vmul.f32 %v1006, %v287
        %v1010 = vadd.f32 %v1002, %v1007
        %v1011 = vadd.f32 %v1003, %v1008
        %v1012 = vadd.f32 %v1004, %v1009
        %v1014 = vperm.slane %v999, 0
        %v1015 = vperm.slane %v999, 1
        %1016 = vrot.lane.b32.xlu0 %v1014, 34
        %v1017 = vpop.permute.xlu0 %1016
        %1018 = vrot.lane.b32.xlu0 %v1015, 34
        %v1019 = vpop.permute.xlu0 %1018
        %vm1020 = vcmask 277504
        %v1021 = vsel %vm1020, %v1017, %v1019
        %v1025 = vmul.f32 %v1010, %v1017
        %v1026 = vmul.f32 %v1011, %v1021
        %v1027 = vmul.f32 %v1012, %v1019
        %1031 = vrot.lane.b32.xlu0 %v1025, 94
        %v1032 = vpop.permute.xlu0 %1031
        %1033 = vrot.lane.b32.xlu0 %v1026, 94
        %v1034 = vpop.permute.xlu0 %1033
        %1035 = vrot.lane.b32.xlu0 %v1027, 94
        %v1036 = vpop.permute.xlu0 %1035
        %vm1037 = vcmask 769024
        %v1038 = vsel %vm1037, %v1032, %v1034
        %v1039 = vsel %vm1037, %v1034, %v1036
        %v1042 = vadd.f32 %v996, %v1038
        %v1043 = vadd.f32 %v997, %v1039
        %s1044 = scalar_lea.vmem [#allocation6], 33
        %v1045 = vld [vmem:[%s1044] ss:$8 sm:$0x3]
        %s1046 = sld [smem:[#allocation2 + $0x11]]
        %v1047 = vstv %s1046
        %v1048 = vmul.f32 %v1047, %v274
        %v1049 = vmul.f32 %v1047, %v270
        %v1050 = vmul.f32 %v1047, %v275
        %s1051 = sld [smem:[#allocation2 + $0x42]]
        %v1052 = vstv %s1051
        %v1053 = vmul.f32 %v1052, %v286
        %v1054 = vmul.f32 %v1052, %v282
        %v1055 = vmul.f32 %v1052, %v287
        %v1056 = vadd.f32 %v1048, %v1053
        %v1057 = vadd.f32 %v1049, %v1054
        %v1058 = vadd.f32 %v1050, %v1055
        %v1060 = vperm.slane %v1045, 0
        %v1061 = vperm.slane %v1045, 1
        %1062 = vrot.lane.b32.xlu0 %v1060, 35
        %v1063 = vpop.permute.xlu0 %1062
        %1064 = vrot.lane.b32.xlu0 %v1061, 35
        %v1065 = vpop.permute.xlu0 %1064
        %vm1066 = vcmask 285696
        %v1067 = vsel %vm1066, %v1063, %v1065
        %v1071 = vmul.f32 %v1056, %v1063
        %v1072 = vmul.f32 %v1057, %v1067
        %v1073 = vmul.f32 %v1058, %v1065
        %1077 = vrot.lane.b32.xlu0 %v1071, 93
        %v1078 = vpop.permute.xlu0 %1077
        %1079 = vrot.lane.b32.xlu0 %v1072, 93
        %v1080 = vpop.permute.xlu0 %1079
        %1081 = vrot.lane.b32.xlu0 %v1073, 93
        %v1082 = vpop.permute.xlu0 %1081
        %vm1083 = vcmask 760832
        %v1084 = vsel %vm1083, %v1078, %v1080
        %v1085 = vsel %vm1083, %v1080, %v1082
        %v1088 = vadd.f32 %v1042, %v1084
        %v1089 = vadd.f32 %v1043, %v1085
        %s1090 = scalar_lea.vmem [#allocation6], 34
        %v1091 = vld [vmem:[%s1090] ss:$8 sm:$0x3]
        %s1092 = sld [smem:[#allocation2 + $0x12]]
        %v1093 = vstv %s1092
        %v1094 = vmul.f32 %v1093, %v274
        %v1095 = vmul.f32 %v1093, %v270
        %v1096 = vmul.f32 %v1093, %v275
        %s1097 = sld [smem:[#allocation2 + $0x43]]
        %v1098 = vstv %s1097
        %v1099 = vmul.f32 %v1098, %v286
        %v1100 = vmul.f32 %v1098, %v282
        %v1101 = vmul.f32 %v1098, %v287
        %v1102 = vadd.f32 %v1094, %v1099
        %v1103 = vadd.f32 %v1095, %v1100
        %v1104 = vadd.f32 %v1096, %v1101
        %v1106 = vperm.slane %v1091, 0
        %v1107 = vperm.slane %v1091, 1
        %1108 = vrot.lane.b32.xlu0 %v1106, 36
        %v1109 = vpop.permute.xlu0 %1108
        %1110 = vrot.lane.b32.xlu0 %v1107, 36
        %v1111 = vpop.permute.xlu0 %1110
        %vm1112 = vcmask 293888
        %v1113 = vsel %vm1112, %v1109, %v1111
        %v1117 = vmul.f32 %v1102, %v1109
        %v1118 = vmul.f32 %v1103, %v1113
        %v1119 = vmul.f32 %v1104, %v1111
        %1123 = vrot.lane.b32.xlu0 %v1117, 92
        %v1124 = vpop.permute.xlu0 %1123
        %1125 = vrot.lane.b32.xlu0 %v1118, 92
        %v1126 = vpop.permute.xlu0 %1125
        %1127 = vrot.lane.b32.xlu0 %v1119, 92
        %v1128 = vpop.permute.xlu0 %1127
        %vm1129 = vcmask 752640
        %v1130 = vsel %vm1129, %v1124, %v1126
        %v1131 = vsel %vm1129, %v1126, %v1128
        %v1134 = vadd.f32 %v1088, %v1130
        %v1135 = vadd.f32 %v1089, %v1131
        %s1136 = scalar_lea.vmem [#allocation6], 35
        %v1137 = vld [vmem:[%s1136] ss:$8 sm:$0x3]
        %s1138 = sld [smem:[#allocation2 + $0x13]]
        %v1139 = vstv %s1138
        %v1140 = vmul.f32 %v1139, %v274
        %v1141 = vmul.f32 %v1139, %v270
        %v1142 = vmul.f32 %v1139, %v275
        %s1143 = sld [smem:[#allocation2 + $0x44]]
        %v1144 = vstv %s1143
        %v1145 = vmul.f32 %v1144, %v286
        %v1146 = vmul.f32 %v1144, %v282
        %v1147 = vmul.f32 %v1144, %v287
        %v1148 = vadd.f32 %v1140, %v1145
        %v1149 = vadd.f32 %v1141, %v1146
        %v1150 = vadd.f32 %v1142, %v1147
        %v1152 = vperm.slane %v1137, 0
        %v1153 = vperm.slane %v1137, 1
        %1154 = vrot.lane.b32.xlu0 %v1152, 37
        %v1155 = vpop.permute.xlu0 %1154
        %1156 = vrot.lane.b32.xlu0 %v1153, 37
        %v1157 = vpop.permute.xlu0 %1156
        %vm1158 = vcmask 302080
        %v1159 = vsel %vm1158, %v1155, %v1157
        %v1163 = vmul.f32 %v1148, %v1155
        %v1164 = vmul.f32 %v1149, %v1159
        %v1165 = vmul.f32 %v1150, %v1157
        %1169 = vrot.lane.b32.xlu0 %v1163, 91
        %v1170 = vpop.permute.xlu0 %1169
        %1171 = vrot.lane.b32.xlu0 %v1164, 91
        %v1172 = vpop.permute.xlu0 %1171
        %1173 = vrot.lane.b32.xlu0 %v1165, 91
        %v1174 = vpop.permute.xlu0 %1173
        %vm1175 = vcmask 744448
        %v1176 = vsel %vm1175, %v1170, %v1172
        %v1177 = vsel %vm1175, %v1172, %v1174
        %v1180 = vadd.f32 %v1134, %v1176
        %v1181 = vadd.f32 %v1135, %v1177
        %s1182 = scalar_lea.vmem [#allocation6], 36
        %v1183 = vld [vmem:[%s1182] ss:$8 sm:$0x3]
        %s1184 = sld [smem:[#allocation2 + $0x14]]
        %v1185 = vstv %s1184
        %v1186 = vmul.f32 %v1185, %v274
        %v1187 = vmul.f32 %v1185, %v270
        %v1188 = vmul.f32 %v1185, %v275
        %s1189 = sld [smem:[#allocation2 + $0x45]]
        %v1190 = vstv %s1189
        %v1191 = vmul.f32 %v1190, %v286
        %v1192 = vmul.f32 %v1190, %v282
        %v1193 = vmul.f32 %v1190, %v287
        %v1194 = vadd.f32 %v1186, %v1191
        %v1195 = vadd.f32 %v1187, %v1192
        %v1196 = vadd.f32 %v1188, %v1193
        %v1198 = vperm.slane %v1183, 0
        %v1199 = vperm.slane %v1183, 1
        %1200 = vrot.lane.b32.xlu0 %v1198, 38
        %v1201 = vpop.permute.xlu0 %1200
        %1202 = vrot.lane.b32.xlu0 %v1199, 38
        %v1203 = vpop.permute.xlu0 %1202
        %vm1204 = vcmask 310272
        %v1205 = vsel %vm1204, %v1201, %v1203
        %v1209 = vmul.f32 %v1194, %v1201
        %v1210 = vmul.f32 %v1195, %v1205
        %v1211 = vmul.f32 %v1196, %v1203
        %1215 = vrot.lane.b32.xlu0 %v1209, 90
        %v1216 = vpop.permute.xlu0 %1215
        %1217 = vrot.lane.b32.xlu0 %v1210, 90
        %v1218 = vpop.permute.xlu0 %1217
        %1219 = vrot.lane.b32.xlu0 %v1211, 90
        %v1220 = vpop.permute.xlu0 %1219
        %vm1221 = vcmask 736256
        %v1222 = vsel %vm1221, %v1216, %v1218
        %v1223 = vsel %vm1221, %v1218, %v1220
        %v1226 = vadd.f32 %v1180, %v1222
        %v1227 = vadd.f32 %v1181, %v1223
        %s1228 = scalar_lea.vmem [#allocation6], 37
        %v1229 = vld [vmem:[%s1228] ss:$8 sm:$0x3]
        %s1230 = sld [smem:[#allocation2 + $0x15]]
        %v1231 = vstv %s1230
        %v1232 = vmul.f32 %v1231, %v274
        %v1233 = vmul.f32 %v1231, %v270
        %v1234 = vmul.f32 %v1231, %v275
        %s1235 = sld [smem:[#allocation2 + $0x46]]
        %v1236 = vstv %s1235
        %v1237 = vmul.f32 %v1236, %v286
        %v1238 = vmul.f32 %v1236, %v282
        %v1239 = vmul.f32 %v1236, %v287
        %v1240 = vadd.f32 %v1232, %v1237
        %v1241 = vadd.f32 %v1233, %v1238
        %v1242 = vadd.f32 %v1234, %v1239
        %v1244 = vperm.slane %v1229, 0
        %v1245 = vperm.slane %v1229, 1
        %1246 = vrot.lane.b32.xlu0 %v1244, 48
        %v1247 = vpop.permute.xlu0 %1246
        %1248 = vrot.lane.b32.xlu0 %v1245, 48
        %v1249 = vpop.permute.xlu0 %1248
        %vm1250 = vcmask 392192
        %v1251 = vsel %vm1250, %v1247, %v1249
        %v1255 = vmul.f32 %v1240, %v1247
        %v1256 = vmul.f32 %v1241, %v1251
        %v1257 = vmul.f32 %v1242, %v1249
        %1261 = vrot.lane.b32.xlu0 %v1255, 80
        %v1262 = vpop.permute.xlu0 %1261
        %1263 = vrot.lane.b32.xlu0 %v1256, 80
        %v1264 = vpop.permute.xlu0 %1263
        %1265 = vrot.lane.b32.xlu0 %v1257, 80
        %v1266 = vpop.permute.xlu0 %1265
        %vm1267 = vcmask 654336
        %v1268 = vsel %vm1267, %v1262, %v1264
        %v1269 = vsel %vm1267, %v1264, %v1266
        %v1272 = vadd.f32 %v1226, %v1268
        %v1273 = vadd.f32 %v1227, %v1269
        %s1274 = scalar_lea.vmem [#allocation6], 38
        %v1275 = vld [vmem:[%s1274] ss:$8 sm:$0x3]
        %s1276 = sld [smem:[#allocation2 + $0x16]]
        %v1277 = vstv %s1276
        %v1278 = vmul.f32 %v1277, %v274
        %v1279 = vmul.f32 %v1277, %v270
        %v1280 = vmul.f32 %v1277, %v275
        %s1281 = sld [smem:[#allocation2 + $0x47]]
        %v1282 = vstv %s1281
        %v1283 = vmul.f32 %v1282, %v286
        %v1284 = vmul.f32 %v1282, %v282
        %v1285 = vmul.f32 %v1282, %v287
        %v1286 = vadd.f32 %v1278, %v1283
        %v1287 = vadd.f32 %v1279, %v1284
        %v1288 = vadd.f32 %v1280, %v1285
        %v1290 = vperm.slane %v1275, 0
        %v1291 = vperm.slane %v1275, 1
        %1292 = vrot.lane.b32.xlu0 %v1290, 49
        %v1293 = vpop.permute.xlu0 %1292
        %1294 = vrot.lane.b32.xlu0 %v1291, 49
        %v1295 = vpop.permute.xlu0 %1294
        %vm1296 = vcmask 400384
        %v1297 = vsel %vm1296, %v1293, %v1295
        %v1301 = vmul.f32 %v1286, %v1293
        %v1302 = vmul.f32 %v1287, %v1297
        %v1303 = vmul.f32 %v1288, %v1295
        %1307 = vrot.lane.b32.xlu0 %v1301, 79
        %v1308 = vpop.permute.xlu0 %1307
        %1309 = vrot.lane.b32.xlu0 %v1302, 79
        %v1310 = vpop.permute.xlu0 %1309
        %1311 = vrot.lane.b32.xlu0 %v1303, 79
        %v1312 = vpop.permute.xlu0 %1311
        %vm1313 = vcmask 646144
        %v1314 = vsel %vm1313, %v1308, %v1310
        %v1315 = vsel %vm1313, %v1310, %v1312
        %v1318 = vadd.f32 %v1272, %v1314
        %v1319 = vadd.f32 %v1273, %v1315
        %s1320 = scalar_lea.vmem [#allocation6], 39
        %v1321 = vld [vmem:[%s1320] ss:$8 sm:$0x3]
        %s1322 = sld [smem:[#allocation2 + $0x17]]
        %v1323 = vstv %s1322
        %v1324 = vmul.f32 %v1323, %v274
        %v1325 = vmul.f32 %v1323, %v270
        %v1326 = vmul.f32 %v1323, %v275
        %s1327 = sld [smem:[#allocation2 + $0x48]]
        %v1328 = vstv %s1327
        %v1329 = vmul.f32 %v1328, %v286
        %v1330 = vmul.f32 %v1328, %v282
        %v1331 = vmul.f32 %v1328, %v287
        %v1332 = vadd.f32 %v1324, %v1329
        %v1333 = vadd.f32 %v1325, %v1330
        %v1334 = vadd.f32 %v1326, %v1331
        %v1336 = vperm.slane %v1321, 0
        %v1337 = vperm.slane %v1321, 1
        %1338 = vrot.lane.b32.xlu0 %v1336, 50
        %v1339 = vpop.permute.xlu0 %1338
        %1340 = vrot.lane.b32.xlu0 %v1337, 50
        %v1341 = vpop.permute.xlu0 %1340
        %vm1342 = vcmask 408576
        %v1343 = vsel %vm1342, %v1339, %v1341
        %v1347 = vmul.f32 %v1332, %v1339
        %v1348 = vmul.f32 %v1333, %v1343
        %v1349 = vmul.f32 %v1334, %v1341
        %1353 = vrot.lane.b32.xlu0 %v1347, 78
        %v1354 = vpop.permute.xlu0 %1353
        %1355 = vrot.lane.b32.xlu0 %v1348, 78
        %v1356 = vpop.permute.xlu0 %1355
        %1357 = vrot.lane.b32.xlu0 %v1349, 78
        %v1358 = vpop.permute.xlu0 %1357
        %vm1359 = vcmask 637952
        %v1360 = vsel %vm1359, %v1354, %v1356
        %v1361 = vsel %vm1359, %v1356, %v1358
        %v1364 = vadd.f32 %v1318, %v1360
        %v1365 = vadd.f32 %v1319, %v1361
        %s1366 = scalar_lea.vmem [#allocation6], 48
        %v1367 = vld [vmem:[%s1366] ss:$8 sm:$0x3]
        %s1368 = sld [smem:[#allocation2 + $0x18]]
        %v1369 = vstv %s1368
        %v1370 = vmul.f32 %v1369, %v274
        %v1371 = vmul.f32 %v1369, %v270
        %v1372 = vmul.f32 %v1369, %v275
        %s1373 = sld [smem:[#allocation2 + $0x49]]
        %v1374 = vstv %s1373
        %v1375 = vmul.f32 %v1374, %v286
        %v1376 = vmul.f32 %v1374, %v282
        %v1377 = vmul.f32 %v1374, %v287
        %v1378 = vadd.f32 %v1370, %v1375
        %v1379 = vadd.f32 %v1371, %v1376
        %v1380 = vadd.f32 %v1372, %v1377
        %v1382 = vperm.slane %v1367, 0
        %v1383 = vperm.slane %v1367, 1
        %1384 = vrot.lane.b32.xlu0 %v1382, 51
        %v1385 = vpop.permute.xlu0 %1384
        %1386 = vrot.lane.b32.xlu0 %v1383, 51
        %v1387 = vpop.permute.xlu0 %1386
        %v1388 = vsel %vm269, %v1385, %v1387
        %v1392 = vmul.f32 %v1378, %v1385
        %v1393 = vmul.f32 %v1379, %v1388
        %v1394 = vmul.f32 %v1380, %v1387
        %1398 = vrot.lane.b32.xlu0 %v1392, 77
        %v1399 = vpop.permute.xlu0 %1398
        %1400 = vrot.lane.b32.xlu0 %v1393, 77
        %v1401 = vpop.permute.xlu0 %1400
        %1402 = vrot.lane.b32.xlu0 %v1394, 77
        %v1403 = vpop.permute.xlu0 %1402
        %vm1404 = vcmask 629760
        %v1405 = vsel %vm1404, %v1399, %v1401
        %v1406 = vsel %vm1404, %v1401, %v1403
        %v1409 = vadd.f32 %v1364, %v1405
        %v1410 = vadd.f32 %v1365, %v1406
        %s1411 = scalar_lea.vmem [#allocation6], 49
        %v1412 = vld [vmem:[%s1411] ss:$8 sm:$0x3]
        %s1413 = sld [smem:[#allocation2 + $0x19]]
        %v1414 = vstv %s1413
        %v1415 = vmul.f32 %v1414, %v274
        %v1416 = vmul.f32 %v1414, %v270
        %v1417 = vmul.f32 %v1414, %v275
        %s1418 = sld [smem:[#allocation2 + $0x4a]]
        %v1419 = vstv %s1418
        %v1420 = vmul.f32 %v1419, %v286
        %v1421 = vmul.f32 %v1419, %v282
        %v1422 = vmul.f32 %v1419, %v287
        %v1423 = vadd.f32 %v1415, %v1420
        %v1424 = vadd.f32 %v1416, %v1421
        %v1425 = vadd.f32 %v1417, %v1422
        %v1427 = vperm.slane %v1412, 0
        %v1428 = vperm.slane %v1412, 1
        %1429 = vrot.lane.b32.xlu0 %v1427, 52
        %v1430 = vpop.permute.xlu0 %1429
        %1431 = vrot.lane.b32.xlu0 %v1428, 52
        %v1432 = vpop.permute.xlu0 %1431
        %vm1433 = vcmask 424960
        %v1434 = vsel %vm1433, %v1430, %v1432
        %v1438 = vmul.f32 %v1423, %v1430
        %v1439 = vmul.f32 %v1424, %v1434
        %v1440 = vmul.f32 %v1425, %v1432
        %1444 = vrot.lane.b32.xlu0 %v1438, 76
        %v1445 = vpop.permute.xlu0 %1444
        %1446 = vrot.lane.b32.xlu0 %v1439, 76
        %v1447 = vpop.permute.xlu0 %1446
        %1448 = vrot.lane.b32.xlu0 %v1440, 76
        %v1449 = vpop.permute.xlu0 %1448
        %vm1450 = vcmask 621568
        %v1451 = vsel %vm1450, %v1445, %v1447
        %v1452 = vsel %vm1450, %v1447, %v1449
        %v1455 = vadd.f32 %v1409, %v1451
        %v1456 = vadd.f32 %v1410, %v1452
        %s1457 = scalar_lea.vmem [#allocation6], 50
        %v1458 = vld [vmem:[%s1457] ss:$8 sm:$0x3]
        %s1459 = sld [smem:[#allocation2 + $0x1a]]
        %v1460 = vstv %s1459
        %v1461 = vmul.f32 %v1460, %v274
        %v1462 = vmul.f32 %v1460, %v270
        %v1463 = vmul.f32 %v1460, %v275
        %s1464 = sld [smem:[#allocation2 + $0x4b]]
        %v1465 = vstv %s1464
        %v1466 = vmul.f32 %v1465, %v286
        %v1467 = vmul.f32 %v1465, %v282
        %v1468 = vmul.f32 %v1465, %v287
        %v1469 = vadd.f32 %v1461, %v1466
        %v1470 = vadd.f32 %v1462, %v1467
        %v1471 = vadd.f32 %v1463, %v1468
        %v1473 = vperm.slane %v1458, 0
        %v1474 = vperm.slane %v1458, 1
        %1475 = vrot.lane.b32.xlu0 %v1473, 53
        %v1476 = vpop.permute.xlu0 %1475
        %1477 = vrot.lane.b32.xlu0 %v1474, 53
        %v1478 = vpop.permute.xlu0 %1477
        %vm1479 = vcmask 433152
        %v1480 = vsel %vm1479, %v1476, %v1478
        %v1484 = vmul.f32 %v1469, %v1476
        %v1485 = vmul.f32 %v1470, %v1480
        %v1486 = vmul.f32 %v1471, %v1478
        %1490 = vrot.lane.b32.xlu0 %v1484, 75
        %v1491 = vpop.permute.xlu0 %1490
        %1492 = vrot.lane.b32.xlu0 %v1485, 75
        %v1493 = vpop.permute.xlu0 %1492
        %1494 = vrot.lane.b32.xlu0 %v1486, 75
        %v1495 = vpop.permute.xlu0 %1494
        %vm1496 = vcmask 613376
        %v1497 = vsel %vm1496, %v1491, %v1493
        %v1498 = vsel %vm1496, %v1493, %v1495
        %v1501 = vadd.f32 %v1455, %v1497
        %v1502 = vadd.f32 %v1456, %v1498
        %s1503 = scalar_lea.vmem [#allocation6], 51
        %v1504 = vld [vmem:[%s1503] ss:$8 sm:$0x3]
        %s1505 = sld [smem:[#allocation2 + $0x1b]]
        %v1506 = vstv %s1505
        %v1507 = vmul.f32 %v1506, %v274
        %v1508 = vmul.f32 %v1506, %v270
        %v1509 = vmul.f32 %v1506, %v275
        %s1510 = sld [smem:[#allocation2 + $0x4c]]
        %v1511 = vstv %s1510
        %v1512 = vmul.f32 %v1511, %v286
        %v1513 = vmul.f32 %v1511, %v282
        %v1514 = vmul.f32 %v1511, %v287
        %v1515 = vadd.f32 %v1507, %v1512
        %v1516 = vadd.f32 %v1508, %v1513
        %v1517 = vadd.f32 %v1509, %v1514
        %v1519 = vperm.slane %v1504, 0
        %v1520 = vperm.slane %v1504, 1
        %1521 = vrot.lane.b32.xlu0 %v1519, 54
        %v1522 = vpop.permute.xlu0 %1521
        %1523 = vrot.lane.b32.xlu0 %v1520, 54
        %v1524 = vpop.permute.xlu0 %1523
        %vm1525 = vcmask 441344
        %v1526 = vsel %vm1525, %v1522, %v1524
        %v1530 = vmul.f32 %v1515, %v1522
        %v1531 = vmul.f32 %v1516, %v1526
        %v1532 = vmul.f32 %v1517, %v1524
        %1536 = vrot.lane.b32.xlu0 %v1530, 74
        %v1537 = vpop.permute.xlu0 %1536
        %1538 = vrot.lane.b32.xlu0 %v1531, 74
        %v1539 = vpop.permute.xlu0 %1538
        %1540 = vrot.lane.b32.xlu0 %v1532, 74
        %v1541 = vpop.permute.xlu0 %1540
        %vm1542 = vcmask 605184
        %v1543 = vsel %vm1542, %v1537, %v1539
        %v1544 = vsel %vm1542, %v1539, %v1541
        %v1547 = vadd.f32 %v1501, %v1543
        %v1548 = vadd.f32 %v1502, %v1544
        %s1549 = scalar_lea.vmem [#allocation6], 52
        %v1550 = vld [vmem:[%s1549] ss:$8 sm:$0x3]
        %s1551 = sld [smem:[#allocation2 + $0x1c]]
        %v1552 = vstv %s1551
        %v1553 = vmul.f32 %v1552, %v274
        %v1554 = vmul.f32 %v1552, %v270
        %v1555 = vmul.f32 %v1552, %v275
        %s1556 = sld [smem:[#allocation2 + $0x4d]]
        %v1557 = vstv %s1556
        %v1558 = vmul.f32 %v1557, %v286
        %v1559 = vmul.f32 %v1557, %v282
        %v1560 = vmul.f32 %v1557, %v287
        %v1561 = vadd.f32 %v1553, %v1558
        %v1562 = vadd.f32 %v1554, %v1559
        %v1563 = vadd.f32 %v1555, %v1560
        %v1565 = vperm.slane %v1550, 0
        %v1566 = vperm.slane %v1550, 1
        %1567 = vrot.lane.b32.xlu0 %v1565, 64
        %v1568 = vpop.permute.xlu0 %1567
        %1569 = vrot.lane.b32.xlu0 %v1566, 64
        %v1570 = vpop.permute.xlu0 %1569
        %vm1571 = vcmask 523264
        %v1572 = vsel %vm1571, %v1568, %v1570
        %v1576 = vmul.f32 %v1561, %v1568
        %v1577 = vmul.f32 %v1562, %v1572
        %v1578 = vmul.f32 %v1563, %v1570
        %1582 = vrot.lane.b32.xlu0 %v1576, 64
        %v1583 = vpop.permute.xlu0 %1582
        %1584 = vrot.lane.b32.xlu0 %v1577, 64
        %v1585 = vpop.permute.xlu0 %1584
        %1586 = vrot.lane.b32.xlu0 %v1578, 64
        %v1587 = vpop.permute.xlu0 %1586
        %v1588 = vsel %vm1571, %v1583, %v1585
        %v1589 = vsel %vm1571, %v1585, %v1587
        %v1592 = vadd.f32 %v1547, %v1588
        %v1593 = vadd.f32 %v1548, %v1589
        %s1594 = scalar_lea.vmem [#allocation6], 53
        %v1595 = vld [vmem:[%s1594] ss:$8 sm:$0x3]
        %s1596 = sld [smem:[#allocation2 + $0x1d]]
        %v1597 = vstv %s1596
        %v1598 = vmul.f32 %v1597, %v274
        %v1599 = vmul.f32 %v1597, %v270
        %v1600 = vmul.f32 %v1597, %v275
        %s1601 = sld [smem:[#allocation2 + $0x4e]]
        %v1602 = vstv %s1601
        %v1603 = vmul.f32 %v1602, %v286
        %v1604 = vmul.f32 %v1602, %v282
        %v1605 = vmul.f32 %v1602, %v287
        %v1606 = vadd.f32 %v1598, %v1603
        %v1607 = vadd.f32 %v1599, %v1604
        %v1608 = vadd.f32 %v1600, %v1605
        %v1610 = vperm.slane %v1595, 0
        %v1611 = vperm.slane %v1595, 1
        %1612 = vrot.lane.b32.xlu0 %v1610, 65
        %v1613 = vpop.permute.xlu0 %1612
        %1614 = vrot.lane.b32.xlu0 %v1611, 65
        %v1615 = vpop.permute.xlu0 %1614
        %vm1616 = vcmask 531456
        %v1617 = vsel %vm1616, %v1613, %v1615
        %v1621 = vmul.f32 %v1606, %v1613
        %v1622 = vmul.f32 %v1607, %v1617
        %v1623 = vmul.f32 %v1608, %v1615
        %1627 = vrot.lane.b32.xlu0 %v1621, 63
        %v1628 = vpop.permute.xlu0 %1627
        %1629 = vrot.lane.b32.xlu0 %v1622, 63
        %v1630 = vpop.permute.xlu0 %1629
        %1631 = vrot.lane.b32.xlu0 %v1623, 63
        %v1632 = vpop.permute.xlu0 %1631
        %vm1633 = vcmask 515072
        %v1634 = vsel %vm1633, %v1628, %v1630
        %v1635 = vsel %vm1633, %v1630, %v1632
        %v1638 = vadd.f32 %v1592, %v1634
        %v1639 = vadd.f32 %v1593, %v1635
        %s1640 = scalar_lea.vmem [#allocation6], 54
        %v1641 = vld [vmem:[%s1640] ss:$8 sm:$0x3]
        %s1642 = sld [smem:[#allocation2 + $0x1e]]
        %v1643 = vstv %s1642
        %v1644 = vmul.f32 %v1643, %v274
        %v1645 = vmul.f32 %v1643, %v270
        %v1646 = vmul.f32 %v1643, %v275
        %s1647 = sld [smem:[#allocation2 + $0x4f]]
        %v1648 = vstv %s1647
        %v1649 = vmul.f32 %v1648, %v286
        %v1650 = vmul.f32 %v1648, %v282
        %v1651 = vmul.f32 %v1648, %v287
        %v1652 = vadd.f32 %v1644, %v1649
        %v1653 = vadd.f32 %v1645, %v1650
        %v1654 = vadd.f32 %v1646, %v1651
        %v1656 = vperm.slane %v1641, 0
        %v1657 = vperm.slane %v1641, 1
        %1658 = vrot.lane.b32.xlu0 %v1656, 66
        %v1659 = vpop.permute.xlu0 %1658
        %1660 = vrot.lane.b32.xlu0 %v1657, 66
        %v1661 = vpop.permute.xlu0 %1660
        %vm1662 = vcmask 539648
        %v1663 = vsel %vm1662, %v1659, %v1661
        %v1667 = vmul.f32 %v1652, %v1659
        %v1668 = vmul.f32 %v1653, %v1663
        %v1669 = vmul.f32 %v1654, %v1661
        %1673 = vrot.lane.b32.xlu0 %v1667, 62
        %v1674 = vpop.permute.xlu0 %1673
        %1675 = vrot.lane.b32.xlu0 %v1668, 62
        %v1676 = vpop.permute.xlu0 %1675
        %1677 = vrot.lane.b32.xlu0 %v1669, 62
        %v1678 = vpop.permute.xlu0 %1677
        %vm1679 = vcmask 506880
        %v1680 = vsel %vm1679, %v1674, %v1676
        %v1681 = vsel %vm1679, %v1676, %v1678
        %v1684 = vadd.f32 %v1638, %v1680
        %v1685 = vadd.f32 %v1639, %v1681
        %s1686 = scalar_lea.vmem [#allocation6], 55
        %v1687 = vld [vmem:[%s1686] ss:$8 sm:$0x3]
        %s1688 = sld [smem:[#allocation2 + $0x1f]]
        %v1689 = vstv %s1688
        %v1690 = vmul.f32 %v1689, %v274
        %v1691 = vmul.f32 %v1689, %v270
        %v1692 = vmul.f32 %v1689, %v275
        %s1693 = sld [smem:[#allocation2 + $0x50]]
        %v1694 = vstv %s1693
        %v1695 = vmul.f32 %v1694, %v286
        %v1696 = vmul.f32 %v1694, %v282
        %v1697 = vmul.f32 %v1694, %v287
        %v1698 = vadd.f32 %v1690, %v1695
        %v1699 = vadd.f32 %v1691, %v1696
        %v1700 = vadd.f32 %v1692, %v1697
        %v1702 = vperm.slane %v1687, 0
        %v1703 = vperm.slane %v1687, 1
        %1704 = vrot.lane.b32.xlu0 %v1702, 67
        %v1705 = vpop.permute.xlu0 %1704
        %1706 = vrot.lane.b32.xlu0 %v1703, 67
        %v1707 = vpop.permute.xlu0 %1706
        %vm1708 = vcmask 547840
        %v1709 = vsel %vm1708, %v1705, %v1707
        %v1713 = vmul.f32 %v1698, %v1705
        %v1714 = vmul.f32 %v1699, %v1709
        %v1715 = vmul.f32 %v1700, %v1707
        %1719 = vrot.lane.b32.xlu0 %v1713, 61
        %v1720 = vpop.permute.xlu0 %1719
        %1721 = vrot.lane.b32.xlu0 %v1714, 61
        %v1722 = vpop.permute.xlu0 %1721
        %1723 = vrot.lane.b32.xlu0 %v1715, 61
        %v1724 = vpop.permute.xlu0 %1723
        %vm1725 = vcmask 498688
        %v1726 = vsel %vm1725, %v1720, %v1722
        %v1727 = vsel %vm1725, %v1722, %v1724
        %v1730 = vadd.f32 %v1684, %v1726
        %v1731 = vadd.f32 %v1685, %v1727
        %s1732 = scalar_lea.vmem [#allocation6], 64
        %v1733 = vld [vmem:[%s1732] ss:$8 sm:$0x3]
        %s1734 = sld [smem:[#allocation2 + $0x20]]
        %v1735 = vstv %s1734
        %v1736 = vmul.f32 %v1735, %v274
        %v1737 = vmul.f32 %v1735, %v270
        %v1738 = vmul.f32 %v1735, %v275
        %s1739 = sld [smem:[#allocation2 + $0x51]]
        %v1740 = vstv %s1739
        %v1741 = vmul.f32 %v1740, %v286
        %v1742 = vmul.f32 %v1740, %v282
        %v1743 = vmul.f32 %v1740, %v287
        %v1744 = vadd.f32 %v1736, %v1741
        %v1745 = vadd.f32 %v1737, %v1742
        %v1746 = vadd.f32 %v1738, %v1743
        %v1748 = vperm.slane %v1733, 0
        %v1749 = vperm.slane %v1733, 1
        %1750 = vrot.lane.b32.xlu0 %v1748, 68
        %v1751 = vpop.permute.xlu0 %1750
        %1752 = vrot.lane.b32.xlu0 %v1749, 68
        %v1753 = vpop.permute.xlu0 %1752
        %vm1754 = vcmask 556032
        %v1755 = vsel %vm1754, %v1751, %v1753
        %v1759 = vmul.f32 %v1744, %v1751
        %v1760 = vmul.f32 %v1745, %v1755
        %v1761 = vmul.f32 %v1746, %v1753
        %1765 = vrot.lane.b32.xlu0 %v1759, 60
        %v1766 = vpop.permute.xlu0 %1765
        %1767 = vrot.lane.b32.xlu0 %v1760, 60
        %v1768 = vpop.permute.xlu0 %1767
        %1769 = vrot.lane.b32.xlu0 %v1761, 60
        %v1770 = vpop.permute.xlu0 %1769
        %vm1771 = vcmask 490496
        %v1772 = vsel %vm1771, %v1766, %v1768
        %v1773 = vsel %vm1771, %v1768, %v1770
        %v1776 = vadd.f32 %v1730, %v1772
        %v1777 = vadd.f32 %v1731, %v1773
        %s1778 = scalar_lea.vmem [#allocation6], 65
        %v1779 = vld [vmem:[%s1778] ss:$8 sm:$0x3]
        %s1780 = sld [smem:[#allocation2 + $0x21]]
        %v1781 = vstv %s1780
        %v1782 = vmul.f32 %v1781, %v274
        %v1783 = vmul.f32 %v1781, %v270
        %v1784 = vmul.f32 %v1781, %v275
        %s1785 = sld [smem:[#allocation2 + $0x52]]
        %v1786 = vstv %s1785
        %v1787 = vmul.f32 %v1786, %v286
        %v1788 = vmul.f32 %v1786, %v282
        %v1789 = vmul.f32 %v1786, %v287
        %v1790 = vadd.f32 %v1782, %v1787
        %v1791 = vadd.f32 %v1783, %v1788
        %v1792 = vadd.f32 %v1784, %v1789
        %v1794 = vperm.slane %v1779, 0
        %v1795 = vperm.slane %v1779, 1
        %1796 = vrot.lane.b32.xlu0 %v1794, 69
        %v1797 = vpop.permute.xlu0 %1796
        %1798 = vrot.lane.b32.xlu0 %v1795, 69
        %v1799 = vpop.permute.xlu0 %1798
        %vm1800 = vcmask 564224
        %v1801 = vsel %vm1800, %v1797, %v1799
        %v1805 = vmul.f32 %v1790, %v1797
        %v1806 = vmul.f32 %v1791, %v1801
        %v1807 = vmul.f32 %v1792, %v1799
        %1811 = vrot.lane.b32.xlu0 %v1805, 59
        %v1812 = vpop.permute.xlu0 %1811
        %1813 = vrot.lane.b32.xlu0 %v1806, 59
        %v1814 = vpop.permute.xlu0 %1813
        %1815 = vrot.lane.b32.xlu0 %v1807, 59
        %v1816 = vpop.permute.xlu0 %1815
        %vm1817 = vcmask 482304
        %v1818 = vsel %vm1817, %v1812, %v1814
        %v1819 = vsel %vm1817, %v1814, %v1816
        %v1822 = vadd.f32 %v1776, %v1818
        %v1823 = vadd.f32 %v1777, %v1819
        %s1824 = scalar_lea.vmem [#allocation6], 66
        %v1825 = vld [vmem:[%s1824] ss:$8 sm:$0x3]
        %s1826 = sld [smem:[#allocation2 + $0x22]]
        %v1827 = vstv %s1826
        %v1828 = vmul.f32 %v1827, %v274
        %v1829 = vmul.f32 %v1827, %v270
        %v1830 = vmul.f32 %v1827, %v275
        %s1831 = sld [smem:[#allocation2 + $0x53]]
        %v1832 = vstv %s1831
        %v1833 = vmul.f32 %v1832, %v286
        %v1834 = vmul.f32 %v1832, %v282
        %v1835 = vmul.f32 %v1832, %v287
        %v1836 = vadd.f32 %v1828, %v1833
        %v1837 = vadd.f32 %v1829, %v1834
        %v1838 = vadd.f32 %v1830, %v1835
        %v1840 = vperm.slane %v1825, 0
        %v1841 = vperm.slane %v1825, 1
        %1842 = vrot.lane.b32.xlu0 %v1840, 70
        %v1843 = vpop.permute.xlu0 %1842
        %1844 = vrot.lane.b32.xlu0 %v1841, 70
        %v1845 = vpop.permute.xlu0 %1844
        %vm1846 = vcmask 572416
        %v1847 = vsel %vm1846, %v1843, %v1845
        %v1851 = vmul.f32 %v1836, %v1843
        %v1852 = vmul.f32 %v1837, %v1847
        %v1853 = vmul.f32 %v1838, %v1845
        %1857 = vrot.lane.b32.xlu0 %v1851, 58
        %v1858 = vpop.permute.xlu0 %1857
        %1859 = vrot.lane.b32.xlu0 %v1852, 58
        %v1860 = vpop.permute.xlu0 %1859
        %1861 = vrot.lane.b32.xlu0 %v1853, 58
        %v1862 = vpop.permute.xlu0 %1861
        %vm1863 = vcmask 474112
        %v1864 = vsel %vm1863, %v1858, %v1860
        %v1865 = vsel %vm1863, %v1860, %v1862
        %v1868 = vadd.f32 %v1822, %v1864
        %v1869 = vadd.f32 %v1823, %v1865
        %s1870 = scalar_lea.vmem [#allocation6], 67
        %v1871 = vld [vmem:[%s1870] ss:$8 sm:$0x3]
        %s1872 = sld [smem:[#allocation2 + $0x23]]
        %v1873 = vstv %s1872
        %v1874 = vmul.f32 %v1873, %v274
        %v1875 = vmul.f32 %v1873, %v270
        %v1876 = vmul.f32 %v1873, %v275
        %s1877 = sld [smem:[#allocation2 + $0x54]]
        %v1878 = vstv %s1877
        %v1879 = vmul.f32 %v1878, %v286
        %v1880 = vmul.f32 %v1878, %v282
        %v1881 = vmul.f32 %v1878, %v287
        %v1882 = vadd.f32 %v1874, %v1879
        %v1883 = vadd.f32 %v1875, %v1880
        %v1884 = vadd.f32 %v1876, %v1881
        %v1886 = vperm.slane %v1871, 0
        %v1887 = vperm.slane %v1871, 1
        %1888 = vrot.lane.b32.xlu0 %v1886, 80
        %v1889 = vpop.permute.xlu0 %1888
        %1890 = vrot.lane.b32.xlu0 %v1887, 80
        %v1891 = vpop.permute.xlu0 %1890
        %v1892 = vsel %vm1267, %v1889, %v1891
        %v1896 = vmul.f32 %v1882, %v1889
        %v1897 = vmul.f32 %v1883, %v1892
        %v1898 = vmul.f32 %v1884, %v1891
        %1902 = vrot.lane.b32.xlu0 %v1896, 48
        %v1903 = vpop.permute.xlu0 %1902
        %1904 = vrot.lane.b32.xlu0 %v1897, 48
        %v1905 = vpop.permute.xlu0 %1904
        %1906 = vrot.lane.b32.xlu0 %v1898, 48
        %v1907 = vpop.permute.xlu0 %1906
        %v1908 = vsel %vm1250, %v1903, %v1905
        %v1909 = vsel %vm1250, %v1905, %v1907
        %v1912 = vadd.f32 %v1868, %v1908
        %v1913 = vadd.f32 %v1869, %v1909
        %s1914 = scalar_lea.vmem [#allocation6], 68
        %v1915 = vld [vmem:[%s1914] ss:$8 sm:$0x3]
        %s1916 = sld [smem:[#allocation2 + $0x24]]
        %v1917 = vstv %s1916
        %v1918 = vmul.f32 %v1917, %v274
        %v1919 = vmul.f32 %v1917, %v270
        %v1920 = vmul.f32 %v1917, %v275
        %s1921 = sld [smem:[#allocation2 + $0x55]]
        %v1922 = vstv %s1921
        %v1923 = vmul.f32 %v1922, %v286
        %v1924 = vmul.f32 %v1922, %v282
        %v1925 = vmul.f32 %v1922, %v287
        %v1926 = vadd.f32 %v1918, %v1923
        %v1927 = vadd.f32 %v1919, %v1924
        %v1928 = vadd.f32 %v1920, %v1925
        %v1930 = vperm.slane %v1915, 0
        %v1931 = vperm.slane %v1915, 1
        %1932 = vrot.lane.b32.xlu0 %v1930, 81
        %v1933 = vpop.permute.xlu0 %1932
        %1934 = vrot.lane.b32.xlu0 %v1931, 81
        %v1935 = vpop.permute.xlu0 %1934
        %vm1936 = vcmask 662528
        %v1937 = vsel %vm1936, %v1933, %v1935
        %v1941 = vmul.f32 %v1926, %v1933
        %v1942 = vmul.f32 %v1927, %v1937
        %v1943 = vmul.f32 %v1928, %v1935
        %1947 = vrot.lane.b32.xlu0 %v1941, 47
        %v1948 = vpop.permute.xlu0 %1947
        %1949 = vrot.lane.b32.xlu0 %v1942, 47
        %v1950 = vpop.permute.xlu0 %1949
        %1951 = vrot.lane.b32.xlu0 %v1943, 47
        %v1952 = vpop.permute.xlu0 %1951
        %vm1953 = vcmask 384000
        %v1954 = vsel %vm1953, %v1948, %v1950
        %v1955 = vsel %vm1953, %v1950, %v1952
        %v1958 = vadd.f32 %v1912, %v1954
        %v1959 = vadd.f32 %v1913, %v1955
        %s1960 = scalar_lea.vmem [#allocation6], 69
        %v1961 = vld [vmem:[%s1960] ss:$8 sm:$0x3]
        %s1962 = sld [smem:[#allocation2 + $0x25]]
        %v1963 = vstv %s1962
        %v1964 = vmul.f32 %v1963, %v274
        %v1965 = vmul.f32 %v1963, %v270
        %v1966 = vmul.f32 %v1963, %v275
        %s1967 = sld [smem:[#allocation2 + $0x56]]
        %v1968 = vstv %s1967
        %v1969 = vmul.f32 %v1968, %v286
        %v1970 = vmul.f32 %v1968, %v282
        %v1971 = vmul.f32 %v1968, %v287
        %v1972 = vadd.f32 %v1964, %v1969
        %v1973 = vadd.f32 %v1965, %v1970
        %v1974 = vadd.f32 %v1966, %v1971
        %v1976 = vperm.slane %v1961, 0
        %v1977 = vperm.slane %v1961, 1
        %1978 = vrot.lane.b32.xlu0 %v1976, 82
        %v1979 = vpop.permute.xlu0 %1978
        %1980 = vrot.lane.b32.xlu0 %v1977, 82
        %v1981 = vpop.permute.xlu0 %1980
        %vm1982 = vcmask 670720
        %v1983 = vsel %vm1982, %v1979, %v1981
        %v1987 = vmul.f32 %v1972, %v1979
        %v1988 = vmul.f32 %v1973, %v1983
        %v1989 = vmul.f32 %v1974, %v1981
        %1993 = vrot.lane.b32.xlu0 %v1987, 46
        %v1994 = vpop.permute.xlu0 %1993
        %1995 = vrot.lane.b32.xlu0 %v1988, 46
        %v1996 = vpop.permute.xlu0 %1995
        %1997 = vrot.lane.b32.xlu0 %v1989, 46
        %v1998 = vpop.permute.xlu0 %1997
        %vm1999 = vcmask 375808
        %v2000 = vsel %vm1999, %v1994, %v1996
        %v2001 = vsel %vm1999, %v1996, %v1998
        %v2004 = vadd.f32 %v1958, %v2000
        %v2005 = vadd.f32 %v1959, %v2001
        %s2006 = scalar_lea.vmem [#allocation6], 70
        %v2007 = vld [vmem:[%s2006] ss:$8 sm:$0x3]
        %s2008 = sld [smem:[#allocation2 + $0x26]]
        %v2009 = vstv %s2008
        %v2010 = vmul.f32 %v2009, %v274
        %v2011 = vmul.f32 %v2009, %v270
        %v2012 = vmul.f32 %v2009, %v275
        %s2013 = sld [smem:[#allocation2 + $0x57]]
        %v2014 = vstv %s2013
        %v2015 = vmul.f32 %v2014, %v286
        %v2016 = vmul.f32 %v2014, %v282
        %v2017 = vmul.f32 %v2014, %v287
        %v2018 = vadd.f32 %v2010, %v2015
        %v2019 = vadd.f32 %v2011, %v2016
        %v2020 = vadd.f32 %v2012, %v2017
        %v2022 = vperm.slane %v2007, 0
        %v2023 = vperm.slane %v2007, 1
        %2024 = vrot.lane.b32.xlu0 %v2022, 83
        %v2025 = vpop.permute.xlu0 %2024
        %2026 = vrot.lane.b32.xlu0 %v2023, 83
        %v2027 = vpop.permute.xlu0 %2026
        %vm2028 = vcmask 678912
        %v2029 = vsel %vm2028, %v2025, %v2027
        %v2033 = vmul.f32 %v2018, %v2025
        %v2034 = vmul.f32 %v2019, %v2029
        %v2035 = vmul.f32 %v2020, %v2027
        %2039 = vrot.lane.b32.xlu0 %v2033, 45
        %v2040 = vpop.permute.xlu0 %2039
        %2041 = vrot.lane.b32.xlu0 %v2034, 45
        %v2042 = vpop.permute.xlu0 %2041
        %2043 = vrot.lane.b32.xlu0 %v2035, 45
        %v2044 = vpop.permute.xlu0 %2043
        %vm2045 = vcmask 367616
        %v2046 = vsel %vm2045, %v2040, %v2042
        %v2047 = vsel %vm2045, %v2042, %v2044
        %v2050 = vadd.f32 %v2004, %v2046
        %v2051 = vadd.f32 %v2005, %v2047
        %s2052 = scalar_lea.vmem [#allocation6], 71
        %v2053 = vld [vmem:[%s2052] ss:$8 sm:$0x3]
        %s2054 = sld [smem:[#allocation2 + $0x27]]
        %v2055 = vstv %s2054
        %v2056 = vmul.f32 %v2055, %v274
        %v2057 = vmul.f32 %v2055, %v270
        %v2058 = vmul.f32 %v2055, %v275
        %s2059 = sld [smem:[#allocation2 + $0x58]]
        %v2060 = vstv %s2059
        %v2061 = vmul.f32 %v2060, %v286
        %v2062 = vmul.f32 %v2060, %v282
        %v2063 = vmul.f32 %v2060, %v287
        %v2064 = vadd.f32 %v2056, %v2061
        %v2065 = vadd.f32 %v2057, %v2062
        %v2066 = vadd.f32 %v2058, %v2063
        %v2068 = vperm.slane %v2053, 0
        %v2069 = vperm.slane %v2053, 1
        %2070 = vrot.lane.b32.xlu0 %v2068, 84
        %v2071 = vpop.permute.xlu0 %2070
        %2072 = vrot.lane.b32.xlu0 %v2069, 84
        %v2073 = vpop.permute.xlu0 %2072
        %vm2074 = vcmask 687104
        %v2075 = vsel %vm2074, %v2071, %v2073
        %v2079 = vmul.f32 %v2064, %v2071
        %v2080 = vmul.f32 %v2065, %v2075
        %v2081 = vmul.f32 %v2066, %v2073
        %2085 = vrot.lane.b32.xlu0 %v2079, 44
        %v2086 = vpop.permute.xlu0 %2085
        %2087 = vrot.lane.b32.xlu0 %v2080, 44
        %v2088 = vpop.permute.xlu0 %2087
        %2089 = vrot.lane.b32.xlu0 %v2081, 44
        %v2090 = vpop.permute.xlu0 %2089
        %vm2091 = vcmask 359424
        %v2092 = vsel %vm2091, %v2086, %v2088
        %v2093 = vsel %vm2091, %v2088, %v2090
        %v2096 = vadd.f32 %v2050, %v2092
        %v2097 = vadd.f32 %v2051, %v2093
        %s2098 = scalar_lea.vmem [#allocation6], 80
        %v2099 = vld [vmem:[%s2098] ss:$8 sm:$0x3]
        %s2100 = sld [smem:[#allocation2 + $0x28]]
        %v2101 = vstv %s2100
        %v2102 = vmul.f32 %v2101, %v274
        %v2103 = vmul.f32 %v2101, %v270
        %v2104 = vmul.f32 %v2101, %v275
        %s2105 = sld [smem:[#allocation2 + $0x59]]
        %v2106 = vstv %s2105
        %v2107 = vmul.f32 %v2106, %v286
        %v2108 = vmul.f32 %v2106, %v282
        %v2109 = vmul.f32 %v2106, %v287
        %v2110 = vadd.f32 %v2102, %v2107
        %v2111 = vadd.f32 %v2103, %v2108
        %v2112 = vadd.f32 %v2104, %v2109
        %v2114 = vperm.slane %v2099, 0
        %v2115 = vperm.slane %v2099, 1
        %2116 = vrot.lane.b32.xlu0 %v2114, 85
        %v2117 = vpop.permute.xlu0 %2116
        %2118 = vrot.lane.b32.xlu0 %v2115, 85
        %v2119 = vpop.permute.xlu0 %2118
        %vm2120 = vcmask 695296
        %v2121 = vsel %vm2120, %v2117, %v2119
        %v2125 = vmul.f32 %v2110, %v2117
        %v2126 = vmul.f32 %v2111, %v2121
        %v2127 = vmul.f32 %v2112, %v2119
        %2131 = vrot.lane.b32.xlu0 %v2125, 43
        %v2132 = vpop.permute.xlu0 %2131
        %2133 = vrot.lane.b32.xlu0 %v2126, 43
        %v2134 = vpop.permute.xlu0 %2133
        %2135 = vrot.lane.b32.xlu0 %v2127, 43
        %v2136 = vpop.permute.xlu0 %2135
        %vm2137 = vcmask 351232
        %v2138 = vsel %vm2137, %v2132, %v2134
        %v2139 = vsel %vm2137, %v2134, %v2136
        %v2142 = vadd.f32 %v2096, %v2138
        %v2143 = vadd.f32 %v2097, %v2139
        %s2144 = scalar_lea.vmem [#allocation6], 81
        %v2145 = vld [vmem:[%s2144] ss:$8 sm:$0x3]
        %s2146 = sld [smem:[#allocation2 + $0x29]]
        %v2147 = vstv %s2146
        %v2148 = vmul.f32 %v2147, %v274
        %v2149 = vmul.f32 %v2147, %v270
        %v2150 = vmul.f32 %v2147, %v275
        %s2151 = sld [smem:[#allocation2 + $0x5a]]
        %v2152 = vstv %s2151
        %v2153 = vmul.f32 %v2152, %v286
        %v2154 = vmul.f32 %v2152, %v282
        %v2155 = vmul.f32 %v2152, %v287
        %v2156 = vadd.f32 %v2148, %v2153
        %v2157 = vadd.f32 %v2149, %v2154
        %v2158 = vadd.f32 %v2150, %v2155
        %v2160 = vperm.slane %v2145, 0
        %v2161 = vperm.slane %v2145, 1
        %2162 = vrot.lane.b32.xlu0 %v2160, 86
        %v2163 = vpop.permute.xlu0 %2162
        %2164 = vrot.lane.b32.xlu0 %v2161, 86
        %v2165 = vpop.permute.xlu0 %2164
        %vm2166 = vcmask 703488
        %v2167 = vsel %vm2166, %v2163, %v2165
        %v2171 = vmul.f32 %v2156, %v2163
        %v2172 = vmul.f32 %v2157, %v2167
        %v2173 = vmul.f32 %v2158, %v2165
        %2177 = vrot.lane.b32.xlu0 %v2171, 42
        %v2178 = vpop.permute.xlu0 %2177
        %2179 = vrot.lane.b32.xlu0 %v2172, 42
        %v2180 = vpop.permute.xlu0 %2179
        %2181 = vrot.lane.b32.xlu0 %v2173, 42
        %v2182 = vpop.permute.xlu0 %2181
        %vm2183 = vcmask 343040
        %v2184 = vsel %vm2183, %v2178, %v2180
        %v2185 = vsel %vm2183, %v2180, %v2182
        %v2188 = vadd.f32 %v2142, %v2184
        %v2189 = vadd.f32 %v2143, %v2185
        %s2190 = scalar_lea.vmem [#allocation6], 82
        %v2191 = vld [vmem:[%s2190] ss:$8 sm:$0x3]
        %s2192 = sld [smem:[#allocation2 + $0x2a]]
        %v2193 = vstv %s2192
        %v2194 = vmul.f32 %v2193, %v274
        %v2195 = vmul.f32 %v2193, %v270
        %v2196 = vmul.f32 %v2193, %v275
        %s2197 = sld [smem:[#allocation2 + $0x5b]]
        %v2198 = vstv %s2197
        %v2199 = vmul.f32 %v2198, %v286
        %v2200 = vmul.f32 %v2198, %v282
        %v2201 = vmul.f32 %v2198, %v287
        %v2202 = vadd.f32 %v2194, %v2199
        %v2203 = vadd.f32 %v2195, %v2200
        %v2204 = vadd.f32 %v2196, %v2201
        %v2206 = vperm.slane %v2191, 0
        %v2207 = vperm.slane %v2191, 1
        %2208 = vrot.lane.b32.xlu0 %v2206, 96
        %v2209 = vpop.permute.xlu0 %2208
        %2210 = vrot.lane.b32.xlu0 %v2207, 96
        %v2211 = vpop.permute.xlu0 %2210
        %v2212 = vsel %vm945, %v2209, %v2211
        %v2216 = vmul.f32 %v2202, %v2209
        %v2217 = vmul.f32 %v2203, %v2212
        %v2218 = vmul.f32 %v2204, %v2211
        %2222 = vrot.lane.b32.xlu0 %v2216, 32
        %v2223 = vpop.permute.xlu0 %2222
        %2224 = vrot.lane.b32.xlu0 %v2217, 32
        %v2225 = vpop.permute.xlu0 %2224
        %2226 = vrot.lane.b32.xlu0 %v2218, 32
        %v2227 = vpop.permute.xlu0 %2226
        %v2228 = vsel %vm928, %v2223, %v2225
        %v2229 = vsel %vm928, %v2225, %v2227
        %v2232 = vadd.f32 %v2188, %v2228
        %v2233 = vadd.f32 %v2189, %v2229
        %s2234 = scalar_lea.vmem [#allocation6], 83
        %v2235 = vld [vmem:[%s2234] ss:$8 sm:$0x3]
        %s2236 = sld [smem:[#allocation2 + $0x2b]]
        %v2237 = vstv %s2236
        %v2238 = vmul.f32 %v2237, %v274
        %v2239 = vmul.f32 %v2237, %v270
        %v2240 = vmul.f32 %v2237, %v275
        %s2241 = sld [smem:[#allocation2 + $0x5c]]
        %v2242 = vstv %s2241
        %v2243 = vmul.f32 %v2242, %v286
        %v2244 = vmul.f32 %v2242, %v282
        %v2245 = vmul.f32 %v2242, %v287
        %v2246 = vadd.f32 %v2238, %v2243
        %v2247 = vadd.f32 %v2239, %v2244
        %v2248 = vadd.f32 %v2240, %v2245
        %v2250 = vperm.slane %v2235, 0
        %v2251 = vperm.slane %v2235, 1
        %2252 = vrot.lane.b32.xlu0 %v2250, 97
        %v2253 = vpop.permute.xlu0 %2252
        %2254 = vrot.lane.b32.xlu0 %v2251, 97
        %v2255 = vpop.permute.xlu0 %2254
        %vm2256 = vcmask 793600
        %v2257 = vsel %vm2256, %v2253, %v2255
        %v2261 = vmul.f32 %v2246, %v2253
        %v2262 = vmul.f32 %v2247, %v2257
        %v2263 = vmul.f32 %v2248, %v2255
        %2267 = vrot.lane.b32.xlu0 %v2261, 31
        %v2268 = vpop.permute.xlu0 %2267
        %2269 = vrot.lane.b32.xlu0 %v2262, 31
        %v2270 = vpop.permute.xlu0 %2269
        %2271 = vrot.lane.b32.xlu0 %v2263, 31
        %v2272 = vpop.permute.xlu0 %2271
        %vm2273 = vcmask 252928
        %v2274 = vsel %vm2273, %v2268, %v2270
        %v2275 = vsel %vm2273, %v2270, %v2272
        %v2278 = vadd.f32 %v2232, %v2274
        %v2279 = vadd.f32 %v2233, %v2275
        %s2280 = scalar_lea.vmem [#allocation6], 84
        %v2281 = vld [vmem:[%s2280] ss:$8 sm:$0x3]
        %s2282 = sld [smem:[#allocation2 + $0x2c]]
        %v2283 = vstv %s2282
        %v2284 = vmul.f32 %v2283, %v274
        %v2285 = vmul.f32 %v2283, %v270
        %v2286 = vmul.f32 %v2283, %v275
        %s2287 = sld [smem:[#allocation2 + $0x5d]]
        %v2288 = vstv %s2287
        %v2289 = vmul.f32 %v2288, %v286
        %v2290 = vmul.f32 %v2288, %v282
        %v2291 = vmul.f32 %v2288, %v287
        %v2292 = vadd.f32 %v2284, %v2289
        %v2293 = vadd.f32 %v2285, %v2290
        %v2294 = vadd.f32 %v2286, %v2291
        %v2296 = vperm.slane %v2281, 0
        %v2297 = vperm.slane %v2281, 1
        %2298 = vrot.lane.b32.xlu0 %v2296, 98
        %v2299 = vpop.permute.xlu0 %2298
        %2300 = vrot.lane.b32.xlu0 %v2297, 98
        %v2301 = vpop.permute.xlu0 %2300
        %vm2302 = vcmask 801792
        %v2303 = vsel %vm2302, %v2299, %v2301
        %v2307 = vmul.f32 %v2292, %v2299
        %v2308 = vmul.f32 %v2293, %v2303
        %v2309 = vmul.f32 %v2294, %v2301
        %2313 = vrot.lane.b32.xlu0 %v2307, 30
        %v2314 = vpop.permute.xlu0 %2313
        %2315 = vrot.lane.b32.xlu0 %v2308, 30
        %v2316 = vpop.permute.xlu0 %2315
        %2317 = vrot.lane.b32.xlu0 %v2309, 30
        %v2318 = vpop.permute.xlu0 %2317
        %vm2319 = vcmask 244736
        %v2320 = vsel %vm2319, %v2314, %v2316
        %v2321 = vsel %vm2319, %v2316, %v2318
        %v2324 = vadd.f32 %v2278, %v2320
        %v2325 = vadd.f32 %v2279, %v2321
        %s2326 = scalar_lea.vmem [#allocation6], 85
        %v2327 = vld [vmem:[%s2326] ss:$8 sm:$0x3]
        %s2328 = sld [smem:[#allocation2 + $0x2d]]
        %v2329 = vstv %s2328
        %v2330 = vmul.f32 %v2329, %v274
        %v2331 = vmul.f32 %v2329, %v270
        %v2332 = vmul.f32 %v2329, %v275
        %s2333 = sld [smem:[#allocation2 + $0x5e]]
        %v2334 = vstv %s2333
        %v2335 = vmul.f32 %v2334, %v286
        %v2336 = vmul.f32 %v2334, %v282
        %v2337 = vmul.f32 %v2334, %v287
        %v2338 = vadd.f32 %v2330, %v2335
        %v2339 = vadd.f32 %v2331, %v2336
        %v2340 = vadd.f32 %v2332, %v2337
        %v2342 = vperm.slane %v2327, 0
        %v2343 = vperm.slane %v2327, 1
        %2344 = vrot.lane.b32.xlu0 %v2342, 99
        %v2345 = vpop.permute.xlu0 %2344
        %2346 = vrot.lane.b32.xlu0 %v2343, 99
        %v2347 = vpop.permute.xlu0 %2346
        %vm2348 = vcmask 809984
        %v2349 = vsel %vm2348, %v2345, %v2347
        %v2353 = vmul.f32 %v2338, %v2345
        %v2354 = vmul.f32 %v2339, %v2349
        %v2355 = vmul.f32 %v2340, %v2347
        %2359 = vrot.lane.b32.xlu0 %v2353, 29
        %v2360 = vpop.permute.xlu0 %2359
        %2361 = vrot.lane.b32.xlu0 %v2354, 29
        %v2362 = vpop.permute.xlu0 %2361
        %2363 = vrot.lane.b32.xlu0 %v2355, 29
        %v2364 = vpop.permute.xlu0 %2363
        %vm2365 = vcmask 236544
        %v2366 = vsel %vm2365, %v2360, %v2362
        %v2367 = vsel %vm2365, %v2362, %v2364
        %v2370 = vadd.f32 %v2324, %v2366
        %v2371 = vadd.f32 %v2325, %v2367
        %s2372 = scalar_lea.vmem [#allocation6], 86
        %v2373 = vld [vmem:[%s2372] ss:$8 sm:$0x3]
        %s2374 = sld [smem:[#allocation2 + $0x2e]]
        %v2375 = vstv %s2374
        %v2376 = vmul.f32 %v2375, %v274
        %v2377 = vmul.f32 %v2375, %v270
        %v2378 = vmul.f32 %v2375, %v275
        %s2379 = sld [smem:[#allocation2 + $0x5f]]
        %v2380 = vstv %s2379
        %v2381 = vmul.f32 %v2380, %v286
        %v2382 = vmul.f32 %v2380, %v282
        %v2383 = vmul.f32 %v2380, %v287
        %v2384 = vadd.f32 %v2376, %v2381
        %v2385 = vadd.f32 %v2377, %v2382
        %v2386 = vadd.f32 %v2378, %v2383
        %v2388 = vperm.slane %v2373, 0
        %v2389 = vperm.slane %v2373, 1
        %2390 = vrot.lane.b32.xlu0 %v2388, 100
        %v2391 = vpop.permute.xlu0 %2390
        %2392 = vrot.lane.b32.xlu0 %v2389, 100
        %v2393 = vpop.permute.xlu0 %2392
        %vm2394 = vcmask 818176
        %v2395 = vsel %vm2394, %v2391, %v2393
        %v2399 = vmul.f32 %v2384, %v2391
        %v2400 = vmul.f32 %v2385, %v2395
        %v2401 = vmul.f32 %v2386, %v2393
        %2405 = vrot.lane.b32.xlu0 %v2399, 28
        %v2406 = vpop.permute.xlu0 %2405
        %2407 = vrot.lane.b32.xlu0 %v2400, 28
        %v2408 = vpop.permute.xlu0 %2407
        %2409 = vrot.lane.b32.xlu0 %v2401, 28
        %v2410 = vpop.permute.xlu0 %2409
        %vm2411 = vcmask 228352
        %v2412 = vsel %vm2411, %v2406, %v2408
        %v2413 = vsel %vm2411, %v2408, %v2410
        %v2416 = vadd.f32 %v2370, %v2412
        %v2417 = vadd.f32 %v2371, %v2413
        %s2418 = scalar_lea.vmem [#allocation6], 87
        %v2419 = vld [vmem:[%s2418] ss:$8 sm:$0x3]
        %s2420 = sld [smem:[#allocation2 + $0x2f]]
        %v2421 = vstv %s2420
        %v2422 = vmul.f32 %v2421, %v274
        %v2423 = vmul.f32 %v2421, %v270
        %v2424 = vmul.f32 %v2421, %v275
        %s2425 = sld [smem:[#allocation2 + $0x60]]
        %v2426 = vstv %s2425
        %v2427 = vmul.f32 %v2426, %v286
        %v2428 = vmul.f32 %v2426, %v282
        %v2429 = vmul.f32 %v2426, %v287
        %v2430 = vadd.f32 %v2422, %v2427
        %v2431 = vadd.f32 %v2423, %v2428
        %v2432 = vadd.f32 %v2424, %v2429
        %v2434 = vperm.slane %v2419, 0
        %v2435 = vperm.slane %v2419, 1
        %2436 = vrot.lane.b32.xlu0 %v2434, 101
        %v2437 = vpop.permute.xlu0 %2436
        %2438 = vrot.lane.b32.xlu0 %v2435, 101
        %v2439 = vpop.permute.xlu0 %2438
        %vm2440 = vcmask 826368
        %v2441 = vsel %vm2440, %v2437, %v2439
        %v2445 = vmul.f32 %v2430, %v2437
        %v2446 = vmul.f32 %v2431, %v2441
        %v2447 = vmul.f32 %v2432, %v2439
        %2451 = vrot.lane.b32.xlu0 %v2445, 27
        %v2452 = vpop.permute.xlu0 %2451
        %2453 = vrot.lane.b32.xlu0 %v2446, 27
        %v2454 = vpop.permute.xlu0 %2453
        %2455 = vrot.lane.b32.xlu0 %v2447, 27
        %v2456 = vpop.permute.xlu0 %2455
        %vm2457 = vcmask 220160
        %v2458 = vsel %vm2457, %v2452, %v2454
        %v2459 = vsel %vm2457, %v2454, %v2456
        %v2462 = vadd.f32 %v2416, %v2458
        %v2463 = vadd.f32 %v2417, %v2459
        %s2464 = scalar_lea.vmem [#allocation6], 96
        %v2465 = vld [vmem:[%s2464] ss:$8 sm:$0x3]
        %s2466 = sld [smem:[#allocation2 + $0x30]]
        %v2467 = vstv %s2466
        %v2468 = vmul.f32 %v2467, %v274
        %v2469 = vmul.f32 %v2467, %v270
        %v2470 = vmul.f32 %v2467, %v275
        %s2471 = sld [smem:[#allocation2 + $0x61]]
        %v2472 = vstv %s2471
        %v2473 = vmul.f32 %v2472, %v286
        %v2474 = vmul.f32 %v2472, %v282
        %v2475 = vmul.f32 %v2472, %v287
        %v2476 = vadd.f32 %v2468, %v2473
        %v2477 = vadd.f32 %v2469, %v2474
        %v2478 = vadd.f32 %v2470, %v2475
        %v2480 = vperm.slane %v2465, 0
        %v2481 = vperm.slane %v2465, 1
        %2482 = vrot.lane.b32.xlu0 %v2480, 102
        %v2483 = vpop.permute.xlu0 %2482
        %2484 = vrot.lane.b32.xlu0 %v2481, 102
        %v2485 = vpop.permute.xlu0 %2484
        %vm2486 = vcmask 834560
        %v2487 = vsel %vm2486, %v2483, %v2485
        %v2491 = vmul.f32 %v2476, %v2483
        %v2492 = vmul.f32 %v2477, %v2487
        %v2493 = vmul.f32 %v2478, %v2485
        %2497 = vrot.lane.b32.xlu0 %v2491, 26
        %v2498 = vpop.permute.xlu0 %2497
        %2499 = vrot.lane.b32.xlu0 %v2492, 26
        %v2500 = vpop.permute.xlu0 %2499
        %2501 = vrot.lane.b32.xlu0 %v2493, 26
        %v2502 = vpop.permute.xlu0 %2501
        %vm2503 = vcmask 211968
        %v2504 = vsel %vm2503, %v2498, %v2500
        %v2505 = vsel %vm2503, %v2500, %v2502
        %v2508 = vadd.f32 %v2462, %v2504
        %v2509 = vadd.f32 %v2463, %v2505
        %v2510 = vxor.u32 %v2508, 2147483648
        %v2511 = vxor.u32 %v2509, 2147483648
        %v2512 = vmul.f32 %v2510, 1.442695
        %v2513 = vpow.pop %v2512
        %v2514 = vmul.f32 %v2511, 1.442695
        %v2515 = vpow.pop %v2514
        %v2516 = vadd.f32 %v2513, 1.0
        %v2517 = vadd.f32 %v2515, 1.0
        %v2518 = vrcp.pop %v2516
        %v2519 = vmul.f32 %v2516, %v2518
        %v2520 = vsub.f32 1.0, %v2519
        %v2521 = vmul.f32 %v2518, %v2520
        %v2522 = vadd.f32 %v2518, %v2521
        %vm2523 = vweird.f32 %v2516
        %vm2524 = vweird.f32 %v2518
        %vm2525 = vmor %vm2523, %vm2524
        %v2526 = vsel %vm2525, %v2518, %v2522
        %v2527 = vand.u32 2147483647, %v2516
        %vm2528 = vcmp.eq.f32.partialorder %v2527, 8.507059e+37
        %v2529 = vand.u32 %v2516, 2147483648
        %v2530 = vor.u32 1.1754944e-38, %v2529
        %v2531 = vsel %vm2528, %v2530, %v2526
        %v2532 = vmul.f32 1.0, %v2531
        %v2533 = vrcp.pop %v2517
        %v2534 = vmul.f32 %v2517, %v2533
        %v2535 = vsub.f32 1.0, %v2534
        %v2536 = vmul.f32 %v2533, %v2535
        %v2537 = vadd.f32 %v2533, %v2536
        %vm2538 = vweird.f32 %v2517
        %vm2539 = vweird.f32 %v2533
        %vm2540 = vmor %vm2538, %vm2539
        %v2541 = vsel %vm2540, %v2533, %v2537
        %v2542 = vand.u32 2147483647, %v2517
        %vm2543 = vcmp.eq.f32.partialorder %v2542, 8.507059e+37
        %v2544 = vand.u32 %v2517, 2147483648
        %v2545 = vor.u32 1.1754944e-38, %v2544
        %v2546 = vsel %vm2543, %v2545, %v2541
        %v2547 = vmul.f32 1.0, %v2546
        %v2548 = vperm.slane %v2532, 0
        %v2549 = vperm.slane %v2547, 0
        %v2552 = vrot.slane %v2549, 4
        %v2553 = vsel %vm227, %v2548, %v2552
        %v2555 = vmul.f32 %v220, %v2553
        %2556 = vst [vmem:[%s219] sm:$0xff] %v2555
        %s2557 = sand.u32 %s98, 1
        %s2558 = scalar_lea.sflag [#allocation4], %s2557
        %s2559 = sand.u32 %s98, 1
        %s2560 = smul.addr %s2559, 8
        %s2561 = scalar_lea.vmem [#allocation9], %s2560
        // Predicated region
        $region45: #{tpu_custom_call.1} parent=31 // pred_check
          %p2562 = pneg %p108
        $region46: #{tpu_custom_call.1} parent=31 // pred_check_branch
          %2564 = sbr.rel (%p2562) target = $region48
        $region47: #{tpu_custom_call.1} parent=31 // pred_region
          %2566 = vsyncadd %s2558, 0
          %s2567 = smul.addr %s22, 2
          %s2568 = smul.addr %s2567, 4
          %s2569 = scalar_lea.hbm %s3, %s2568
          %s2571 = sshll.u32 %s2561, 4
          %s2572 = int_to_ptr.vmem [resolvable:$true] %s2571
          %s2573 = sshll.u32 %s2569, 4
          %s2574 = int_to_ptr.hbm [resolvable:$true] %s2573
          %2576 = dma.vmem_to_hbm [thread:$0]  %s2572, 128, %s2574, %s2558
        $region48: #{tpu_custom_call.1} parent=31 // pred_fallthru
          _
      $region32: #{tpu_custom_call.1} parent=5 // pred_fallthru
        _
      %p2577 = scmp.le.s32.totalorder 2, %s17
      // Predicated region
      $region49: #{tpu_custom_call.1} parent=5 // pred_check
        %p2578 = pneg %p2577
      $region50: #{tpu_custom_call.1} parent=5 // pred_check_branch
        %2580 = sbr.rel (%p2578) target = $region52
      $region51: #{tpu_custom_call.1} parent=5 // pred_region
        %s2581 = ssub.s32 %s17, 2
        // Predicated region
        $region53: #{tpu_custom_call.1} parent=51 // pred_check
          %p2582 = pneg %p114
        $region54: #{tpu_custom_call.1} parent=51 // pred_check_branch
          %2584 = sbr.rel (%p2582) target = $region56
        $region55: #{tpu_custom_call.1} parent=51 // pred_region
          %s2585 = sand.u32 %s99, 1
          %s2586 = scalar_lea.sflag [#allocation4], %s2585
          %s2587 = sand.u32 %s99, 1
          %s2588 = smul.addr %s2587, 8
          %s2589 = scalar_lea.vmem [#allocation9], %s2588
          %2591 = dma.done %s2586, 128
        $region56: #{tpu_custom_call.1} parent=51 // pred_fallthru
          _
      $region52: #{tpu_custom_call.1} parent=5 // pred_fallthru
        _
    $region6: #{tpu_custom_call.1} parent=1 // loop_footer
      %s21 = sadd.s32 1, %s17
    $region7: #{tpu_custom_call.1} parent=1 // loop_footer_branch
      %16 = sbr.rel target = $region3
    $region8: #{tpu_custom_call.1} parent=1 // loop_exit
      _
    %2592 = vsyncpa [#allocation3], 1
    %s2593 = scalar_lea.sflag [#allocation3], 1
    %2594 = vsyncpa %s2593, 1
    %2595 = vsyncpa [#allocation8], 1
    %s2596 = scalar_lea.sflag [#allocation8], 1
    %2597 = vsyncpa %s2596, 1
    %2598 = vsyncpa [#allocation4], 1
    %s2599 = scalar_lea.sflag [#allocation4], 1
    %2600 = vsyncpa %s2599, 1
    %2601 = vsyncpa [#allocation5], 1
    %s2602 = scalar_lea.sflag [#allocation5], 1
    %2603 = vsyncpa %s2602, 1

</llo_original>
